<compile_context>
chip_gen: v5e
topology: v5e:2x2
jax: 0.10.0
libtpu: 0.0.40
codegen_flags: <defaults>
</compile_context>

<pallas_src>
import functools

import numpy as np
import jax
import jax.numpy as jnp
from jax.experimental import pallas as pl
from jax.experimental.pallas import tpu as pltpu

LANES = 128   # vreg lane width: channel dims are zero-padded to a multiple of this
LPAD = 8      # left zero-pad columns of the conv2 scratch (sublane-aligned interior)


def _round_up(n, m):
    return ((n + m - 1) // m) * m


# ---------------------------------------------------------------------------
# Fused Bottleneck kernel (one grid step == one batch element, NHWC in VMEM)
# ---------------------------------------------------------------------------
def _bottleneck_kernel(*refs, stride, has_downsample):
    if has_downsample:
        (x_ref, w1_ref, b1_ref, w2_ref, b2_ref, w3_ref, b3_ref,
         wd_ref, bd_ref, o_ref, y1p_ref) = refs
    else:
        (x_ref, w1_ref, b1_ref, w2_ref, b2_ref, w3_ref, b3_ref,
         o_ref, y1p_ref) = refs

    H, W, Cin = x_ref.shape
    Ho, Wo, EP = o_ref.shape
    P = w1_ref.shape[1]
    s = stride
    _, Wp, _ = y1p_ref.shape            # (H + 2, W + LPAD + 1, P)

    # ---- conv1 (1x1) + folded BN1 + ReLU  (bf16 MXU operands, f32 accumulate) ----
    x = x_ref[...]                                            # (H, W, Cin) f32
    xb = x.reshape(H * W, Cin).astype(jnp.bfloat16)
    y1 = jnp.dot(xb, w1_ref[...], preferred_element_type=jnp.float32)
    y1 = jnp.maximum(y1 + b1_ref[...], 0.0)                   # (H*W, P) f32

    # ---- conv2 scratch: re-zero only the 1-px halo (interior is overwritten) -----
    # Not gated on program_id(0)==0: the batch axis is "parallel" (megacore), so a
    # core whose first iteration has b != 0 must still see a zero halo.
    y1p_ref[0:1, :, :] = jnp.zeros((1, Wp, P), jnp.float32)            # top halo row
    y1p_ref[H + 1:H + 2, :, :] = jnp.zeros((1, Wp, P), jnp.float32)    # bottom halo row
    y1p_ref[1:H + 1, LPAD - 1:LPAD, :] = jnp.zeros((H, 1, P), jnp.float32)          # left
    y1p_ref[1:H + 1, LPAD + W:LPAD + W + 1, :] = jnp.zeros((H, 1, P), jnp.float32)  # right
    # interior store starts at column LPAD == 8 -> sublane-aligned, unmasked vst
    y1p_ref[1:H + 1, LPAD:LPAD + W, :] = y1.reshape(H, W, P)

    # ---- conv2 (3x3, stride) + folded BN2 + ReLU ---------------------------------
    # In-kernel im2col as 9 accumulated MXU dots over the halo-padded scratch:
    # no patch matrix in HBM, no lane concat, one tap live at a time.
    y2 = jnp.zeros((Ho * Wo, P), jnp.float32)
    for dy in range(3):
        for dx in range(3):
            c0 = LPAD - 1 + dx
            if s == 1:
                t = y1p_ref[dy:dy + Ho, c0:c0 + Wo, :]
            else:
                t = y1p_ref[pl.ds(dy, Ho, s), pl.ds(c0, Wo, s), :]
            tap = t.reshape(Ho * Wo, P).astype(jnp.bfloat16)
            y2 = y2 + jnp.dot(tap, w2_ref[dy * 3 + dx],
                              preferred_element_type=jnp.float32)
    y2 = jnp.maximum(y2 + b2_ref[...], 0.0).astype(jnp.bfloat16)       # (Ho*Wo, P)

    # ---- conv3 (1x1) + folded BN3, fused residual add + ReLU epilogue ------------
    y3 = jnp.dot(y2, w3_ref[...], preferred_element_type=jnp.float32)
    y3 = y3 + b3_ref[...]                                              # (Ho*Wo, EP) f32
    if has_downsample:
        # 1x1 stride-s shortcut: strided pixels read straight out of the x tile that
        # is already resident in VMEM (no second input / second DMA stream).
        xd = x_ref[pl.ds(0, Ho, s), pl.ds(0, Wo, s), :]
        res = jnp.dot(xd.reshape(Ho * Wo, Cin).astype(jnp.bfloat16), wd_ref[...],
                      preferred_element_type=jnp.float32) + bd_ref[...]
    else:
        res = x.reshape(H * W, EP)     # identity: stride == 1, Cin == EP (pad alike)
    out = jnp.maximum(y3 + res, 0.0)
    o_ref[...] = out.reshape(Ho, Wo, EP)


def bottleneck_forward(x_nchw, kp, *, stride=1, has_downsample=False, out_planes=None):
    """Bottleneck forward.  x_nchw: (B, Cin, H, W) f32 (PyTorch layout) -> NCHW f32."""
    x = jnp.transpose(x_nchw, (0, 2, 3, 1)).astype(jnp.float32)     # NHWC (channels on lanes)
    B, H, W, Cin = x.shape
    Cp = kp['w1m'].shape[0]      # lane-padded input channels
    Pp = kp['w1m'].shape[1]      # lane-padded planes
    EPp = kp['w3m'].shape[1]     # lane-padded expansion*planes
    EP = EPp if out_planes is None else out_planes
    Ho = (H - 1) // stride + 1
    Wo = (W - 1) // stride + 1
    if not has_downsample:
        assert stride == 1 and Cin == EP, \
            "identity residual needs stride=1 and in_planes == expansion*planes"
    if Cp > Cin:                 # exact: padded channels are zeros end-to-end
        x = jnp.pad(x, ((0, 0), (0, 0), (0, 0), (0, Cp - Cin)))

    def const_spec(shape):
        return pl.BlockSpec(shape, lambda b: (0,) * len(shape))

    names = ['w1m', 'b1', 'w2m', 'b2', 'w3m', 'b3']
    if has_downsample:
        names += ['wdm', 'bd']
    inputs = [x] + [kp[n] for n in names]
    in_specs = [pl.BlockSpec((None, H, W, Cp), lambda b: (b, 0, 0, 0))]
    in_specs += [const_spec(kp[n].shape) for n in names]

    kernel = functools.partial(_bottleneck_kernel, stride=stride,
                               has_downsample=has_downsample)
    out = pl.pallas_call(
        kernel,
        out_shape=jax.ShapeDtypeStruct((B, Ho, Wo, EPp), jnp.float32),
        grid_spec=pltpu.PrefetchScalarGridSpec(
            num_scalar_prefetch=0,
            grid=(B,),
            in_specs=in_specs,
            out_specs=pl.BlockSpec((None, Ho, Wo, EPp), lambda b: (b, 0, 0, 0)),
            scratch_shapes=[pltpu.VMEM((H + 2, W + LPAD + 1, Pp), jnp.float32)],
        ),
        compiler_params=pltpu.CompilerParams(
            dimension_semantics=("parallel",),          # megacore splits batches
            vmem_limit_bytes=64 * 1024 * 1024,          # raise scoped limit for big tiles
        ),
    )(*inputs)
    out = out[..., :EP]                                  # drop lane-padding channels
    return jnp.transpose(out, (0, 3, 1, 2))              # back to NCHW


# ---------------------------------------------------------------------------
# Parameters (PyTorch layouts), eval-mode BN folding, lane-padded matmul packing
# ---------------------------------------------------------------------------
def _fold_bn(w_oihw, bn, eps=1e-5):
    gamma, beta, mean, var = bn
    s = gamma / jnp.sqrt(var + eps)
    return w_oihw * s[:, None, None, None], beta - mean * s


def make_bottleneck_params(key, in_planes, planes, expansion=4, has_downsample=False):
    EP = expansion * planes
    ks = jax.random.split(key, 8)

    def conv_w(k, cout, cin, kh, kw):
        fan = cin * kh * kw
        return jax.random.normal(k, (cout, cin, kh, kw), jnp.float32) * (2.0 / fan) ** 0.5

    def bn(k, c):
        k1, k2, k3, k4 = jax.random.split(k, 4)
        gamma = 1.0 + 0.2 * jax.random.normal(k1, (c,), jnp.float32)
        beta = 0.1 * jax.random.normal(k2, (c,), jnp.float32)
        mean = 0.1 * jax.random.normal(k3, (c,), jnp.float32)
        var = 1.0 + 0.2 * jax.random.uniform(k4, (c,), jnp.float32)
        return gamma, beta, mean, var

    p = {
        'w1': conv_w(ks[0], planes, in_planes, 1, 1), 'bn1': bn(ks[1], planes),
        'w2': conv_w(ks[2], planes, planes, 3, 3),    'bn2': bn(ks[3], planes),
        'w3': conv_w(ks[4], EP, planes, 1, 1),        'bn3': bn(ks[5], EP),
    }
    if has_downsample:
        p['wd'] = conv_w(ks[6], EP, in_planes, 1, 1)
        p['bnd'] = bn(ks[7], EP)
    return p


def prepare_kernel_params(p, has_downsample=False, lane_pad=LANES):
    """Fold eval-mode BN, reshape to matmul layouts, zero-pad channels to lane multiples,
    cast weights to bf16.  Padding is exact (zero weights/bias -> zero padded channels)."""
    w1, b1 = _fold_bn(p['w1'], p['bn1'])
    w2, b2 = _fold_bn(p['w2'], p['bn2'])
    w3, b3 = _fold_bn(p['w3'], p['bn3'])
    P, Cin = w1.shape[0], w1.shape[1]
    EP = w3.shape[0]
    Cp, Pp, EPp = (_round_up(c, lane_pad) for c in (Cin, P, EP))

    def pad2(m, r, c):
        return jnp.pad(m, ((0, r - m.shape[0]), (0, c - m.shape[1])))

    w1m = pad2(w1.reshape(P, Cin).T, Cp, Pp).astype(jnp.bfloat16)          # (Cp, Pp)
    w2m = w2.transpose(2, 3, 1, 0).reshape(9, P, P)                        # (tap, cin, cout)
    w2m = jnp.pad(w2m, ((0, 0), (0, Pp - P), (0, Pp - P))).astype(jnp.bfloat16)
    w3m = pad2(w3.reshape(EP, P).T, Pp, EPp).astype(jnp.bfloat16)          # (Pp, EPp)
    kp = {
        'w1m': w1m, 'b1': pad2(b1.reshape(1, P), 1, Pp),
        'w2m': w2m, 'b2': pad2(b2.reshape(1, P), 1, Pp),
        'w3m': w3m, 'b3': pad2(b3.reshape(1, EP), 1, EPp),
    }
    if has_downsample:
        wd, bd = _fold_bn(p['wd'], p['bnd'])
        kp['wdm'] = pad2(wd.reshape(EP, Cin).T, Cp, EPp).astype(jnp.bfloat16)   # (Cp, EPp)
        kp['bd'] = pad2(bd.reshape(1, EP), 1, EPp)
    return kp


# ---------------------------------------------------------------------------
# Pure-JAX reference (lax convolutions) with the same BN fold and the same
# bf16-input / f32-accumulation quantisation as the kernel.
# ---------------------------------------------------------------------------
def bottleneck_reference(x_nchw, p, *, stride=1, has_downsample=False):
    dn = ('NHWC', 'HWIO', 'NHWC')

    def conv(v, w_oihw, s, pad):
        w = jnp.transpose(w_oihw, (2, 3, 1, 0))
        return jax.lax.conv_general_dilated(
            v.astype(jnp.bfloat16), w.astype(jnp.bfloat16),
            window_strides=(s, s), padding=pad, dimension_numbers=dn,
            preferred_element_type=jnp.float32)

    x = jnp.transpose(x_nchw, (0, 2, 3, 1)).astype(jnp.float32)
    w1, b1 = _fold_bn(p['w1'], p['bn1'])
    w2, b2 = _fold_bn(p['w2'], p['bn2'])
    w3, b3 = _fold_bn(p['w3'], p['bn3'])
    y = jnp.maximum(conv(x, w1, 1, 'VALID') + b1, 0.0)
    y = jnp.maximum(conv(y, w2, stride, [(1, 1), (1, 1)]) + b2, 0.0)
    y = conv(y, w3, 1, 'VALID') + b3
    if has_downsample:
        wd, bd = _fold_bn(p['wd'], p['bnd'])
        res = conv(x, wd, stride, 'VALID') + bd
    else:
        res = x
    out = jnp.maximum(y + res, 0.0)
    return jnp.transpose(out, (0, 3, 1, 2))


# ---------------------------------------------------------------------------
if __name__ == "__main__":
    key = jax.random.PRNGKey(0)
    k_x1, k_x2, k_p1, k_p2 = jax.random.split(key, 4)

    B, planes, expansion, H, W = 2, 8, 4, 16, 16

    # Case 1: default Bottleneck (stride=1, downsample=None -> identity residual).
    # Identity add requires in_planes == expansion * planes = 32.
    in_planes1 = expansion * planes
    x1 = jax.random.normal(k_x1, (B, in_planes1, H, W), jnp.float32)
    p1 = make_bottleneck_params(k_p1, in_planes1, planes, expansion, has_downsample=False)
    kp1 = prepare_kernel_params(p1, has_downsample=False)
    fwd1 = jax.jit(functools.partial(bottleneck_forward, stride=1, has_downsample=False,
                                     out_planes=expansion * planes))
    out1 = jax.block_until_ready(fwd1(x1, kp1))
    ref1 = jax.block_until_ready(bottleneck_reference(x1, p1, stride=1, has_downsample=False))
    assert out1.shape == (B, expansion * planes, H, W), out1.shape
    np.testing.assert_allclose(np.asarray(out1), np.asarray(ref1), rtol=1e-2, atol=1e-2)

    # Case 2: downsampling Bottleneck (stride=2, shortcut = 1x1 stride-2 conv + BN).
    in_planes2 = 16
    x2 = jax.random.normal(k_x2, (B, in_planes2, H, W), jnp.float32)
    p2 = make_bottleneck_params(k_p2, in_planes2, planes, expansion, has_downsample=True)
    kp2 = prepare_kernel_params(p2, has_downsample=True)
    fwd2 = jax.jit(functools.partial(bottleneck_forward, stride=2, has_downsample=True,
                                     out_planes=expansion * planes))
    out2 = jax.block_until_ready(fwd2(x2, kp2))
    ref2 = jax.block_until_ready(bottleneck_reference(x2, p2, stride=2, has_downsample=True))
    assert out2.shape == (B, expansion * planes, H // 2, W // 2), out2.shape
    np.testing.assert_allclose(np.asarray(out2), np.asarray(ref2), rtol=1e-2, atol=1e-2)

    print("KERNEL_OK")
</pallas_src>

<mosaic_0001>
module attributes {stable_mosaic.version = 11 : i64} {
  func.func @_bottleneck_kernel(%arg0: i32, %arg1: memref<1x16x16x128xf32, #tpu.memory_space<vmem>>, %arg2: memref<128x128xbf16, #tpu.memory_space<vmem>>, %arg3: memref<1x128xf32, #tpu.memory_space<vmem>>, %arg4: memref<9x128x128xbf16, #tpu.memory_space<vmem>>, %arg5: memref<1x128xf32, #tpu.memory_space<vmem>>, %arg6: memref<128x128xbf16, #tpu.memory_space<vmem>>, %arg7: memref<1x128xf32, #tpu.memory_space<vmem>>, %arg8: memref<1x16x16x128xf32, #tpu.memory_space<vmem>>, %arg9: memref<18x25x128xf32, #tpu.memory_space<vmem>>) attributes {dimension_semantics = [#tpu.dimension_semantics<parallel>], iteration_bounds = array<i64: 2>, scalar_prefetch = 0 : i64, scratch_operands = 1 : i64, tpu.core_type = #tpu.core_type<tc>, window_params = [{transform_indices = @transform_0, window_bounds = array<i64: 1, 16, 16, 128>}, {pipeline_mode = #tpu.pipeline_mode<synchronous>, transform_indices = @transform_1, window_bounds = array<i64: 128, 128>}, {pipeline_mode = #tpu.pipeline_mode<synchronous>, transform_indices = @transform_2, window_bounds = array<i64: 1, 128>}, {pipeline_mode = #tpu.pipeline_mode<synchronous>, transform_indices = @transform_3, window_bounds = array<i64: 9, 128, 128>}, {pipeline_mode = #tpu.pipeline_mode<synchronous>, transform_indices = @transform_4, window_bounds = array<i64: 1, 128>}, {pipeline_mode = #tpu.pipeline_mode<synchronous>, transform_indices = @transform_5, window_bounds = array<i64: 128, 128>}, {pipeline_mode = #tpu.pipeline_mode<synchronous>, transform_indices = @transform_6, window_bounds = array<i64: 1, 128>}, {transform_indices = @transform_7, window_bounds = array<i64: 1, 16, 16, 128>}]} {
    %c0 = arith.constant 0 : index
    %c0_0 = arith.constant 0 : index
    %c0_1 = arith.constant 0 : index
    %c0_2 = arith.constant 0 : index
    %0 = vector.load %arg1[%c0, %c0_0, %c0_1, %c0_2] : memref<1x16x16x128xf32, #tpu.memory_space<vmem>>, vector<1x16x16x128xf32>
    %1 = vector.shape_cast %0 : vector<1x16x16x128xf32> to vector<16x16x128xf32>
    %2 = vector.shape_cast %1 : vector<16x16x128xf32> to vector<256x128xf32>
    %3 = arith.truncf %2 : vector<256x128xf32> to vector<256x128xbf16>
    %c0_3 = arith.constant 0 : index
    %c0_4 = arith.constant 0 : index
    %4 = vector.load %arg2[%c0_3, %c0_4] : memref<128x128xbf16, #tpu.memory_space<vmem>>, vector<128x128xbf16>
    %cst = arith.constant dense<0.000000e+00> : vector<256x128xf32>
    %5 = tpu.matmul %3, %4, %cst {dimension_numbers = #tpu.dot_dimension_numbers<[1], [0], [0], [1], [0, 0, 1, 1], [], []>} : vector<256x128xbf16>, vector<128x128xbf16>, vector<256x128xf32> -> vector<256x128xf32>
    %c0_5 = arith.constant 0 : index
    %c0_6 = arith.constant 0 : index
    %6 = vector.load %arg3[%c0_5, %c0_6] : memref<1x128xf32, #tpu.memory_space<vmem>>, vector<1x128xf32>
    %7 = vector.broadcast %6 : vector<1x128xf32> to vector<256x128xf32>
    %8 = arith.addf %5, %7 : vector<256x128xf32>
    %cst_7 = arith.constant 0.000000e+00 : f32
    %9 = vector.broadcast %cst_7 : f32 to vector<256x128xf32>
    %10 = arith.maximumf %8, %9 : vector<256x128xf32>
    %cst_8 = arith.constant 0.000000e+00 : f32
    %11 = vector.broadcast %cst_8 : f32 to vector<1x25x128xf32>
    %c0_9 = arith.constant 0 : index
    %c0_10 = arith.constant 0 : index
    %c0_11 = arith.constant 0 : index
    %12 = vector.load %arg9[%c0_9, %c0_10, %c0_11] : memref<18x25x128xf32, #tpu.memory_space<vmem>>, vector<1x25x128xf32>
    tpu.vector_store %arg9[%c0_9, %c0_10, %c0_11], %11 {strides = array<i32>} : memref<18x25x128xf32, #tpu.memory_space<vmem>>, vector<1x25x128xf32>,
    %cst_12 = arith.constant 0.000000e+00 : f32
    %13 = vector.broadcast %cst_12 : f32 to vector<1x25x128xf32>
    %c17 = arith.constant 17 : index
    %c0_13 = arith.constant 0 : index
    %c0_14 = arith.constant 0 : index
    %14 = vector.load %arg9[%c17, %c0_13, %c0_14] : memref<18x25x128xf32, #tpu.memory_space<vmem>>, vector<1x25x128xf32>
    tpu.vector_store %arg9[%c17, %c0_13, %c0_14], %13 {strides = array<i32>} : memref<18x25x128xf32, #tpu.memory_space<vmem>>, vector<1x25x128xf32>,
    %cst_15 = arith.constant 0.000000e+00 : f32
    %15 = vector.broadcast %cst_15 : f32 to vector<16x1x128xf32>
    %c1 = arith.constant 1 : index
    %c7 = arith.constant 7 : index
    %c0_16 = arith.constant 0 : index
    %16 = vector.load %arg9[%c1, %c7, %c0_16] : memref<18x25x128xf32, #tpu.memory_space<vmem>>, vector<16x1x128xf32>
    tpu.vector_store %arg9[%c1, %c7, %c0_16], %15 {strides = array<i32>} : memref<18x25x128xf32, #tpu.memory_space<vmem>>, vector<16x1x128xf32>,
    %cst_17 = arith.constant 0.000000e+00 : f32
    %17 = vector.broadcast %cst_17 : f32 to vector<16x1x128xf32>
    %c1_18 = arith.constant 1 : index
    %c24 = arith.constant 24 : index
    %c0_19 = arith.constant 0 : index
    %18 = vector.load %arg9[%c1_18, %c24, %c0_19] : memref<18x25x128xf32, #tpu.memory_space<vmem>>, vector<16x1x128xf32>
    tpu.vector_store %arg9[%c1_18, %c24, %c0_19], %17 {strides = array<i32>} : memref<18x25x128xf32, #tpu.memory_space<vmem>>, vector<16x1x128xf32>,
    %19 = vector.shape_cast %10 : vector<256x128xf32> to vector<16x16x128xf32>
    %c1_20 = arith.constant 1 : index
    %c8 = arith.constant 8 : index
    %c0_21 = arith.constant 0 : index
    %20 = vector.load %arg9[%c1_20, %c8, %c0_21] : memref<18x25x128xf32, #tpu.memory_space<vmem>>, vector<16x16x128xf32>
    tpu.vector_store %arg9[%c1_20, %c8, %c0_21], %19 {strides = array<i32>} : memref<18x25x128xf32, #tpu.memory_space<vmem>>, vector<16x16x128xf32>,
    %cst_22 = arith.constant 0.000000e+00 : f32
    %21 = vector.broadcast %cst_22 : f32 to vector<256x128xf32>
    %c0_23 = arith.constant 0 : index
    %c7_24 = arith.constant 7 : index
    %c0_25 = arith.constant 0 : index
    %22 = vector.load %arg9[%c0_23, %c7_24, %c0_25] : memref<18x25x128xf32, #tpu.memory_space<vmem>>, vector<16x16x128xf32>
    %23 = vector.shape_cast %22 : vector<16x16x128xf32> to vector<256x128xf32>
    %24 = arith.truncf %23 : vector<256x128xf32> to vector<256x128xbf16>
    %c0_26 = arith.constant 0 : index
    %c0_27 = arith.constant 0 : index
    %c0_28 = arith.constant 0 : index
    %25 = vector.load %arg4[%c0_26, %c0_27, %c0_28] : memref<9x128x128xbf16, #tpu.memory_space<vmem>>, vector<1x128x128xbf16>
    %26 = vector.shape_cast %25 : vector<1x128x128xbf16> to vector<128x128xbf16>
    %cst_29 = arith.constant dense<0.000000e+00> : vector<256x128xf32>
    %27 = tpu.matmul %24, %26, %cst_29 {dimension_numbers = #tpu.dot_dimension_numbers<[1], [0], [0], [1], [0, 0, 1, 1], [], []>} : vector<256x128xbf16>, vector<128x128xbf16>, vector<256x128xf32> -> vector<256x128xf32>
    %28 = arith.addf %21, %27 : vector<256x128xf32>
    %c0_30 = arith.constant 0 : index
    %c8_31 = arith.constant 8 : index
    %c0_32 = arith.constant 0 : index
    %29 = vector.load %arg9[%c0_30, %c8_31, %c0_32] : memref<18x25x128xf32, #tpu.memory_space<vmem>>, vector<16x16x128xf32>
    %30 = vector.shape_cast %29 : vector<16x16x128xf32> to vector<256x128xf32>
    %31 = arith.truncf %30 : vector<256x128xf32> to vector<256x128xbf16>
    %c1_33 = arith.constant 1 : index
    %c0_34 = arith.constant 0 : index
    %c0_35 = arith.constant 0 : index
    %32 = vector.load %arg4[%c1_33, %c0_34, %c0_35] : memref<9x128x128xbf16, #tpu.memory_space<vmem>>, vector<1x128x128xbf16>
    %33 = vector.shape_cast %32 : vector<1x128x128xbf16> to vector<128x128xbf16>
    %cst_36 = arith.constant dense<0.000000e+00> : vector<256x128xf32>
    %34 = tpu.matmul %31, %33, %cst_36 {dimension_numbers = #tpu.dot_dimension_numbers<[1], [0], [0], [1], [0, 0, 1, 1], [], []>} : vector<256x128xbf16>, vector<128x128xbf16>, vector<256x128xf32> -> vector<256x128xf32>
    %35 = arith.addf %28, %34 : vector<256x128xf32>
    %c0_37 = arith.constant 0 : index
    %c9 = arith.constant 9 : index
    %c0_38 = arith.constant 0 : index
    %36 = vector.load %arg9[%c0_37, %c9, %c0_38] : memref<18x25x128xf32, #tpu.memory_space<vmem>>, vector<16x16x128xf32>
    %37 = vector.shape_cast %36 : vector<16x16x128xf32> to vector<256x128xf32>
    %38 = arith.truncf %37 : vector<256x128xf32> to vector<256x128xbf16>
    %c2 = arith.constant 2 : index
    %c0_39 = arith.constant 0 : index
    %c0_40 = arith.constant 0 : index
    %39 = vector.load %arg4[%c2, %c0_39, %c0_40] : memref<9x128x128xbf16, #tpu.memory_space<vmem>>, vector<1x128x128xbf16>
    %40 = vector.shape_cast %39 : vector<1x128x128xbf16> to vector<128x128xbf16>
    %cst_41 = arith.constant dense<0.000000e+00> : vector<256x128xf32>
    %41 = tpu.matmul %38, %40, %cst_41 {dimension_numbers = #tpu.dot_dimension_numbers<[1], [0], [0], [1], [0, 0, 1, 1], [], []>} : vector<256x128xbf16>, vector<128x128xbf16>, vector<256x128xf32> -> vector<256x128xf32>
    %42 = arith.addf %35, %41 : vector<256x128xf32>
    %c1_42 = arith.constant 1 : index
    %c7_43 = arith.constant 7 : index
    %c0_44 = arith.constant 0 : index
    %43 = vector.load %arg9[%c1_42, %c7_43, %c0_44] : memref<18x25x128xf32, #tpu.memory_space<vmem>>, vector<16x16x128xf32>
    %44 = vector.shape_cast %43 : vector<16x16x128xf32> to vector<256x128xf32>
    %45 = arith.truncf %44 : vector<256x128xf32> to vector<256x128xbf16>
    %c3 = arith.constant 3 : index
    %c0_45 = arith.constant 0 : index
    %c0_46 = arith.constant 0 : index
    %46 = vector.load %arg4[%c3, %c0_45, %c0_46] : memref<9x128x128xbf16, #tpu.memory_space<vmem>>, vector<1x128x128xbf16>
    %47 = vector.shape_cast %46 : vector<1x128x128xbf16> to vector<128x128xbf16>
    %cst_47 = arith.constant dense<0.000000e+00> : vector<256x128xf32>
    %48 = tpu.matmul %45, %47, %cst_47 {dimension_numbers = #tpu.dot_dimension_numbers<[1], [0], [0], [1], [0, 0, 1, 1], [], []>} : vector<256x128xbf16>, vector<128x128xbf16>, vector<256x128xf32> -> vector<256x128xf32>
    %49 = arith.addf %42, %48 : vector<256x128xf32>
    %c1_48 = arith.constant 1 : index
    %c8_49 = arith.constant 8 : index
    %c0_50 = arith.constant 0 : index
    %50 = vector.load %arg9[%c1_48, %c8_49, %c0_50] : memref<18x25x128xf32, #tpu.memory_space<vmem>>, vector<16x16x128xf32>
    %51 = vector.shape_cast %50 : vector<16x16x128xf32> to vector<256x128xf32>
    %52 = arith.truncf %51 : vector<256x128xf32> to vector<256x128xbf16>
    %c4 = arith.constant 4 : index
    %c0_51 = arith.constant 0 : index
    %c0_52 = arith.constant 0 : index
    %53 = vector.load %arg4[%c4, %c0_51, %c0_52] : memref<9x128x128xbf16, #tpu.memory_space<vmem>>, vector<1x128x128xbf16>
    %54 = vector.shape_cast %53 : vector<1x128x128xbf16> to vector<128x128xbf16>
    %cst_53 = arith.constant dense<0.000000e+00> : vector<256x128xf32>
    %55 = tpu.matmul %52, %54, %cst_53 {dimension_numbers = #tpu.dot_dimension_numbers<[1], [0], [0], [1], [0, 0, 1, 1], [], []>} : vector<256x128xbf16>, vector<128x128xbf16>, vector<256x128xf32> -> vector<256x128xf32>
    %56 = arith.addf %49, %55 : vector<256x128xf32>
    %c1_54 = arith.constant 1 : index
    %c9_55 = arith.constant 9 : index
    %c0_56 = arith.constant 0 : index
    %57 = vector.load %arg9[%c1_54, %c9_55, %c0_56] : memref<18x25x128xf32, #tpu.memory_space<vmem>>, vector<16x16x128xf32>
    %58 = vector.shape_cast %57 : vector<16x16x128xf32> to vector<256x128xf32>
    %59 = arith.truncf %58 : vector<256x128xf32> to vector<256x128xbf16>
    %c5 = arith.constant 5 : index
    %c0_57 = arith.constant 0 : index
    %c0_58 = arith.constant 0 : index
    %60 = vector.load %arg4[%c5, %c0_57, %c0_58] : memref<9x128x128xbf16, #tpu.memory_space<vmem>>, vector<1x128x128xbf16>
    %61 = vector.shape_cast %60 : vector<1x128x128xbf16> to vector<128x128xbf16>
    %cst_59 = arith.constant dense<0.000000e+00> : vector<256x128xf32>
    %62 = tpu.matmul %59, %61, %cst_59 {dimension_numbers = #tpu.dot_dimension_numbers<[1], [0], [0], [1], [0, 0, 1, 1], [], []>} : vector<256x128xbf16>, vector<128x128xbf16>, vector<256x128xf32> -> vector<256x128xf32>
    %63 = arith.addf %56, %62 : vector<256x128xf32>
    %c2_60 = arith.constant 2 : index
    %c7_61 = arith.constant 7 : index
    %c0_62 = arith.constant 0 : index
    %64 = vector.load %arg9[%c2_60, %c7_61, %c0_62] : memref<18x25x128xf32, #tpu.memory_space<vmem>>, vector<16x16x128xf32>
    %65 = vector.shape_cast %64 : vector<16x16x128xf32> to vector<256x128xf32>
    %66 = arith.truncf %65 : vector<256x128xf32> to vector<256x128xbf16>
    %c6 = arith.constant 6 : index
    %c0_63 = arith.constant 0 : index
    %c0_64 = arith.constant 0 : index
    %67 = vector.load %arg4[%c6, %c0_63, %c0_64] : memref<9x128x128xbf16, #tpu.memory_space<vmem>>, vector<1x128x128xbf16>
    %68 = vector.shape_cast %67 : vector<1x128x128xbf16> to vector<128x128xbf16>
    %cst_65 = arith.constant dense<0.000000e+00> : vector<256x128xf32>
    %69 = tpu.matmul %66, %68, %cst_65 {dimension_numbers = #tpu.dot_dimension_numbers<[1], [0], [0], [1], [0, 0, 1, 1], [], []>} : vector<256x128xbf16>, vector<128x128xbf16>, vector<256x128xf32> -> vector<256x128xf32>
    %70 = arith.addf %63, %69 : vector<256x128xf32>
    %c2_66 = arith.constant 2 : index
    %c8_67 = arith.constant 8 : index
    %c0_68 = arith.constant 0 : index
    %71 = vector.load %arg9[%c2_66, %c8_67, %c0_68] : memref<18x25x128xf32, #tpu.memory_space<vmem>>, vector<16x16x128xf32>
    %72 = vector.shape_cast %71 : vector<16x16x128xf32> to vector<256x128xf32>
    %73 = arith.truncf %72 : vector<256x128xf32> to vector<256x128xbf16>
    %c7_69 = arith.constant 7 : index
    %c0_70 = arith.constant 0 : index
    %c0_71 = arith.constant 0 : index
    %74 = vector.load %arg4[%c7_69, %c0_70, %c0_71] : memref<9x128x128xbf16, #tpu.memory_space<vmem>>, vector<1x128x128xbf16>
    %75 = vector.shape_cast %74 : vector<1x128x128xbf16> to vector<128x128xbf16>
    %cst_72 = arith.constant dense<0.000000e+00> : vector<256x128xf32>
    %76 = tpu.matmul %73, %75, %cst_72 {dimension_numbers = #tpu.dot_dimension_numbers<[1], [0], [0], [1], [0, 0, 1, 1], [], []>} : vector<256x128xbf16>, vector<128x128xbf16>, vector<256x128xf32> -> vector<256x128xf32>
    %77 = arith.addf %70, %76 : vector<256x128xf32>
    %c2_73 = arith.constant 2 : index
    %c9_74 = arith.constant 9 : index
    %c0_75 = arith.constant 0 : index
    %78 = vector.load %arg9[%c2_73, %c9_74, %c0_75] : memref<18x25x128xf32, #tpu.memory_space<vmem>>, vector<16x16x128xf32>
    %79 = vector.shape_cast %78 : vector<16x16x128xf32> to vector<256x128xf32>
    %80 = arith.truncf %79 : vector<256x128xf32> to vector<256x128xbf16>
    %c8_76 = arith.constant 8 : index
    %c0_77 = arith.constant 0 : index
    %c0_78 = arith.constant 0 : index
    %81 = vector.load %arg4[%c8_76, %c0_77, %c0_78] : memref<9x128x128xbf16, #tpu.memory_space<vmem>>, vector<1x128x128xbf16>
    %82 = vector.shape_cast %81 : vector<1x128x128xbf16> to vector<128x128xbf16>
    %cst_79 = arith.constant dense<0.000000e+00> : vector<256x128xf32>
    %83 = tpu.matmul %80, %82, %cst_79 {dimension_numbers = #tpu.dot_dimension_numbers<[1], [0], [0], [1], [0, 0, 1, 1], [], []>} : vector<256x128xbf16>, vector<128x128xbf16>, vector<256x128xf32> -> vector<256x128xf32>
    %84 = arith.addf %77, %83 : vector<256x128xf32>
    %c0_80 = arith.constant 0 : index
    %c0_81 = arith.constant 0 : index
    %85 = vector.load %arg5[%c0_80, %c0_81] : memref<1x128xf32, #tpu.memory_space<vmem>>, vector<1x128xf32>
    %86 = vector.broadcast %85 : vector<1x128xf32> to vector<256x128xf32>
    %87 = arith.addf %84, %86 : vector<256x128xf32>
    %cst_82 = arith.constant 0.000000e+00 : f32
    %88 = vector.broadcast %cst_82 : f32 to vector<256x128xf32>
    %89 = arith.maximumf %87, %88 : vector<256x128xf32>
    %90 = arith.truncf %89 : vector<256x128xf32> to vector<256x128xbf16>
    %c0_83 = arith.constant 0 : index
    %c0_84 = arith.constant 0 : index
    %91 = vector.load %arg6[%c0_83, %c0_84] : memref<128x128xbf16, #tpu.memory_space<vmem>>, vector<128x128xbf16>
    %cst_85 = arith.constant dense<0.000000e+00> : vector<256x128xf32>
    %92 = tpu.matmul %90, %91, %cst_85 {dimension_numbers = #tpu.dot_dimension_numbers<[1], [0], [0], [1], [0, 0, 1, 1], [], []>} : vector<256x128xbf16>, vector<128x128xbf16>, vector<256x128xf32> -> vector<256x128xf32>
    %c0_86 = arith.constant 0 : index
    %c0_87 = arith.constant 0 : index
    %93 = vector.load %arg7[%c0_86, %c0_87] : memref<1x128xf32, #tpu.memory_space<vmem>>, vector<1x128xf32>
    %94 = vector.broadcast %93 : vector<1x128xf32> to vector<256x128xf32>
    %95 = arith.addf %92, %94 : vector<256x128xf32>
    %96 = vector.shape_cast %1 : vector<16x16x128xf32> to vector<256x128xf32>
    %97 = arith.addf %95, %96 : vector<256x128xf32>
    %cst_88 = arith.constant 0.000000e+00 : f32
    %98 = vector.broadcast %cst_88 : f32 to vector<256x128xf32>
    %99 = arith.maximumf %97, %98 : vector<256x128xf32>
    %100 = vector.shape_cast %99 : vector<256x128xf32> to vector<16x16x128xf32>
    %c0_89 = arith.constant 0 : index
    %c0_90 = arith.constant 0 : index
    %c0_91 = arith.constant 0 : index
    %c0_92 = arith.constant 0 : index
    %101 = vector.load %arg8[%c0_89, %c0_90, %c0_91, %c0_92] : memref<1x16x16x128xf32, #tpu.memory_space<vmem>>, vector<1x16x16x128xf32>
    %102 = vector.shape_cast %101 : vector<1x16x16x128xf32> to vector<16x16x128xf32>
    %103 = vector.shape_cast %100 : vector<16x16x128xf32> to vector<1x16x16x128xf32>
    tpu.vector_store %arg8[%c0_89, %c0_90, %c0_91, %c0_92], %103 {strides = array<i32>} : memref<1x16x16x128xf32, #tpu.memory_space<vmem>>, vector<1x16x16x128xf32>,
    return
  }
  func.func @transform_0(%arg0: i32) -> (i32, i32, i32, i32) {
    %c0_i32 = arith.constant 0 : i32
    %c0_i32_0 = arith.constant 0 : i32
    %c0_i32_1 = arith.constant 0 : i32
    %c0_i32_2 = arith.constant 0 : i32
    return %arg0, %c0_i32, %c0_i32_0, %c0_i32_1 : i32, i32, i32, i32
  }
  func.func @transform_1(%arg0: i32) -> (i32, i32) {
    %c0_i32 = arith.constant 0 : i32
    %c0_i32_0 = arith.constant 0 : i32
    %c0_i32_1 = arith.constant 0 : i32
    return %c0_i32, %c0_i32_0 : i32, i32
  }
  func.func @transform_2(%arg0: i32) -> (i32, i32) {
    %c0_i32 = arith.constant 0 : i32
    %c0_i32_0 = arith.constant 0 : i32
    %c0_i32_1 = arith.constant 0 : i32
    return %c0_i32, %c0_i32_0 : i32, i32
  }
  func.func @transform_3(%arg0: i32) -> (i32, i32, i32) {
    %c0_i32 = arith.constant 0 : i32
    %c0_i32_0 = arith.constant 0 : i32
    %c0_i32_1 = arith.constant 0 : i32
    %c0_i32_2 = arith.constant 0 : i32
    return %c0_i32, %c0_i32_0, %c0_i32_1 : i32, i32, i32
  }
  func.func @transform_4(%arg0: i32) -> (i32, i32) {
    %c0_i32 = arith.constant 0 : i32
    %c0_i32_0 = arith.constant 0 : i32
    %c0_i32_1 = arith.constant 0 : i32
    return %c0_i32, %c0_i32_0 : i32, i32
  }
  func.func @transform_5(%arg0: i32) -> (i32, i32) {
    %c0_i32 = arith.constant 0 : i32
    %c0_i32_0 = arith.constant 0 : i32
    %c0_i32_1 = arith.constant 0 : i32
    return %c0_i32, %c0_i32_0 : i32, i32
  }
  func.func @transform_6(%arg0: i32) -> (i32, i32) {
    %c0_i32 = arith.constant 0 : i32
    %c0_i32_0 = arith.constant 0 : i32
    %c0_i32_1 = arith.constant 0 : i32
    return %c0_i32, %c0_i32_0 : i32, i32
  }
  func.func @transform_7(%arg0: i32) -> (i32, i32, i32, i32) {
    %c0_i32 = arith.constant 0 : i32
    %c0_i32_0 = arith.constant 0 : i32
    %c0_i32_1 = arith.constant 0 : i32
    %c0_i32_2 = arith.constant 0 : i32
    return %arg0, %c0_i32, %c0_i32_0, %c0_i32_1 : i32, i32, i32, i32
  }
}

</mosaic_0001>

<llo_original>
// kernel: bottleneck_forward.1
$region0: #{bottleneck_forward.1}
  #allocation0 [shape = 'u32[]', space=smem, size = 0x4, offset = 0x4, fixed_abs, tag = 'smem constant byte address 0x4 - core index']
  #allocation1 [shape = 'u32[72,128]{1,0:T(1,128)}', space=vmem, size = 0x9000, scoped, tag = 'internal scratch']
  #allocation2 [shape = 'f32[18,25,128]{2,1,0:T(8,128)}', space=vmem, size = 0x48000, scoped, tag = 'scratch operand']
  %s0 = inlined_call_operand.vmem [shape: f32[2,16,16,128], index: 0, kind: input, shape index: {}]
  %s1 = inlined_call_operand.vmem [shape: bf16[128,128], index: 1, kind: input, shape index: {}]
  %s2 = inlined_call_operand.vmem [shape: f32[1,128], index: 2, kind: input, shape index: {}]
  %s3 = inlined_call_operand.vmem [shape: bf16[9,128,128], index: 3, kind: input, shape index: {}]
  %s4 = inlined_call_operand.vmem [shape: f32[1,128], index: 4, kind: input, shape index: {}]
  %s5 = inlined_call_operand.vmem [shape: bf16[128,128], index: 5, kind: input, shape index: {}]
  %s6 = inlined_call_operand.vmem [shape: f32[1,128], index: 6, kind: input, shape index: {}]
  %s7 = inlined_call_operand.vmem [shape: f32[2,16,16,128], index: 7, kind: output, shape index: {}]
  %s8 = sld [smem:[#allocation0]]
  $region61: #{bottleneck_forward.1} parent=0
    _
  %s10 = ssub.s32 1, %s8
  %s11 = scalar_select 0, %s10, %s8
  loop: start=0, step=1, limit=4
  $region2: #{bottleneck_forward.1} parent=0 // loop_pre_header
    _
  $region3: #{bottleneck_forward.1} parent=0 // loop_header
    %s13 = sphi 0, %s17
    %p14 = scmp.ge.s32.totalorder %s13, 4
    %s23 = sphi 0, %s25
    %s26 = sphi 0, %s23
    %s27 = sphi 0, %s26
    %s43 = sphi 0, %s27
    %s47 = sphi 0, %s47
    %s49 = sphi 0, %s47
    %s50 = sphi 0, %s49
    %s64 = sphi 0, %s50
    %s68 = sphi 0, %s68
    %s70 = sphi 0, %s68
    %s71 = sphi 0, %s70
    %s85 = sphi 0, %s71
    %s89 = sphi 0, %s89
    %s91 = sphi 0, %s89
    %s92 = sphi 0, %s91
    %s106 = sphi 0, %s92
    %s110 = sphi 0, %s110
    %s112 = sphi 0, %s110
    %s113 = sphi 0, %s112
    %s127 = sphi 0, %s113
    %s131 = sphi 0, %s131
    %s133 = sphi 0, %s131
    %s134 = sphi 0, %s133
    %s148 = sphi 0, %s134
    %s152 = sphi 0, %s152
    %s154 = sphi 0, %s152
    %s155 = sphi 0, %s154
    %s169 = sphi 0, %s155
    %s175 = sphi 0, %s177
    %s178 = sphi 0, %s175
    %s179 = sphi 0, %s178
    %s195 = sphi 0, %s179
  $region4: #{bottleneck_forward.1} parent=0 // loop_header_branch
    %16 = sbr.rel (%p14) target = $region8
  $region5: #{bottleneck_forward.1} parent=0 // loop_body
    %s18 = ssub.s32 %s13, 1
    %s19 = ssub.s32 %s13, 2
    %s20 = sadd.s32 %s13, 1
    %s21 = ssub.s32 %s13, %s20
    %p22 = scmp.eq.s32.totalorder %s21, 0
    %s24 = sadd.s32 %s23, 1
    %s25 = scalar_select %p22, %s23, %s24
    %p28 = pneg %p22
    %p29 = scmp.eq.s32.totalorder %s13, 1
    %p30 = por %p28, %p29
    %p31 = scmp.ne.s32.totalorder %s23, %s26
    %p32 = scmp.eq.s32.totalorder %s13, 0
    %p33 = por %p31, %p32
    %p34 = scmp.ne.s32.totalorder %s23, %s26
    %p35 = scmp.eq.s32.totalorder %s18, 1
    %p36 = por %p34, %p35
    %p37 = scmp.ne.s32.totalorder %s26, %s27
    %p38 = scmp.eq.s32.totalorder %s18, 0
    %p39 = por %p37, %p38
    %p40 = scmp.ne.s32.totalorder %s26, %s27
    %p41 = scmp.eq.s32.totalorder %s19, 1
    %p42 = por %p40, %p41
    %p44 = scmp.ne.s32.totalorder %s27, %s43
    %p45 = scmp.eq.s32.totalorder %s19, 0
    %p46 = por %p44, %p45
    %s48 = sadd.s32 %s47, 1
    %p51 = scmp.eq.s32.totalorder %s13, 1
    %p52 = scmp.ne.s32.totalorder %s47, %s49
    %p53 = scmp.eq.s32.totalorder %s13, 0
    %p54 = por %p52, %p53
    %p55 = scmp.ne.s32.totalorder %s47, %s49
    %p56 = scmp.eq.s32.totalorder %s18, 1
    %p57 = por %p55, %p56
    %p58 = scmp.ne.s32.totalorder %s49, %s50
    %p59 = scmp.eq.s32.totalorder %s18, 0
    %p60 = por %p58, %p59
    %p61 = scmp.ne.s32.totalorder %s49, %s50
    %p62 = scmp.eq.s32.totalorder %s19, 1
    %p63 = por %p61, %p62
    %p65 = scmp.ne.s32.totalorder %s50, %s64
    %p66 = scmp.eq.s32.totalorder %s19, 0
    %p67 = por %p65, %p66
    %s69 = sadd.s32 %s68, 1
    %p72 = scmp.eq.s32.totalorder %s13, 1
    %p73 = scmp.ne.s32.totalorder %s68, %s70
    %p74 = scmp.eq.s32.totalorder %s13, 0
    %p75 = por %p73, %p74
    %p76 = scmp.ne.s32.totalorder %s68, %s70
    %p77 = scmp.eq.s32.totalorder %s18, 1
    %p78 = por %p76, %p77
    %p79 = scmp.ne.s32.totalorder %s70, %s71
    %p80 = scmp.eq.s32.totalorder %s18, 0
    %p81 = por %p79, %p80
    %p82 = scmp.ne.s32.totalorder %s70, %s71
    %p83 = scmp.eq.s32.totalorder %s19, 1
    %p84 = por %p82, %p83
    %p86 = scmp.ne.s32.totalorder %s71, %s85
    %p87 = scmp.eq.s32.totalorder %s19, 0
    %p88 = por %p86, %p87
    %s90 = sadd.s32 %s89, 1
    %p93 = scmp.eq.s32.totalorder %s13, 1
    %p94 = scmp.ne.s32.totalorder %s89, %s91
    %p95 = scmp.eq.s32.totalorder %s13, 0
    %p96 = por %p94, %p95
    %p97 = scmp.ne.s32.totalorder %s89, %s91
    %p98 = scmp.eq.s32.totalorder %s18, 1
    %p99 = por %p97, %p98
    %p100 = scmp.ne.s32.totalorder %s91, %s92
    %p101 = scmp.eq.s32.totalorder %s18, 0
    %p102 = por %p100, %p101
    %p103 = scmp.ne.s32.totalorder %s91, %s92
    %p104 = scmp.eq.s32.totalorder %s19, 1
    %p105 = por %p103, %p104
    %p107 = scmp.ne.s32.totalorder %s92, %s106
    %p108 = scmp.eq.s32.totalorder %s19, 0
    %p109 = por %p107, %p108
    %s111 = sadd.s32 %s110, 1
    %p114 = scmp.eq.s32.totalorder %s13, 1
    %p115 = scmp.ne.s32.totalorder %s110, %s112
    %p116 = scmp.eq.s32.totalorder %s13, 0
    %p117 = por %p115, %p116
    %p118 = scmp.ne.s32.totalorder %s110, %s112
    %p119 = scmp.eq.s32.totalorder %s18, 1
    %p120 = por %p118, %p119
    %p121 = scmp.ne.s32.totalorder %s112, %s113
    %p122 = scmp.eq.s32.totalorder %s18, 0
    %p123 = por %p121, %p122
    %p124 = scmp.ne.s32.totalorder %s112, %s113
    %p125 = scmp.eq.s32.totalorder %s19, 1
    %p126 = por %p124, %p125
    %p128 = scmp.ne.s32.totalorder %s113, %s127
    %p129 = scmp.eq.s32.totalorder %s19, 0
    %p130 = por %p128, %p129
    %s132 = sadd.s32 %s131, 1
    %p135 = scmp.eq.s32.totalorder %s13, 1
    %p136 = scmp.ne.s32.totalorder %s131, %s133
    %p137 = scmp.eq.s32.totalorder %s13, 0
    %p138 = por %p136, %p137
    %p139 = scmp.ne.s32.totalorder %s131, %s133
    %p140 = scmp.eq.s32.totalorder %s18, 1
    %p141 = por %p139, %p140
    %p142 = scmp.ne.s32.totalorder %s133, %s134
    %p143 = scmp.eq.s32.totalorder %s18, 0
    %p144 = por %p142, %p143
    %p145 = scmp.ne.s32.totalorder %s133, %s134
    %p146 = scmp.eq.s32.totalorder %s19, 1
    %p147 = por %p145, %p146
    %p149 = scmp.ne.s32.totalorder %s134, %s148
    %p150 = scmp.eq.s32.totalorder %s19, 0
    %p151 = por %p149, %p150
    %s153 = sadd.s32 %s152, 1
    %p156 = scmp.eq.s32.totalorder %s13, 1
    %p157 = scmp.ne.s32.totalorder %s152, %s154
    %p158 = scmp.eq.s32.totalorder %s13, 0
    %p159 = por %p157, %p158
    %p160 = scmp.ne.s32.totalorder %s152, %s154
    %p161 = scmp.eq.s32.totalorder %s18, 1
    %p162 = por %p160, %p161
    %p163 = scmp.ne.s32.totalorder %s154, %s155
    %p164 = scmp.eq.s32.totalorder %s18, 0
    %p165 = por %p163, %p164
    %p166 = scmp.ne.s32.totalorder %s154, %s155
    %p167 = scmp.eq.s32.totalorder %s19, 1
    %p168 = por %p166, %p167
    %p170 = scmp.ne.s32.totalorder %s155, %s169
    %p171 = scmp.eq.s32.totalorder %s19, 0
    %p172 = por %p170, %p171
    %s173 = ssub.s32 %s13, %s20
    %p174 = scmp.eq.s32.totalorder %s173, 0
    %s176 = sadd.s32 %s175, 1
    %s177 = scalar_select %p174, %s175, %s176
    %p180 = pneg %p174
    %p181 = scmp.eq.s32.totalorder %s13, 1
    %p182 = por %p180, %p181
    %p183 = scmp.ne.s32.totalorder %s175, %s178
    %p184 = scmp.eq.s32.totalorder %s13, 0
    %p185 = por %p183, %p184
    %p186 = scmp.ne.s32.totalorder %s175, %s178
    %p187 = scmp.eq.s32.totalorder %s18, 1
    %p188 = por %p186, %p187
    %p189 = scmp.ne.s32.totalorder %s178, %s179
    %p190 = scmp.eq.s32.totalorder %s18, 0
    %p191 = por %p189, %p190
    %p192 = scmp.ne.s32.totalorder %s178, %s179
    %p193 = scmp.eq.s32.totalorder %s19, 1
    %p194 = por %p192, %p193
    %p196 = scmp.ne.s32.totalorder %s179, %s195
    %p197 = scmp.eq.s32.totalorder %s19, 0
    %p198 = por %p196, %p197
    %p199 = scmp.le.s32.totalorder 1, %s13
    %p200 = scmp.lt.s32.totalorder %s13, 3
    %p201 = pnand %p199, %p200
    %p202 = pneg %p201
    // Predicated region
    $region9: #{bottleneck_forward.1} parent=5 // pred_check
      _
    $region10: #{bottleneck_forward.1} parent=5 // pred_check_branch
      %204 = sbr.rel (%p201) target = $region12
    $region11: #{bottleneck_forward.1} parent=5 // pred_region
      %s205 = ssub.s32 %s13, 1
      // Predicated region
      $region13: #{bottleneck_forward.1} parent=11 // pred_check
        %p206 = pneg %p60
      $region14: #{bottleneck_forward.1} parent=11 // pred_check_branch
        %208 = sbr.rel (%p206) target = $region16
      $region15: #{bottleneck_forward.1} parent=11 // pred_region
        _
      $region16: #{bottleneck_forward.1} parent=11 // pred_fallthru
        _
      // Predicated region
      $region17: #{bottleneck_forward.1} parent=11 // pred_check
        %p209 = pneg %p81
      $region18: #{bottleneck_forward.1} parent=11 // pred_check_branch
        %211 = sbr.rel (%p209) target = $region20
      $region19: #{bottleneck_forward.1} parent=11 // pred_region
        _
      $region20: #{bottleneck_forward.1} parent=11 // pred_fallthru
        _
      // Predicated region
      $region21: #{bottleneck_forward.1} parent=11 // pred_check
        %p212 = pneg %p102
      $region22: #{bottleneck_forward.1} parent=11 // pred_check_branch
        %214 = sbr.rel (%p212) target = $region24
      $region23: #{bottleneck_forward.1} parent=11 // pred_region
        _
      $region24: #{bottleneck_forward.1} parent=11 // pred_fallthru
        _
      // Predicated region
      $region25: #{bottleneck_forward.1} parent=11 // pred_check
        %p215 = pneg %p123
      $region26: #{bottleneck_forward.1} parent=11 // pred_check_branch
        %217 = sbr.rel (%p215) target = $region28
      $region27: #{bottleneck_forward.1} parent=11 // pred_region
        _
      $region28: #{bottleneck_forward.1} parent=11 // pred_fallthru
        _
      // Predicated region
      $region29: #{bottleneck_forward.1} parent=11 // pred_check
        %p218 = pneg %p144
      $region30: #{bottleneck_forward.1} parent=11 // pred_check_branch
        %220 = sbr.rel (%p218) target = $region32
      $region31: #{bottleneck_forward.1} parent=11 // pred_region
        _
      $region32: #{bottleneck_forward.1} parent=11 // pred_fallthru
        _
      // Predicated region
      $region33: #{bottleneck_forward.1} parent=11 // pred_check
        %p221 = pneg %p165
      $region34: #{bottleneck_forward.1} parent=11 // pred_check_branch
        %223 = sbr.rel (%p221) target = $region36
      $region35: #{bottleneck_forward.1} parent=11 // pred_region
        _
      $region36: #{bottleneck_forward.1} parent=11 // pred_fallthru
        _
    $region12: #{bottleneck_forward.1} parent=5 // pred_fallthru
      _
    %p224 = scmp.lt.s32.totalorder %s13, 2
    // Predicated region
    $region37: #{bottleneck_forward.1} parent=5 // pred_check
      %p225 = pneg %p224
    $region38: #{bottleneck_forward.1} parent=5 // pred_check_branch
      %227 = sbr.rel (%p225) target = $region40
    $region39: #{bottleneck_forward.1} parent=5 // pred_region
      // Predicated region
      $region41: #{bottleneck_forward.1} parent=39 // pred_check
        %p228 = pneg %p33
      $region42: #{bottleneck_forward.1} parent=39 // pred_check_branch
        %230 = sbr.rel (%p228) target = $region44
      $region43: #{bottleneck_forward.1} parent=39 // pred_region
        %p231 = scmp.lt.s32.totalorder %s13, 1
        %s232 = scalar_select %p231, %s13, 1
        %s233 = smul.addr %s232, 32
        %s234 = smul.addr %s233, 8
        %s235 = scalar_lea.vmem %s0, %s234
      $region44: #{bottleneck_forward.1} parent=39 // pred_fallthru
        _
    $region40: #{bottleneck_forward.1} parent=5 // pred_fallthru
      _
    %p236 = scmp.le.s32.totalorder 1, %s13
    %p237 = scmp.lt.s32.totalorder %s13, 3
    %p238 = pnand %p236, %p237
    %p239 = pneg %p238
    // Predicated region
    $region45: #{bottleneck_forward.1} parent=5 // pred_check
      _
    $region46: #{bottleneck_forward.1} parent=5 // pred_check_branch
      %241 = sbr.rel (%p238) target = $region48
    $region47: #{bottleneck_forward.1} parent=5 // pred_region
      %s242 = ssub.s32 %s13, 1
      %p243 = scmp.lt.s32.totalorder %s18, 1
      %s244 = scalar_select %p243, %s18, 1
      %s245 = smul.addr %s244, 32
      %s246 = smul.addr %s245, 8
      %s247 = scalar_lea.vmem %s0, %s246
      %p248 = pneg %p39
      %p249 = pneg %p36
      %p250 = pneg %p60
      %p251 = pneg %p57
      %p252 = pneg %p81
      %p253 = pneg %p78
      %p254 = pneg %p102
      %p255 = pneg %p99
      %p256 = pneg %p123
      %p257 = pneg %p120
      %p258 = pneg %p144
      %p259 = pneg %p141
      %p260 = pneg %p165
      %p261 = pneg %p162
      %p262 = pneg %p191
      %p263 = pneg %p188
      %p264 = scmp.lt.s32.totalorder %s18, 1
      %s265 = scalar_select %p264, %s18, 1
      %s266 = smul.addr %s265, 32
      %s267 = smul.addr %s266, 8
      %s268 = scalar_lea.vmem %s7, %s267
      %p269 = scmp.lt.s32.totalorder %s18, 1
      %s270 = scalar_select %p269, %s18, 1
      %s271 = smul.addr %s270, 32
      %s272 = smul.addr %s271, 8
      %s273 = scalar_lea.vmem %s0, %s272
      %p274 = scmp.lt.s32.totalorder %s18, 1
      %s275 = scalar_select %p274, %s18, 1
      %s276 = smul.addr %s275, 32
      %s277 = smul.addr %s276, 8
      %s278 = scalar_lea.vmem %s7, %s277
      %v279 = vld [vmem:[%s273] sm:$0xff]
      %v280 = vld [vmem:[%s273 + $0x8] sm:$0xff]
      %v281 = vld [vmem:[%s273 + $0x10] sm:$0xff]
      %v282 = vld [vmem:[%s273 + $0x18] sm:$0xff]
      %v283 = vld [vmem:[%s273 + $0x20] sm:$0xff]
      %v284 = vld [vmem:[%s273 + $0x28] sm:$0xff]
      %v285 = vld [vmem:[%s273 + $0x30] sm:$0xff]
      %v286 = vld [vmem:[%s273 + $0x38] sm:$0xff]
      %v287 = vld [vmem:[%s273 + $0x40] sm:$0xff]
      %v288 = vld [vmem:[%s273 + $0x48] sm:$0xff]
      %v289 = vld [vmem:[%s273 + $0x50] sm:$0xff]
      %v290 = vld [vmem:[%s273 + $0x58] sm:$0xff]
      %v291 = vld [vmem:[%s273 + $0x60] sm:$0xff]
      %v292 = vld [vmem:[%s273 + $0x68] sm:$0xff]
      %v293 = vld [vmem:[%s273 + $0x70] sm:$0xff]
      %v294 = vld [vmem:[%s273 + $0x78] sm:$0xff]
      %v295 = vld [vmem:[%s273 + $0x80] sm:$0xff]
      %v296 = vld [vmem:[%s273 + $0x88] sm:$0xff]
      %v297 = vld [vmem:[%s273 + $0x90] sm:$0xff]
      %v298 = vld [vmem:[%s273 + $0x98] sm:$0xff]
      %v299 = vld [vmem:[%s273 + $0xa0] sm:$0xff]
      %v300 = vld [vmem:[%s273 + $0xa8] sm:$0xff]
      %v301 = vld [vmem:[%s273 + $0xb0] sm:$0xff]
      %v302 = vld [vmem:[%s273 + $0xb8] sm:$0xff]
      %v303 = vld [vmem:[%s273 + $0xc0] sm:$0xff]
      %v304 = vld [vmem:[%s273 + $0xc8] sm:$0xff]
      %v305 = vld [vmem:[%s273 + $0xd0] sm:$0xff]
      %v306 = vld [vmem:[%s273 + $0xd8] sm:$0xff]
      %v307 = vld [vmem:[%s273 + $0xe0] sm:$0xff]
      %v308 = vld [vmem:[%s273 + $0xe8] sm:$0xff]
      %v309 = vld [vmem:[%s273 + $0xf0] sm:$0xff]
      %v310 = vld [vmem:[%s273 + $0xf8] sm:$0xff]
      %v311 = vpack.c.bf16 %v280, %v279
      %v312 = vpack.c.bf16 %v282, %v281
      %v313 = vpack.c.bf16 %v284, %v283
      %v314 = vpack.c.bf16 %v286, %v285
      %v315 = vpack.c.bf16 %v288, %v287
      %v316 = vpack.c.bf16 %v290, %v289
      %v317 = vpack.c.bf16 %v292, %v291
      %v318 = vpack.c.bf16 %v294, %v293
      %v319 = vpack.c.bf16 %v296, %v295
      %v320 = vpack.c.bf16 %v298, %v297
      %v321 = vpack.c.bf16 %v300, %v299
      %v322 = vpack.c.bf16 %v302, %v301
      %v323 = vpack.c.bf16 %v304, %v303
      %v324 = vpack.c.bf16 %v306, %v305
      %v325 = vpack.c.bf16 %v308, %v307
      %v326 = vpack.c.bf16 %v310, %v309
      %v327 = vld [vmem:[%s1] sm:$0xf]
      %v328 = vld [vmem:[%s1 + $0x4] sm:$0xf]
      %v329 = vld [vmem:[%s1 + $0x8] sm:$0xf]
      %v330 = vld [vmem:[%s1 + $0xc] sm:$0xf]
      %v331 = vld [vmem:[%s1 + $0x10] sm:$0xf]
      %v332 = vld [vmem:[%s1 + $0x14] sm:$0xf]
      %v333 = vld [vmem:[%s1 + $0x18] sm:$0xf]
      %v334 = vld [vmem:[%s1 + $0x1c] sm:$0xf]
      %v335 = vld [vmem:[%s1 + $0x20] sm:$0xf]
      %v336 = vld [vmem:[%s1 + $0x24] sm:$0xf]
      %v337 = vld [vmem:[%s1 + $0x28] sm:$0xf]
      %v338 = vld [vmem:[%s1 + $0x2c] sm:$0xf]
      %v339 = vld [vmem:[%s1 + $0x30] sm:$0xf]
      %v340 = vld [vmem:[%s1 + $0x34] sm:$0xf]
      %v341 = vld [vmem:[%s1 + $0x38] sm:$0xf]
      %v342 = vld [vmem:[%s1 + $0x3c] sm:$0xf]
      %v343 = vld [vmem:[%s2] sm:$0x1]
      %v345 = vperm.slane %v343, 0
      %v363 = vunpack.c.l.b16 %v327
      %v364 = vunpack.c.l.b16 %v328
      %v365 = vunpack.c.l.b16 %v329
      %v366 = vunpack.c.l.b16 %v330
      %v367 = vunpack.c.l.b16 %v331
      %v368 = vunpack.c.l.b16 %v332
      %v369 = vunpack.c.l.b16 %v333
      %v370 = vunpack.c.l.b16 %v334
      %v371 = vunpack.c.l.b16 %v335
      %v372 = vunpack.c.l.b16 %v336
      %v373 = vunpack.c.l.b16 %v337
      %v374 = vunpack.c.l.b16 %v338
      %v375 = vunpack.c.l.b16 %v339
      %v376 = vunpack.c.l.b16 %v340
      %v377 = vunpack.c.l.b16 %v341
      %v378 = vunpack.c.l.b16 %v342
      %v379 = vpack.c.b16 %v364, %v363
      %v380 = vpack.c.b16 %v366, %v365
      %v381 = vpack.c.b16 %v368, %v367
      %v382 = vpack.c.b16 %v370, %v369
      %v383 = vpack.c.b16 %v372, %v371
      %v384 = vpack.c.b16 %v374, %v373
      %v385 = vpack.c.b16 %v376, %v375
      %v386 = vpack.c.b16 %v378, %v377
      %395 = vmatpush.bf16.msra.mxu0 %v386
      %396 = vmatpush.bf16.msra.mxu0 %v385
      %397 = vmatpush.bf16.msra.mxu0 %v384
      %398 = vmatpush.bf16.msra.mxu0 %v383
      %399 = vmatpush.bf16.msra.mxu0 %v382
      %400 = vmatpush.bf16.msra.mxu0 %v381
      %401 = vmatpush.bf16.msra.mxu0 %v380
      %402 = vmatpush.bf16.msra.mxu0 %v379
      %403 = vmatmul.bf16.gmra.mxu0 %v311
      %v404 = vpop.f32.mrf.mxu0
      %v405 = vadd.f32 %v345, %v404
      %v406 = vpop.f32.mrf.mxu0
      %v407 = vadd.f32 %v345, %v406
      %408 = vmatmul.bf16.gmra.mxu0 %v312
      %v409 = vpop.f32.mrf.mxu0
      %v410 = vadd.f32 %v345, %v409
      %v411 = vpop.f32.mrf.mxu0
      %v412 = vadd.f32 %v345, %v411
      %413 = vmatmul.bf16.gmra.mxu0 %v313
      %v414 = vpop.f32.mrf.mxu0
      %v415 = vadd.f32 %v345, %v414
      %v416 = vpop.f32.mrf.mxu0
      %v417 = vadd.f32 %v345, %v416
      %418 = vmatmul.bf16.gmra.mxu0 %v314
      %v419 = vpop.f32.mrf.mxu0
      %v420 = vadd.f32 %v345, %v419
      %v421 = vpop.f32.mrf.mxu0
      %v422 = vadd.f32 %v345, %v421
      %423 = vmatmul.bf16.gmra.mxu0 %v315
      %v424 = vpop.f32.mrf.mxu0
      %v425 = vadd.f32 %v345, %v424
      %v426 = vpop.f32.mrf.mxu0
      %v427 = vadd.f32 %v345, %v426
      %428 = vmatmul.bf16.gmra.mxu0 %v316
      %v429 = vpop.f32.mrf.mxu0
      %v430 = vadd.f32 %v345, %v429
      %v431 = vpop.f32.mrf.mxu0
      %v432 = vadd.f32 %v345, %v431
      %433 = vmatmul.bf16.gmra.mxu0 %v317
      %v434 = vpop.f32.mrf.mxu0
      %v435 = vadd.f32 %v345, %v434
      %v436 = vpop.f32.mrf.mxu0
      %v437 = vadd.f32 %v345, %v436
      %438 = vmatmul.bf16.gmra.mxu0 %v318
      %v439 = vpop.f32.mrf.mxu0
      %v440 = vadd.f32 %v345, %v439
      %v441 = vpop.f32.mrf.mxu0
      %v442 = vadd.f32 %v345, %v441
      %443 = vmatmul.bf16.gmra.mxu0 %v319
      %v444 = vpop.f32.mrf.mxu0
      %v445 = vadd.f32 %v345, %v444
      %v446 = vpop.f32.mrf.mxu0
      %v447 = vadd.f32 %v345, %v446
      %448 = vmatmul.bf16.gmra.mxu0 %v320
      %v449 = vpop.f32.mrf.mxu0
      %v450 = vadd.f32 %v345, %v449
      %v451 = vpop.f32.mrf.mxu0
      %v452 = vadd.f32 %v345, %v451
      %453 = vmatmul.bf16.gmra.mxu0 %v321
      %v454 = vpop.f32.mrf.mxu0
      %v455 = vadd.f32 %v345, %v454
      %v456 = vpop.f32.mrf.mxu0
      %v457 = vadd.f32 %v345, %v456
      %458 = vmatmul.bf16.gmra.mxu0 %v322
      %v459 = vpop.f32.mrf.mxu0
      %v460 = vadd.f32 %v345, %v459
      %v461 = vpop.f32.mrf.mxu0
      %v462 = vadd.f32 %v345, %v461
      %463 = vmatmul.bf16.gmra.mxu0 %v323
      %v464 = vpop.f32.mrf.mxu0
      %v465 = vadd.f32 %v345, %v464
      %v466 = vpop.f32.mrf.mxu0
      %v467 = vadd.f32 %v345, %v466
      %468 = vmatmul.bf16.gmra.mxu0 %v324
      %v469 = vpop.f32.mrf.mxu0
      %v470 = vadd.f32 %v345, %v469
      %v471 = vpop.f32.mrf.mxu0
      %v472 = vadd.f32 %v345, %v471
      %473 = vmatmul.bf16.gmra.mxu0 %v325
      %v474 = vpop.f32.mrf.mxu0
      %v475 = vadd.f32 %v345, %v474
      %v476 = vpop.f32.mrf.mxu0
      %v477 = vadd.f32 %v345, %v476
      %478 = vmatmul.bf16.gmra.mxu0 %v326
      %v479 = vpop.f32.mrf.mxu0
      %v480 = vadd.f32 %v345, %v479
      %v481 = vpop.f32.mrf.mxu0
      %v482 = vadd.f32 %v345, %v481
      %483 = vdwg.mxu0
      %v484 = vmax.f32 %v405, 0.0
      %v485 = vmax.f32 %v407, 0.0
      %v486 = vmax.f32 %v410, 0.0
      %v487 = vmax.f32 %v412, 0.0
      %v488 = vmax.f32 %v415, 0.0
      %v489 = vmax.f32 %v417, 0.0
      %v490 = vmax.f32 %v420, 0.0
      %v491 = vmax.f32 %v422, 0.0
      %v492 = vmax.f32 %v425, 0.0
      %v493 = vmax.f32 %v427, 0.0
      %v494 = vmax.f32 %v430, 0.0
      %v495 = vmax.f32 %v432, 0.0
      %v496 = vmax.f32 %v435, 0.0
      %v497 = vmax.f32 %v437, 0.0
      %v498 = vmax.f32 %v440, 0.0
      %v499 = vmax.f32 %v442, 0.0
      %v500 = vmax.f32 %v445, 0.0
      %v501 = vmax.f32 %v447, 0.0
      %v502 = vmax.f32 %v450, 0.0
      %v503 = vmax.f32 %v452, 0.0
      %v504 = vmax.f32 %v455, 0.0
      %v505 = vmax.f32 %v457, 0.0
      %v506 = vmax.f32 %v460, 0.0
      %v507 = vmax.f32 %v462, 0.0
      %v508 = vmax.f32 %v465, 0.0
      %v509 = vmax.f32 %v467, 0.0
      %v510 = vmax.f32 %v470, 0.0
      %v511 = vmax.f32 %v472, 0.0
      %v512 = vmax.f32 %v475, 0.0
      %v513 = vmax.f32 %v477, 0.0
      %v514 = vmax.f32 %v480, 0.0
      %v515 = vmax.f32 %v482, 0.0
      %516 = vst [vmem:[#allocation2] sm:$0xff] 0.0
      %517 = vst [vmem:[#allocation2 + $0x8] sm:$0xff] 0.0
      %518 = vst [vmem:[#allocation2 + $0x10] sm:$0xff] 0.0
      %519 = vst [vmem:[#allocation2 + $0x18] sm:$0x1] 0.0
      %s520 = scalar_lea.vmem [#allocation2], 544
      %521 = vst [vmem:[%s520] sm:$0xff] 0.0
      %522 = vst [vmem:[%s520 + $0x8] sm:$0xff] 0.0
      %523 = vst [vmem:[%s520 + $0x10] sm:$0xff] 0.0
      %524 = vst [vmem:[%s520 + $0x18] sm:$0x1] 0.0
      %s525 = scalar_lea.vmem [#allocation2], 32
      %526 = vst [vmem:[%s525 + $0x7] sm:$0x1] 0.0
      %527 = vst [vmem:[%s525 + $0x27] sm:$0x1] 0.0
      %528 = vst [vmem:[%s525 + $0x47] sm:$0x1] 0.0
      %529 = vst [vmem:[%s525 + $0x67] sm:$0x1] 0.0
      %530 = vst [vmem:[%s525 + $0x87] sm:$0x1] 0.0
      %531 = vst [vmem:[%s525 + $0xa7] sm:$0x1] 0.0
      %532 = vst [vmem:[%s525 + $0xc7] sm:$0x1] 0.0
      %533 = vst [vmem:[%s525 + $0xe7] sm:$0x1] 0.0
      %534 = vst [vmem:[%s525 + $0x107] sm:$0x1] 0.0
      %535 = vst [vmem:[%s525 + $0x127] sm:$0x1] 0.0
      %536 = vst [vmem:[%s525 + $0x147] sm:$0x1] 0.0
      %537 = vst [vmem:[%s525 + $0x167] sm:$0x1] 0.0
      %538 = vst [vmem:[%s525 + $0x187] sm:$0x1] 0.0
      %539 = vst [vmem:[%s525 + $0x1a7] sm:$0x1] 0.0
      %540 = vst [vmem:[%s525 + $0x1c7] sm:$0x1] 0.0
      %541 = vst [vmem:[%s525 + $0x1e7] sm:$0x1] 0.0
      %542 = vst [vmem:[%s525 + $0x18] sm:$0x1] 0.0
      %543 = vst [vmem:[%s525 + $0x38] sm:$0x1] 0.0
      %544 = vst [vmem:[%s525 + $0x58] sm:$0x1] 0.0
      %545 = vst [vmem:[%s525 + $0x78] sm:$0x1] 0.0
      %546 = vst [vmem:[%s525 + $0x98] sm:$0x1] 0.0
      %547 = vst [vmem:[%s525 + $0xb8] sm:$0x1] 0.0
      %548 = vst [vmem:[%s525 + $0xd8] sm:$0x1] 0.0
      %549 = vst [vmem:[%s525 + $0xf8] sm:$0x1] 0.0
      %550 = vst [vmem:[%s525 + $0x118] sm:$0x1] 0.0
      %551 = vst [vmem:[%s525 + $0x138] sm:$0x1] 0.0
      %552 = vst [vmem:[%s525 + $0x158] sm:$0x1] 0.0
      %553 = vst [vmem:[%s525 + $0x178] sm:$0x1] 0.0
      %554 = vst [vmem:[%s525 + $0x198] sm:$0x1] 0.0
      %555 = vst [vmem:[%s525 + $0x1b8] sm:$0x1] 0.0
      %556 = vst [vmem:[%s525 + $0x1d8] sm:$0x1] 0.0
      %557 = vst [vmem:[%s525 + $0x1f8] sm:$0x1] 0.0
      %558 = vst [vmem:[%s525 + $0x8] sm:$0xff] %v484
      %559 = vst [vmem:[%s525 + $0x10] sm:$0xff] %v485
      %560 = vst [vmem:[%s525 + $0x28] sm:$0xff] %v486
      %561 = vst [vmem:[%s525 + $0x30] sm:$0xff] %v487
      %562 = vst [vmem:[%s525 + $0x48] sm:$0xff] %v488
      %563 = vst [vmem:[%s525 + $0x50] sm:$0xff] %v489
      %564 = vst [vmem:[%s525 + $0x68] sm:$0xff] %v490
      %565 = vst [vmem:[%s525 + $0x70] sm:$0xff] %v491
      %566 = vst [vmem:[%s525 + $0x88] sm:$0xff] %v492
      %567 = vst [vmem:[%s525 + $0x90] sm:$0xff] %v493
      %568 = vst [vmem:[%s525 + $0xa8] sm:$0xff] %v494
      %569 = vst [vmem:[%s525 + $0xb0] sm:$0xff] %v495
      %570 = vst [vmem:[%s525 + $0xc8] sm:$0xff] %v496
      %571 = vst [vmem:[%s525 + $0xd0] sm:$0xff] %v497
      %572 = vst [vmem:[%s525 + $0xe8] sm:$0xff] %v498
      %573 = vst [vmem:[%s525 + $0xf0] sm:$0xff] %v499
      %574 = vst [vmem:[%s525 + $0x108] sm:$0xff] %v500
      %575 = vst [vmem:[%s525 + $0x110] sm:$0xff] %v501
      %576 = vst [vmem:[%s525 + $0x128] sm:$0xff] %v502
      %577 = vst [vmem:[%s525 + $0x130] sm:$0xff] %v503
      %578 = vst [vmem:[%s525 + $0x148] sm:$0xff] %v504
      %579 = vst [vmem:[%s525 + $0x150] sm:$0xff] %v505
      %580 = vst [vmem:[%s525 + $0x168] sm:$0xff] %v506
      %581 = vst [vmem:[%s525 + $0x170] sm:$0xff] %v507
      %582 = vst [vmem:[%s525 + $0x188] sm:$0xff] %v508
      %583 = vst [vmem:[%s525 + $0x190] sm:$0xff] %v509
      %584 = vst [vmem:[%s525 + $0x1a8] sm:$0xff] %v510
      %585 = vst [vmem:[%s525 + $0x1b0] sm:$0xff] %v511
      %586 = vst [vmem:[%s525 + $0x1c8] sm:$0xff] %v512
      %587 = vst [vmem:[%s525 + $0x1d0] sm:$0xff] %v513
      %588 = vst [vmem:[%s525 + $0x1e8] sm:$0xff] %v514
      %589 = vst [vmem:[%s525 + $0x1f0] sm:$0xff] %v515
      %v590 = vld [vmem:[#allocation2 + $0x7] sm:$0xff]
      %v591 = vld [vmem:[#allocation2 + $0xf] sm:$0xff]
      %v592 = vld [vmem:[#allocation2 + $0x27] sm:$0xff]
      %v593 = vld [vmem:[#allocation2 + $0x2f] sm:$0xff]
      %v594 = vld [vmem:[#allocation2 + $0x47] sm:$0xff]
      %v595 = vld [vmem:[#allocation2 + $0x4f] sm:$0xff]
      %v596 = vld [vmem:[#allocation2 + $0x67] sm:$0xff]
      %v597 = vld [vmem:[#allocation2 + $0x6f] sm:$0xff]
      %v598 = vld [vmem:[#allocation2 + $0x87] sm:$0xff]
      %v599 = vld [vmem:[#allocation2 + $0x8f] sm:$0xff]
      %v600 = vld [vmem:[#allocation2 + $0xa7] sm:$0xff]
      %v601 = vld [vmem:[#allocation2 + $0xaf] sm:$0xff]
      %v602 = vld [vmem:[#allocation2 + $0xc7] sm:$0xff]
      %v603 = vld [vmem:[#allocation2 + $0xcf] sm:$0xff]
      %v604 = vld [vmem:[#allocation2 + $0xe7] sm:$0xff]
      %v605 = vld [vmem:[#allocation2 + $0xef] sm:$0xff]
      %v606 = vld [vmem:[#allocation2 + $0x107] sm:$0xff]
      %v607 = vld [vmem:[#allocation2 + $0x10f] sm:$0xff]
      %v608 = vld [vmem:[#allocation2 + $0x127] sm:$0xff]
      %v609 = vld [vmem:[#allocation2 + $0x12f] sm:$0xff]
      %v610 = vld [vmem:[#allocation2 + $0x147] sm:$0xff]
      %v611 = vld [vmem:[#allocation2 + $0x14f] sm:$0xff]
      %v612 = vld [vmem:[#allocation2 + $0x167] sm:$0xff]
      %v613 = vld [vmem:[#allocation2 + $0x16f] sm:$0xff]
      %v614 = vld [vmem:[#allocation2 + $0x187] sm:$0xff]
      %v615 = vld [vmem:[#allocation2 + $0x18f] sm:$0xff]
      %v616 = vld [vmem:[#allocation2 + $0x1a7] sm:$0xff]
      %v617 = vld [vmem:[#allocation2 + $0x1af] sm:$0xff]
      %v618 = vld [vmem:[#allocation2 + $0x1c7] sm:$0xff]
      %v619 = vld [vmem:[#allocation2 + $0x1cf] sm:$0xff]
      %v620 = vld [vmem:[#allocation2 + $0x1e7] sm:$0xff]
      %v621 = vld [vmem:[#allocation2 + $0x1ef] sm:$0xff]
      %v622 = vpack.c.bf16 %v591, %v590
      %v623 = vpack.c.bf16 %v593, %v592
      %v624 = vpack.c.bf16 %v595, %v594
      %v625 = vpack.c.bf16 %v597, %v596
      %v626 = vpack.c.bf16 %v599, %v598
      %v627 = vpack.c.bf16 %v601, %v600
      %v628 = vpack.c.bf16 %v603, %v602
      %v629 = vpack.c.bf16 %v605, %v604
      %v630 = vpack.c.bf16 %v607, %v606
      %v631 = vpack.c.bf16 %v609, %v608
      %v632 = vpack.c.bf16 %v611, %v610
      %v633 = vpack.c.bf16 %v613, %v612
      %v634 = vpack.c.bf16 %v615, %v614
      %v635 = vpack.c.bf16 %v617, %v616
      %v636 = vpack.c.bf16 %v619, %v618
      %v637 = vpack.c.bf16 %v621, %v620
      %v638 = vld [vmem:[%s3] sm:$0xf]
      %v639 = vld [vmem:[%s3 + $0x4] sm:$0xf]
      %v640 = vld [vmem:[%s3 + $0x8] sm:$0xf]
      %v641 = vld [vmem:[%s3 + $0xc] sm:$0xf]
      %v642 = vld [vmem:[%s3 + $0x10] sm:$0xf]
      %v643 = vld [vmem:[%s3 + $0x14] sm:$0xf]
      %v644 = vld [vmem:[%s3 + $0x18] sm:$0xf]
      %v645 = vld [vmem:[%s3 + $0x1c] sm:$0xf]
      %v646 = vld [vmem:[%s3 + $0x20] sm:$0xf]
      %v647 = vld [vmem:[%s3 + $0x24] sm:$0xf]
      %v648 = vld [vmem:[%s3 + $0x28] sm:$0xf]
      %v649 = vld [vmem:[%s3 + $0x2c] sm:$0xf]
      %v650 = vld [vmem:[%s3 + $0x30] sm:$0xf]
      %v651 = vld [vmem:[%s3 + $0x34] sm:$0xf]
      %v652 = vld [vmem:[%s3 + $0x38] sm:$0xf]
      %v653 = vld [vmem:[%s3 + $0x3c] sm:$0xf]
      %v654 = vld [vmem:[#allocation2 + $0x8] sm:$0xff]
      %v655 = vld [vmem:[#allocation2 + $0x10] sm:$0xff]
      %v656 = vld [vmem:[#allocation2 + $0x28] sm:$0xff]
      %v657 = vld [vmem:[#allocation2 + $0x30] sm:$0xff]
      %v658 = vld [vmem:[#allocation2 + $0x48] sm:$0xff]
      %v659 = vld [vmem:[#allocation2 + $0x50] sm:$0xff]
      %v660 = vld [vmem:[#allocation2 + $0x68] sm:$0xff]
      %v661 = vld [vmem:[#allocation2 + $0x70] sm:$0xff]
      %v662 = vld [vmem:[#allocation2 + $0x88] sm:$0xff]
      %v663 = vld [vmem:[#allocation2 + $0x90] sm:$0xff]
      %v664 = vld [vmem:[#allocation2 + $0xa8] sm:$0xff]
      %v665 = vld [vmem:[#allocation2 + $0xb0] sm:$0xff]
      %v666 = vld [vmem:[#allocation2 + $0xc8] sm:$0xff]
      %v667 = vld [vmem:[#allocation2 + $0xd0] sm:$0xff]
      %v668 = vld [vmem:[#allocation2 + $0xe8] sm:$0xff]
      %v669 = vld [vmem:[#allocation2 + $0xf0] sm:$0xff]
      %v670 = vld [vmem:[#allocation2 + $0x108] sm:$0xff]
      %v671 = vld [vmem:[#allocation2 + $0x110] sm:$0xff]
      %v672 = vld [vmem:[#allocation2 + $0x128] sm:$0xff]
      %v673 = vld [vmem:[#allocation2 + $0x130] sm:$0xff]
      %v674 = vld [vmem:[#allocation2 + $0x148] sm:$0xff]
      %v675 = vld [vmem:[#allocation2 + $0x150] sm:$0xff]
      %v676 = vld [vmem:[#allocation2 + $0x168] sm:$0xff]
      %v677 = vld [vmem:[#allocation2 + $0x170] sm:$0xff]
      %v678 = vld [vmem:[#allocation2 + $0x188] sm:$0xff]
      %v679 = vld [vmem:[#allocation2 + $0x190] sm:$0xff]
      %v680 = vld [vmem:[#allocation2 + $0x1a8] sm:$0xff]
      %v681 = vld [vmem:[#allocation2 + $0x1b0] sm:$0xff]
      %v682 = vld [vmem:[#allocation2 + $0x1c8] sm:$0xff]
      %v683 = vld [vmem:[#allocation2 + $0x1d0] sm:$0xff]
      %v684 = vld [vmem:[#allocation2 + $0x1e8] sm:$0xff]
      %v685 = vld [vmem:[#allocation2 + $0x1f0] sm:$0xff]
      %v686 = vpack.c.bf16 %v655, %v654
      %v687 = vpack.c.bf16 %v657, %v656
      %v688 = vpack.c.bf16 %v659, %v658
      %v689 = vpack.c.bf16 %v661, %v660
      %v690 = vpack.c.bf16 %v663, %v662
      %v691 = vpack.c.bf16 %v665, %v664
      %v692 = vpack.c.bf16 %v667, %v666
      %v693 = vpack.c.bf16 %v669, %v668
      %v694 = vpack.c.bf16 %v671, %v670
      %v695 = vpack.c.bf16 %v673, %v672
      %v696 = vpack.c.bf16 %v675, %v674
      %v697 = vpack.c.bf16 %v677, %v676
      %v698 = vpack.c.bf16 %v679, %v678
      %v699 = vpack.c.bf16 %v681, %v680
      %v700 = vpack.c.bf16 %v683, %v682
      %v701 = vpack.c.bf16 %v685, %v684
      %s702 = scalar_lea.vmem %s3, 64
      %v703 = vld [vmem:[%s702] sm:$0xf]
      %v704 = vld [vmem:[%s702 + $0x4] sm:$0xf]
      %v705 = vld [vmem:[%s702 + $0x8] sm:$0xf]
      %v706 = vld [vmem:[%s702 + $0xc] sm:$0xf]
      %v707 = vld [vmem:[%s702 + $0x10] sm:$0xf]
      %v708 = vld [vmem:[%s702 + $0x14] sm:$0xf]
      %v709 = vld [vmem:[%s702 + $0x18] sm:$0xf]
      %v710 = vld [vmem:[%s702 + $0x1c] sm:$0xf]
      %v711 = vld [vmem:[%s702 + $0x20] sm:$0xf]
      %v712 = vld [vmem:[%s702 + $0x24] sm:$0xf]
      %v713 = vld [vmem:[%s702 + $0x28] sm:$0xf]
      %v714 = vld [vmem:[%s702 + $0x2c] sm:$0xf]
      %v715 = vld [vmem:[%s702 + $0x30] sm:$0xf]
      %v716 = vld [vmem:[%s702 + $0x34] sm:$0xf]
      %v717 = vld [vmem:[%s702 + $0x38] sm:$0xf]
      %v718 = vld [vmem:[%s702 + $0x3c] sm:$0xf]
      %v735 = vunpack.c.l.b16 %v703
      %v736 = vunpack.c.l.b16 %v704
      %v737 = vunpack.c.l.b16 %v705
      %v738 = vunpack.c.l.b16 %v706
      %v739 = vunpack.c.l.b16 %v707
      %v740 = vunpack.c.l.b16 %v708
      %v741 = vunpack.c.l.b16 %v709
      %v742 = vunpack.c.l.b16 %v710
      %v743 = vunpack.c.l.b16 %v711
      %v744 = vunpack.c.l.b16 %v712
      %v745 = vunpack.c.l.b16 %v713
      %v746 = vunpack.c.l.b16 %v714
      %v747 = vunpack.c.l.b16 %v715
      %v748 = vunpack.c.l.b16 %v716
      %v749 = vunpack.c.l.b16 %v717
      %v750 = vunpack.c.l.b16 %v718
      %v751 = vpack.c.b16 %v736, %v735
      %v752 = vpack.c.b16 %v738, %v737
      %v753 = vpack.c.b16 %v740, %v739
      %v754 = vpack.c.b16 %v742, %v741
      %v755 = vpack.c.b16 %v744, %v743
      %v756 = vpack.c.b16 %v746, %v745
      %v757 = vpack.c.b16 %v748, %v747
      %v758 = vpack.c.b16 %v750, %v749
      %767 = vmatpush.bf16.msra.mxu0 %v758
      %768 = vmatpush.bf16.msra.mxu0 %v757
      %769 = vmatpush.bf16.msra.mxu0 %v756
      %770 = vmatpush.bf16.msra.mxu0 %v755
      %771 = vmatpush.bf16.msra.mxu0 %v754
      %772 = vmatpush.bf16.msra.mxu0 %v753
      %773 = vmatpush.bf16.msra.mxu0 %v752
      %774 = vmatpush.bf16.msra.mxu0 %v751
      %775 = vmatmul.bf16.gmra.mxu0 %v686
      %v776 = vpop.f32.mrf.mxu0
      %v777 = vadd.f32 0.0, %v776
      %v778 = vpop.f32.mrf.mxu0
      %v779 = vadd.f32 0.0, %v778
      %780 = vmatmul.bf16.gmra.mxu0 %v687
      %v781 = vpop.f32.mrf.mxu0
      %v782 = vadd.f32 0.0, %v781
      %v783 = vpop.f32.mrf.mxu0
      %v784 = vadd.f32 0.0, %v783
      %785 = vmatmul.bf16.gmra.mxu0 %v688
      %v786 = vpop.f32.mrf.mxu0
      %v787 = vadd.f32 0.0, %v786
      %v788 = vpop.f32.mrf.mxu0
      %v789 = vadd.f32 0.0, %v788
      %790 = vmatmul.bf16.gmra.mxu0 %v689
      %v791 = vpop.f32.mrf.mxu0
      %v792 = vadd.f32 0.0, %v791
      %v793 = vpop.f32.mrf.mxu0
      %v794 = vadd.f32 0.0, %v793
      %795 = vmatmul.bf16.gmra.mxu0 %v690
      %v796 = vpop.f32.mrf.mxu0
      %v797 = vadd.f32 0.0, %v796
      %v798 = vpop.f32.mrf.mxu0
      %v799 = vadd.f32 0.0, %v798
      %800 = vmatmul.bf16.gmra.mxu0 %v691
      %v801 = vpop.f32.mrf.mxu0
      %v802 = vadd.f32 0.0, %v801
      %v803 = vpop.f32.mrf.mxu0
      %v804 = vadd.f32 0.0, %v803
      %805 = vmatmul.bf16.gmra.mxu0 %v692
      %v806 = vpop.f32.mrf.mxu0
      %v807 = vadd.f32 0.0, %v806
      %v808 = vpop.f32.mrf.mxu0
      %v809 = vadd.f32 0.0, %v808
      %810 = vmatmul.bf16.gmra.mxu0 %v693
      %v811 = vpop.f32.mrf.mxu0
      %v812 = vadd.f32 0.0, %v811
      %v813 = vpop.f32.mrf.mxu0
      %v814 = vadd.f32 0.0, %v813
      %815 = vmatmul.bf16.gmra.mxu0 %v694
      %v816 = vpop.f32.mrf.mxu0
      %v817 = vadd.f32 0.0, %v816
      %v818 = vpop.f32.mrf.mxu0
      %v819 = vadd.f32 0.0, %v818
      %820 = vmatmul.bf16.gmra.mxu0 %v695
      %v821 = vpop.f32.mrf.mxu0
      %v822 = vadd.f32 0.0, %v821
      %v823 = vpop.f32.mrf.mxu0
      %v824 = vadd.f32 0.0, %v823
      %825 = vmatmul.bf16.gmra.mxu0 %v696
      %v826 = vpop.f32.mrf.mxu0
      %v827 = vadd.f32 0.0, %v826
      %v828 = vpop.f32.mrf.mxu0
      %v829 = vadd.f32 0.0, %v828
      %830 = vmatmul.bf16.gmra.mxu0 %v697
      %v831 = vpop.f32.mrf.mxu0
      %v832 = vadd.f32 0.0, %v831
      %v833 = vpop.f32.mrf.mxu0
      %v834 = vadd.f32 0.0, %v833
      %835 = vmatmul.bf16.gmra.mxu0 %v698
      %v836 = vpop.f32.mrf.mxu0
      %v837 = vadd.f32 0.0, %v836
      %v838 = vpop.f32.mrf.mxu0
      %v839 = vadd.f32 0.0, %v838
      %840 = vmatmul.bf16.gmra.mxu0 %v699
      %v841 = vpop.f32.mrf.mxu0
      %v842 = vadd.f32 0.0, %v841
      %v843 = vpop.f32.mrf.mxu0
      %v844 = vadd.f32 0.0, %v843
      %845 = vmatmul.bf16.gmra.mxu0 %v700
      %v846 = vpop.f32.mrf.mxu0
      %v847 = vadd.f32 0.0, %v846
      %v848 = vpop.f32.mrf.mxu0
      %v849 = vadd.f32 0.0, %v848
      %850 = vmatmul.bf16.gmra.mxu0 %v701
      %v851 = vpop.f32.mrf.mxu0
      %v852 = vadd.f32 0.0, %v851
      %v853 = vpop.f32.mrf.mxu0
      %v854 = vadd.f32 0.0, %v853
      %855 = vdwg.mxu0
      %v872 = vunpack.c.l.b16 %v638
      %v873 = vunpack.c.l.b16 %v639
      %v874 = vunpack.c.l.b16 %v640
      %v875 = vunpack.c.l.b16 %v641
      %v876 = vunpack.c.l.b16 %v642
      %v877 = vunpack.c.l.b16 %v643
      %v878 = vunpack.c.l.b16 %v644
      %v879 = vunpack.c.l.b16 %v645
      %v880 = vunpack.c.l.b16 %v646
      %v881 = vunpack.c.l.b16 %v647
      %v882 = vunpack.c.l.b16 %v648
      %v883 = vunpack.c.l.b16 %v649
      %v884 = vunpack.c.l.b16 %v650
      %v885 = vunpack.c.l.b16 %v651
      %v886 = vunpack.c.l.b16 %v652
      %v887 = vunpack.c.l.b16 %v653
      %v888 = vpack.c.b16 %v873, %v872
      %v889 = vpack.c.b16 %v875, %v874
      %v890 = vpack.c.b16 %v877, %v876
      %v891 = vpack.c.b16 %v879, %v878
      %v892 = vpack.c.b16 %v881, %v880
      %v893 = vpack.c.b16 %v883, %v882
      %v894 = vpack.c.b16 %v885, %v884
      %v895 = vpack.c.b16 %v887, %v886
      %904 = vmatpush.bf16.msra.mxu0 %v895
      %905 = vmatpush.bf16.msra.mxu0 %v894
      %906 = vmatpush.bf16.msra.mxu0 %v893
      %907 = vmatpush.bf16.msra.mxu0 %v892
      %908 = vmatpush.bf16.msra.mxu0 %v891
      %909 = vmatpush.bf16.msra.mxu0 %v890
      %910 = vmatpush.bf16.msra.mxu0 %v889
      %911 = vmatpush.bf16.msra.mxu0 %v888
      %912 = vmatmul.bf16.gmra.mxu0 %v622
      %v913 = vpop.f32.mrf.mxu0
      %v914 = vadd.f32 %v777, %v913
      %v915 = vpop.f32.mrf.mxu0
      %v916 = vadd.f32 %v779, %v915
      %917 = vmatmul.bf16.gmra.mxu0 %v623
      %v918 = vpop.f32.mrf.mxu0
      %v919 = vadd.f32 %v782, %v918
      %v920 = vpop.f32.mrf.mxu0
      %v921 = vadd.f32 %v784, %v920
      %922 = vmatmul.bf16.gmra.mxu0 %v624
      %v923 = vpop.f32.mrf.mxu0
      %v924 = vadd.f32 %v787, %v923
      %v925 = vpop.f32.mrf.mxu0
      %v926 = vadd.f32 %v789, %v925
      %927 = vmatmul.bf16.gmra.mxu0 %v625
      %v928 = vpop.f32.mrf.mxu0
      %v929 = vadd.f32 %v792, %v928
      %v930 = vpop.f32.mrf.mxu0
      %v931 = vadd.f32 %v794, %v930
      %932 = vmatmul.bf16.gmra.mxu0 %v626
      %v933 = vpop.f32.mrf.mxu0
      %v934 = vadd.f32 %v797, %v933
      %v935 = vpop.f32.mrf.mxu0
      %v936 = vadd.f32 %v799, %v935
      %937 = vmatmul.bf16.gmra.mxu0 %v627
      %v938 = vpop.f32.mrf.mxu0
      %v939 = vadd.f32 %v802, %v938
      %v940 = vpop.f32.mrf.mxu0
      %v941 = vadd.f32 %v804, %v940
      %942 = vmatmul.bf16.gmra.mxu0 %v628
      %v943 = vpop.f32.mrf.mxu0
      %v944 = vadd.f32 %v807, %v943
      %v945 = vpop.f32.mrf.mxu0
      %v946 = vadd.f32 %v809, %v945
      %947 = vmatmul.bf16.gmra.mxu0 %v629
      %v948 = vpop.f32.mrf.mxu0
      %v949 = vadd.f32 %v812, %v948
      %v950 = vpop.f32.mrf.mxu0
      %v951 = vadd.f32 %v814, %v950
      %952 = vmatmul.bf16.gmra.mxu0 %v630
      %v953 = vpop.f32.mrf.mxu0
      %v954 = vadd.f32 %v817, %v953
      %v955 = vpop.f32.mrf.mxu0
      %v956 = vadd.f32 %v819, %v955
      %957 = vmatmul.bf16.gmra.mxu0 %v631
      %v958 = vpop.f32.mrf.mxu0
      %v959 = vadd.f32 %v822, %v958
      %v960 = vpop.f32.mrf.mxu0
      %v961 = vadd.f32 %v824, %v960
      %962 = vmatmul.bf16.gmra.mxu0 %v632
      %v963 = vpop.f32.mrf.mxu0
      %v964 = vadd.f32 %v827, %v963
      %v965 = vpop.f32.mrf.mxu0
      %v966 = vadd.f32 %v829, %v965
      %967 = vmatmul.bf16.gmra.mxu0 %v633
      %v968 = vpop.f32.mrf.mxu0
      %v969 = vadd.f32 %v832, %v968
      %v970 = vpop.f32.mrf.mxu0
      %v971 = vadd.f32 %v834, %v970
      %972 = vmatmul.bf16.gmra.mxu0 %v634
      %v973 = vpop.f32.mrf.mxu0
      %v974 = vadd.f32 %v837, %v973
      %v975 = vpop.f32.mrf.mxu0
      %v976 = vadd.f32 %v839, %v975
      %977 = vmatmul.bf16.gmra.mxu0 %v635
      %v978 = vpop.f32.mrf.mxu0
      %v979 = vadd.f32 %v842, %v978
      %v980 = vpop.f32.mrf.mxu0
      %v981 = vadd.f32 %v844, %v980
      %982 = vmatmul.bf16.gmra.mxu0 %v636
      %v983 = vpop.f32.mrf.mxu0
      %v984 = vadd.f32 %v847, %v983
      %v985 = vpop.f32.mrf.mxu0
      %v986 = vadd.f32 %v849, %v985
      %987 = vmatmul.bf16.gmra.mxu0 %v637
      %v988 = vpop.f32.mrf.mxu0
      %v989 = vadd.f32 %v852, %v988
      %v990 = vpop.f32.mrf.mxu0
      %v991 = vadd.f32 %v854, %v990
      %992 = vdwg.mxu0
      %v993 = vld [vmem:[#allocation2 + $0x9] sm:$0xff]
      %v994 = vld [vmem:[#allocation2 + $0x11] sm:$0xff]
      %v995 = vld [vmem:[#allocation2 + $0x29] sm:$0xff]
      %v996 = vld [vmem:[#allocation2 + $0x31] sm:$0xff]
      %v997 = vld [vmem:[#allocation2 + $0x49] sm:$0xff]
      %v998 = vld [vmem:[#allocation2 + $0x51] sm:$0xff]
      %v999 = vld [vmem:[#allocation2 + $0x69] sm:$0xff]
      %v1000 = vld [vmem:[#allocation2 + $0x71] sm:$0xff]
      %v1001 = vld [vmem:[#allocation2 + $0x89] sm:$0xff]
      %v1002 = vld [vmem:[#allocation2 + $0x91] sm:$0xff]
      %v1003 = vld [vmem:[#allocation2 + $0xa9] sm:$0xff]
      %v1004 = vld [vmem:[#allocation2 + $0xb1] sm:$0xff]
      %v1005 = vld [vmem:[#allocation2 + $0xc9] sm:$0xff]
      %v1006 = vld [vmem:[#allocation2 + $0xd1] sm:$0xff]
      %v1007 = vld [vmem:[#allocation2 + $0xe9] sm:$0xff]
      %v1008 = vld [vmem:[#allocation2 + $0xf1] sm:$0xff]
      %v1009 = vld [vmem:[#allocation2 + $0x109] sm:$0xff]
      %v1010 = vld [vmem:[#allocation2 + $0x111] sm:$0xff]
      %v1011 = vld [vmem:[#allocation2 + $0x129] sm:$0xff]
      %v1012 = vld [vmem:[#allocation2 + $0x131] sm:$0xff]
      %v1013 = vld [vmem:[#allocation2 + $0x149] sm:$0xff]
      %v1014 = vld [vmem:[#allocation2 + $0x151] sm:$0xff]
      %v1015 = vld [vmem:[#allocation2 + $0x169] sm:$0xff]
      %v1016 = vld [vmem:[#allocation2 + $0x171] sm:$0xff]
      %v1017 = vld [vmem:[#allocation2 + $0x189] sm:$0xff]
      %v1018 = vld [vmem:[#allocation2 + $0x191] sm:$0xff]
      %v1019 = vld [vmem:[#allocation2 + $0x1a9] sm:$0xff]
      %v1020 = vld [vmem:[#allocation2 + $0x1b1] sm:$0xff]
      %v1021 = vld [vmem:[#allocation2 + $0x1c9] sm:$0xff]
      %v1022 = vld [vmem:[#allocation2 + $0x1d1] sm:$0xff]
      %v1023 = vld [vmem:[#allocation2 + $0x1e9] sm:$0xff]
      %v1024 = vld [vmem:[#allocation2 + $0x1f1] sm:$0xff]
      %v1025 = vpack.c.bf16 %v994, %v993
      %v1026 = vpack.c.bf16 %v996, %v995
      %v1027 = vpack.c.bf16 %v998, %v997
      %v1028 = vpack.c.bf16 %v1000, %v999
      %v1029 = vpack.c.bf16 %v1002, %v1001
      %v1030 = vpack.c.bf16 %v1004, %v1003
      %v1031 = vpack.c.bf16 %v1006, %v1005
      %v1032 = vpack.c.bf16 %v1008, %v1007
      %v1033 = vpack.c.bf16 %v1010, %v1009
      %v1034 = vpack.c.bf16 %v1012, %v1011
      %v1035 = vpack.c.bf16 %v1014, %v1013
      %v1036 = vpack.c.bf16 %v1016, %v1015
      %v1037 = vpack.c.bf16 %v1018, %v1017
      %v1038 = vpack.c.bf16 %v1020, %v1019
      %v1039 = vpack.c.bf16 %v1022, %v1021
      %v1040 = vpack.c.bf16 %v1024, %v1023
      %s1041 = scalar_lea.vmem %s3, 128
      %v1042 = vld [vmem:[%s1041] sm:$0xf]
      %v1043 = vld [vmem:[%s1041 + $0x4] sm:$0xf]
      %v1044 = vld [vmem:[%s1041 + $0x8] sm:$0xf]
      %v1045 = vld [vmem:[%s1041 + $0xc] sm:$0xf]
      %v1046 = vld [vmem:[%s1041 + $0x10] sm:$0xf]
      %v1047 = vld [vmem:[%s1041 + $0x14] sm:$0xf]
      %v1048 = vld [vmem:[%s1041 + $0x18] sm:$0xf]
      %v1049 = vld [vmem:[%s1041 + $0x1c] sm:$0xf]
      %v1050 = vld [vmem:[%s1041 + $0x20] sm:$0xf]
      %v1051 = vld [vmem:[%s1041 + $0x24] sm:$0xf]
      %v1052 = vld [vmem:[%s1041 + $0x28] sm:$0xf]
      %v1053 = vld [vmem:[%s1041 + $0x2c] sm:$0xf]
      %v1054 = vld [vmem:[%s1041 + $0x30] sm:$0xf]
      %v1055 = vld [vmem:[%s1041 + $0x34] sm:$0xf]
      %v1056 = vld [vmem:[%s1041 + $0x38] sm:$0xf]
      %v1057 = vld [vmem:[%s1041 + $0x3c] sm:$0xf]
      %v1074 = vunpack.c.l.b16 %v1042
      %v1075 = vunpack.c.l.b16 %v1043
      %v1076 = vunpack.c.l.b16 %v1044
      %v1077 = vunpack.c.l.b16 %v1045
      %v1078 = vunpack.c.l.b16 %v1046
      %v1079 = vunpack.c.l.b16 %v1047
      %v1080 = vunpack.c.l.b16 %v1048
      %v1081 = vunpack.c.l.b16 %v1049
      %v1082 = vunpack.c.l.b16 %v1050
      %v1083 = vunpack.c.l.b16 %v1051
      %v1084 = vunpack.c.l.b16 %v1052
      %v1085 = vunpack.c.l.b16 %v1053
      %v1086 = vunpack.c.l.b16 %v1054
      %v1087 = vunpack.c.l.b16 %v1055
      %v1088 = vunpack.c.l.b16 %v1056
      %v1089 = vunpack.c.l.b16 %v1057
      %v1090 = vpack.c.b16 %v1075, %v1074
      %v1091 = vpack.c.b16 %v1077, %v1076
      %v1092 = vpack.c.b16 %v1079, %v1078
      %v1093 = vpack.c.b16 %v1081, %v1080
      %v1094 = vpack.c.b16 %v1083, %v1082
      %v1095 = vpack.c.b16 %v1085, %v1084
      %v1096 = vpack.c.b16 %v1087, %v1086
      %v1097 = vpack.c.b16 %v1089, %v1088
      %1106 = vmatpush.bf16.msra.mxu0 %v1097
      %1107 = vmatpush.bf16.msra.mxu0 %v1096
      %1108 = vmatpush.bf16.msra.mxu0 %v1095
      %1109 = vmatpush.bf16.msra.mxu0 %v1094
      %1110 = vmatpush.bf16.msra.mxu0 %v1093
      %1111 = vmatpush.bf16.msra.mxu0 %v1092
      %1112 = vmatpush.bf16.msra.mxu0 %v1091
      %1113 = vmatpush.bf16.msra.mxu0 %v1090
      %1114 = vmatmul.bf16.gmra.mxu0 %v1025
      %v1115 = vpop.f32.mrf.mxu0
      %v1116 = vadd.f32 0.0, %v1115
      %v1117 = vpop.f32.mrf.mxu0
      %v1118 = vadd.f32 0.0, %v1117
      %1119 = vmatmul.bf16.gmra.mxu0 %v1026
      %v1120 = vpop.f32.mrf.mxu0
      %v1121 = vadd.f32 0.0, %v1120
      %v1122 = vpop.f32.mrf.mxu0
      %v1123 = vadd.f32 0.0, %v1122
      %1124 = vmatmul.bf16.gmra.mxu0 %v1027
      %v1125 = vpop.f32.mrf.mxu0
      %v1126 = vadd.f32 0.0, %v1125
      %v1127 = vpop.f32.mrf.mxu0
      %v1128 = vadd.f32 0.0, %v1127
      %1129 = vmatmul.bf16.gmra.mxu0 %v1028
      %v1130 = vpop.f32.mrf.mxu0
      %v1131 = vadd.f32 0.0, %v1130
      %v1132 = vpop.f32.mrf.mxu0
      %v1133 = vadd.f32 0.0, %v1132
      %1134 = vmatmul.bf16.gmra.mxu0 %v1029
      %v1135 = vpop.f32.mrf.mxu0
      %v1136 = vadd.f32 0.0, %v1135
      %v1137 = vpop.f32.mrf.mxu0
      %v1138 = vadd.f32 0.0, %v1137
      %1139 = vmatmul.bf16.gmra.mxu0 %v1030
      %v1140 = vpop.f32.mrf.mxu0
      %v1141 = vadd.f32 0.0, %v1140
      %v1142 = vpop.f32.mrf.mxu0
      %v1143 = vadd.f32 0.0, %v1142
      %1144 = vmatmul.bf16.gmra.mxu0 %v1031
      %v1145 = vpop.f32.mrf.mxu0
      %v1146 = vadd.f32 0.0, %v1145
      %v1147 = vpop.f32.mrf.mxu0
      %v1148 = vadd.f32 0.0, %v1147
      %1149 = vmatmul.bf16.gmra.mxu0 %v1032
      %v1150 = vpop.f32.mrf.mxu0
      %v1151 = vadd.f32 0.0, %v1150
      %v1152 = vpop.f32.mrf.mxu0
      %v1153 = vadd.f32 0.0, %v1152
      %1154 = vmatmul.bf16.gmra.mxu0 %v1033
      %v1155 = vpop.f32.mrf.mxu0
      %v1156 = vadd.f32 0.0, %v1155
      %v1157 = vpop.f32.mrf.mxu0
      %v1158 = vadd.f32 0.0, %v1157
      %1159 = vmatmul.bf16.gmra.mxu0 %v1034
      %v1160 = vpop.f32.mrf.mxu0
      %v1161 = vadd.f32 0.0, %v1160
      %v1162 = vpop.f32.mrf.mxu0
      %v1163 = vadd.f32 0.0, %v1162
      %1164 = vmatmul.bf16.gmra.mxu0 %v1035
      %v1165 = vpop.f32.mrf.mxu0
      %v1166 = vadd.f32 0.0, %v1165
      %v1167 = vpop.f32.mrf.mxu0
      %v1168 = vadd.f32 0.0, %v1167
      %1169 = vmatmul.bf16.gmra.mxu0 %v1036
      %v1170 = vpop.f32.mrf.mxu0
      %v1171 = vadd.f32 0.0, %v1170
      %v1172 = vpop.f32.mrf.mxu0
      %v1173 = vadd.f32 0.0, %v1172
      %1174 = vmatmul.bf16.gmra.mxu0 %v1037
      %v1175 = vpop.f32.mrf.mxu0
      %v1176 = vadd.f32 0.0, %v1175
      %v1177 = vpop.f32.mrf.mxu0
      %v1178 = vadd.f32 0.0, %v1177
      %1179 = vmatmul.bf16.gmra.mxu0 %v1038
      %v1180 = vpop.f32.mrf.mxu0
      %v1181 = vadd.f32 0.0, %v1180
      %v1182 = vpop.f32.mrf.mxu0
      %v1183 = vadd.f32 0.0, %v1182
      %1184 = vmatmul.bf16.gmra.mxu0 %v1039
      %v1185 = vpop.f32.mrf.mxu0
      %v1186 = vadd.f32 0.0, %v1185
      %v1187 = vpop.f32.mrf.mxu0
      %v1188 = vadd.f32 0.0, %v1187
      %1189 = vmatmul.bf16.gmra.mxu0 %v1040
      %v1190 = vpop.f32.mrf.mxu0
      %v1191 = vadd.f32 0.0, %v1190
      %v1192 = vpop.f32.mrf.mxu0
      %v1193 = vadd.f32 0.0, %v1192
      %1194 = vdwg.mxu0
      %v1195 = vadd.f32 %v914, %v1116
      %v1196 = vadd.f32 %v916, %v1118
      %v1197 = vadd.f32 %v919, %v1121
      %v1198 = vadd.f32 %v921, %v1123
      %v1199 = vadd.f32 %v924, %v1126
      %v1200 = vadd.f32 %v926, %v1128
      %v1201 = vadd.f32 %v929, %v1131
      %v1202 = vadd.f32 %v931, %v1133
      %v1203 = vadd.f32 %v934, %v1136
      %v1204 = vadd.f32 %v936, %v1138
      %v1205 = vadd.f32 %v939, %v1141
      %v1206 = vadd.f32 %v941, %v1143
      %v1207 = vadd.f32 %v944, %v1146
      %v1208 = vadd.f32 %v946, %v1148
      %v1209 = vadd.f32 %v949, %v1151
      %v1210 = vadd.f32 %v951, %v1153
      %v1211 = vadd.f32 %v954, %v1156
      %v1212 = vadd.f32 %v956, %v1158
      %v1213 = vadd.f32 %v959, %v1161
      %v1214 = vadd.f32 %v961, %v1163
      %v1215 = vadd.f32 %v964, %v1166
      %v1216 = vadd.f32 %v966, %v1168
      %v1217 = vadd.f32 %v969, %v1171
      %v1218 = vadd.f32 %v971, %v1173
      %v1219 = vadd.f32 %v974, %v1176
      %v1220 = vadd.f32 %v976, %v1178
      %v1221 = vadd.f32 %v979, %v1181
      %v1222 = vadd.f32 %v981, %v1183
      %v1223 = vadd.f32 %v984, %v1186
      %v1224 = vadd.f32 %v986, %v1188
      %v1225 = vadd.f32 %v989, %v1191
      %v1226 = vadd.f32 %v991, %v1193
      %v1227 = vld [vmem:[%s525 + $0x7] sm:$0xff]
      %v1228 = vld [vmem:[%s525 + $0xf] sm:$0xff]
      %v1229 = vld [vmem:[%s525 + $0x27] sm:$0xff]
      %v1230 = vld [vmem:[%s525 + $0x2f] sm:$0xff]
      %v1231 = vld [vmem:[%s525 + $0x47] sm:$0xff]
      %v1232 = vld [vmem:[%s525 + $0x4f] sm:$0xff]
      %v1233 = vld [vmem:[%s525 + $0x67] sm:$0xff]
      %v1234 = vld [vmem:[%s525 + $0x6f] sm:$0xff]
      %v1235 = vld [vmem:[%s525 + $0x87] sm:$0xff]
      %v1236 = vld [vmem:[%s525 + $0x8f] sm:$0xff]
      %v1237 = vld [vmem:[%s525 + $0xa7] sm:$0xff]
      %v1238 = vld [vmem:[%s525 + $0xaf] sm:$0xff]
      %v1239 = vld [vmem:[%s525 + $0xc7] sm:$0xff]
      %v1240 = vld [vmem:[%s525 + $0xcf] sm:$0xff]
      %v1241 = vld [vmem:[%s525 + $0xe7] sm:$0xff]
      %v1242 = vld [vmem:[%s525 + $0xef] sm:$0xff]
      %v1243 = vld [vmem:[%s525 + $0x107] sm:$0xff]
      %v1244 = vld [vmem:[%s525 + $0x10f] sm:$0xff]
      %v1245 = vld [vmem:[%s525 + $0x127] sm:$0xff]
      %v1246 = vld [vmem:[%s525 + $0x12f] sm:$0xff]
      %v1247 = vld [vmem:[%s525 + $0x147] sm:$0xff]
      %v1248 = vld [vmem:[%s525 + $0x14f] sm:$0xff]
      %v1249 = vld [vmem:[%s525 + $0x167] sm:$0xff]
      %v1250 = vld [vmem:[%s525 + $0x16f] sm:$0xff]
      %v1251 = vld [vmem:[%s525 + $0x187] sm:$0xff]
      %v1252 = vld [vmem:[%s525 + $0x18f] sm:$0xff]
      %v1253 = vld [vmem:[%s525 + $0x1a7] sm:$0xff]
      %v1254 = vld [vmem:[%s525 + $0x1af] sm:$0xff]
      %v1255 = vld [vmem:[%s525 + $0x1c7] sm:$0xff]
      %v1256 = vld [vmem:[%s525 + $0x1cf] sm:$0xff]
      %v1257 = vld [vmem:[%s525 + $0x1e7] sm:$0xff]
      %v1258 = vld [vmem:[%s525 + $0x1ef] sm:$0xff]
      %v1259 = vpack.c.bf16 %v1228, %v1227
      %v1260 = vpack.c.bf16 %v1230, %v1229
      %v1261 = vpack.c.bf16 %v1232, %v1231
      %v1262 = vpack.c.bf16 %v1234, %v1233
      %v1263 = vpack.c.bf16 %v1236, %v1235
      %v1264 = vpack.c.bf16 %v1238, %v1237
      %v1265 = vpack.c.bf16 %v1240, %v1239
      %v1266 = vpack.c.bf16 %v1242, %v1241
      %v1267 = vpack.c.bf16 %v1244, %v1243
      %v1268 = vpack.c.bf16 %v1246, %v1245
      %v1269 = vpack.c.bf16 %v1248, %v1247
      %v1270 = vpack.c.bf16 %v1250, %v1249
      %v1271 = vpack.c.bf16 %v1252, %v1251
      %v1272 = vpack.c.bf16 %v1254, %v1253
      %v1273 = vpack.c.bf16 %v1256, %v1255
      %v1274 = vpack.c.bf16 %v1258, %v1257
      %s1275 = scalar_lea.vmem %s3, 192
      %v1276 = vld [vmem:[%s1275] sm:$0xf]
      %v1277 = vld [vmem:[%s1275 + $0x4] sm:$0xf]
      %v1278 = vld [vmem:[%s1275 + $0x8] sm:$0xf]
      %v1279 = vld [vmem:[%s1275 + $0xc] sm:$0xf]
      %v1280 = vld [vmem:[%s1275 + $0x10] sm:$0xf]
      %v1281 = vld [vmem:[%s1275 + $0x14] sm:$0xf]
      %v1282 = vld [vmem:[%s1275 + $0x18] sm:$0xf]
      %v1283 = vld [vmem:[%s1275 + $0x1c] sm:$0xf]
      %v1284 = vld [vmem:[%s1275 + $0x20] sm:$0xf]
      %v1285 = vld [vmem:[%s1275 + $0x24] sm:$0xf]
      %v1286 = vld [vmem:[%s1275 + $0x28] sm:$0xf]
      %v1287 = vld [vmem:[%s1275 + $0x2c] sm:$0xf]
      %v1288 = vld [vmem:[%s1275 + $0x30] sm:$0xf]
      %v1289 = vld [vmem:[%s1275 + $0x34] sm:$0xf]
      %v1290 = vld [vmem:[%s1275 + $0x38] sm:$0xf]
      %v1291 = vld [vmem:[%s1275 + $0x3c] sm:$0xf]
      %v1308 = vunpack.c.l.b16 %v1276
      %v1309 = vunpack.c.l.b16 %v1277
      %v1310 = vunpack.c.l.b16 %v1278
      %v1311 = vunpack.c.l.b16 %v1279
      %v1312 = vunpack.c.l.b16 %v1280
      %v1313 = vunpack.c.l.b16 %v1281
      %v1314 = vunpack.c.l.b16 %v1282
      %v1315 = vunpack.c.l.b16 %v1283
      %v1316 = vunpack.c.l.b16 %v1284
      %v1317 = vunpack.c.l.b16 %v1285
      %v1318 = vunpack.c.l.b16 %v1286
      %v1319 = vunpack.c.l.b16 %v1287
      %v1320 = vunpack.c.l.b16 %v1288
      %v1321 = vunpack.c.l.b16 %v1289
      %v1322 = vunpack.c.l.b16 %v1290
      %v1323 = vunpack.c.l.b16 %v1291
      %v1324 = vpack.c.b16 %v1309, %v1308
      %v1325 = vpack.c.b16 %v1311, %v1310
      %v1326 = vpack.c.b16 %v1313, %v1312
      %v1327 = vpack.c.b16 %v1315, %v1314
      %v1328 = vpack.c.b16 %v1317, %v1316
      %v1329 = vpack.c.b16 %v1319, %v1318
      %v1330 = vpack.c.b16 %v1321, %v1320
      %v1331 = vpack.c.b16 %v1323, %v1322
      %1340 = vmatpush.bf16.msra.mxu0 %v1331
      %1341 = vmatpush.bf16.msra.mxu0 %v1330
      %1342 = vmatpush.bf16.msra.mxu0 %v1329
      %1343 = vmatpush.bf16.msra.mxu0 %v1328
      %1344 = vmatpush.bf16.msra.mxu0 %v1327
      %1345 = vmatpush.bf16.msra.mxu0 %v1326
      %1346 = vmatpush.bf16.msra.mxu0 %v1325
      %1347 = vmatpush.bf16.msra.mxu0 %v1324
      %1348 = vmatmul.bf16.gmra.mxu0 %v1259
      %v1349 = vpop.f32.mrf.mxu0
      %v1350 = vadd.f32 0.0, %v1349
      %v1351 = vpop.f32.mrf.mxu0
      %v1352 = vadd.f32 0.0, %v1351
      %1353 = vmatmul.bf16.gmra.mxu0 %v1260
      %v1354 = vpop.f32.mrf.mxu0
      %v1355 = vadd.f32 0.0, %v1354
      %v1356 = vpop.f32.mrf.mxu0
      %v1357 = vadd.f32 0.0, %v1356
      %1358 = vmatmul.bf16.gmra.mxu0 %v1261
      %v1359 = vpop.f32.mrf.mxu0
      %v1360 = vadd.f32 0.0, %v1359
      %v1361 = vpop.f32.mrf.mxu0
      %v1362 = vadd.f32 0.0, %v1361
      %1363 = vmatmul.bf16.gmra.mxu0 %v1262
      %v1364 = vpop.f32.mrf.mxu0
      %v1365 = vadd.f32 0.0, %v1364
      %v1366 = vpop.f32.mrf.mxu0
      %v1367 = vadd.f32 0.0, %v1366
      %1368 = vmatmul.bf16.gmra.mxu0 %v1263
      %v1369 = vpop.f32.mrf.mxu0
      %v1370 = vadd.f32 0.0, %v1369
      %v1371 = vpop.f32.mrf.mxu0
      %v1372 = vadd.f32 0.0, %v1371
      %1373 = vmatmul.bf16.gmra.mxu0 %v1264
      %v1374 = vpop.f32.mrf.mxu0
      %v1375 = vadd.f32 0.0, %v1374
      %v1376 = vpop.f32.mrf.mxu0
      %v1377 = vadd.f32 0.0, %v1376
      %1378 = vmatmul.bf16.gmra.mxu0 %v1265
      %v1379 = vpop.f32.mrf.mxu0
      %v1380 = vadd.f32 0.0, %v1379
      %v1381 = vpop.f32.mrf.mxu0
      %v1382 = vadd.f32 0.0, %v1381
      %1383 = vmatmul.bf16.gmra.mxu0 %v1266
      %v1384 = vpop.f32.mrf.mxu0
      %v1385 = vadd.f32 0.0, %v1384
      %v1386 = vpop.f32.mrf.mxu0
      %v1387 = vadd.f32 0.0, %v1386
      %1388 = vmatmul.bf16.gmra.mxu0 %v1267
      %v1389 = vpop.f32.mrf.mxu0
      %v1390 = vadd.f32 0.0, %v1389
      %v1391 = vpop.f32.mrf.mxu0
      %v1392 = vadd.f32 0.0, %v1391
      %1393 = vmatmul.bf16.gmra.mxu0 %v1268
      %v1394 = vpop.f32.mrf.mxu0
      %v1395 = vadd.f32 0.0, %v1394
      %v1396 = vpop.f32.mrf.mxu0
      %v1397 = vadd.f32 0.0, %v1396
      %1398 = vmatmul.bf16.gmra.mxu0 %v1269
      %v1399 = vpop.f32.mrf.mxu0
      %v1400 = vadd.f32 0.0, %v1399
      %v1401 = vpop.f32.mrf.mxu0
      %v1402 = vadd.f32 0.0, %v1401
      %1403 = vmatmul.bf16.gmra.mxu0 %v1270
      %v1404 = vpop.f32.mrf.mxu0
      %v1405 = vadd.f32 0.0, %v1404
      %v1406 = vpop.f32.mrf.mxu0
      %v1407 = vadd.f32 0.0, %v1406
      %1408 = vmatmul.bf16.gmra.mxu0 %v1271
      %v1409 = vpop.f32.mrf.mxu0
      %v1410 = vadd.f32 0.0, %v1409
      %v1411 = vpop.f32.mrf.mxu0
      %v1412 = vadd.f32 0.0, %v1411
      %1413 = vmatmul.bf16.gmra.mxu0 %v1272
      %v1414 = vpop.f32.mrf.mxu0
      %v1415 = vadd.f32 0.0, %v1414
      %v1416 = vpop.f32.mrf.mxu0
      %v1417 = vadd.f32 0.0, %v1416
      %1418 = vmatmul.bf16.gmra.mxu0 %v1273
      %v1419 = vpop.f32.mrf.mxu0
      %v1420 = vadd.f32 0.0, %v1419
      %v1421 = vpop.f32.mrf.mxu0
      %v1422 = vadd.f32 0.0, %v1421
      %1423 = vmatmul.bf16.gmra.mxu0 %v1274
      %v1424 = vpop.f32.mrf.mxu0
      %v1425 = vadd.f32 0.0, %v1424
      %v1426 = vpop.f32.mrf.mxu0
      %v1427 = vadd.f32 0.0, %v1426
      %1428 = vdwg.mxu0
      %v1429 = vadd.f32 %v1195, %v1350
      %v1430 = vadd.f32 %v1196, %v1352
      %v1431 = vadd.f32 %v1197, %v1355
      %v1432 = vadd.f32 %v1198, %v1357
      %v1433 = vadd.f32 %v1199, %v1360
      %v1434 = vadd.f32 %v1200, %v1362
      %v1435 = vadd.f32 %v1201, %v1365
      %v1436 = vadd.f32 %v1202, %v1367
      %v1437 = vadd.f32 %v1203, %v1370
      %v1438 = vadd.f32 %v1204, %v1372
      %v1439 = vadd.f32 %v1205, %v1375
      %v1440 = vadd.f32 %v1206, %v1377
      %v1441 = vadd.f32 %v1207, %v1380
      %v1442 = vadd.f32 %v1208, %v1382
      %v1443 = vadd.f32 %v1209, %v1385
      %v1444 = vadd.f32 %v1210, %v1387
      %v1445 = vadd.f32 %v1211, %v1390
      %v1446 = vadd.f32 %v1212, %v1392
      %v1447 = vadd.f32 %v1213, %v1395
      %v1448 = vadd.f32 %v1214, %v1397
      %v1449 = vadd.f32 %v1215, %v1400
      %v1450 = vadd.f32 %v1216, %v1402
      %v1451 = vadd.f32 %v1217, %v1405
      %v1452 = vadd.f32 %v1218, %v1407
      %v1453 = vadd.f32 %v1219, %v1410
      %v1454 = vadd.f32 %v1220, %v1412
      %v1455 = vadd.f32 %v1221, %v1415
      %v1456 = vadd.f32 %v1222, %v1417
      %v1457 = vadd.f32 %v1223, %v1420
      %v1458 = vadd.f32 %v1224, %v1422
      %v1459 = vadd.f32 %v1225, %v1425
      %v1460 = vadd.f32 %v1226, %v1427
      %v1461 = vld [vmem:[%s525 + $0x8] sm:$0xff]
      %v1462 = vld [vmem:[%s525 + $0x10] sm:$0xff]
      %v1463 = vld [vmem:[%s525 + $0x28] sm:$0xff]
      %v1464 = vld [vmem:[%s525 + $0x30] sm:$0xff]
      %v1465 = vld [vmem:[%s525 + $0x48] sm:$0xff]
      %v1466 = vld [vmem:[%s525 + $0x50] sm:$0xff]
      %v1467 = vld [vmem:[%s525 + $0x68] sm:$0xff]
      %v1468 = vld [vmem:[%s525 + $0x70] sm:$0xff]
      %v1469 = vld [vmem:[%s525 + $0x88] sm:$0xff]
      %v1470 = vld [vmem:[%s525 + $0x90] sm:$0xff]
      %v1471 = vld [vmem:[%s525 + $0xa8] sm:$0xff]
      %v1472 = vld [vmem:[%s525 + $0xb0] sm:$0xff]
      %v1473 = vld [vmem:[%s525 + $0xc8] sm:$0xff]
      %v1474 = vld [vmem:[%s525 + $0xd0] sm:$0xff]
      %v1475 = vld [vmem:[%s525 + $0xe8] sm:$0xff]
      %v1476 = vld [vmem:[%s525 + $0xf0] sm:$0xff]
      %v1477 = vld [vmem:[%s525 + $0x108] sm:$0xff]
      %v1478 = vld [vmem:[%s525 + $0x110] sm:$0xff]
      %v1479 = vld [vmem:[%s525 + $0x128] sm:$0xff]
      %v1480 = vld [vmem:[%s525 + $0x130] sm:$0xff]
      %v1481 = vld [vmem:[%s525 + $0x148] sm:$0xff]
      %v1482 = vld [vmem:[%s525 + $0x150] sm:$0xff]
      %v1483 = vld [vmem:[%s525 + $0x168] sm:$0xff]
      %v1484 = vld [vmem:[%s525 + $0x170] sm:$0xff]
      %v1485 = vld [vmem:[%s525 + $0x188] sm:$0xff]
      %v1486 = vld [vmem:[%s525 + $0x190] sm:$0xff]
      %v1487 = vld [vmem:[%s525 + $0x1a8] sm:$0xff]
      %v1488 = vld [vmem:[%s525 + $0x1b0] sm:$0xff]
      %v1489 = vld [vmem:[%s525 + $0x1c8] sm:$0xff]
      %v1490 = vld [vmem:[%s525 + $0x1d0] sm:$0xff]
      %v1491 = vld [vmem:[%s525 + $0x1e8] sm:$0xff]
      %v1492 = vld [vmem:[%s525 + $0x1f0] sm:$0xff]
      %v1493 = vpack.c.bf16 %v1462, %v1461
      %v1494 = vpack.c.bf16 %v1464, %v1463
      %v1495 = vpack.c.bf16 %v1466, %v1465
      %v1496 = vpack.c.bf16 %v1468, %v1467
      %v1497 = vpack.c.bf16 %v1470, %v1469
      %v1498 = vpack.c.bf16 %v1472, %v1471
      %v1499 = vpack.c.bf16 %v1474, %v1473
      %v1500 = vpack.c.bf16 %v1476, %v1475
      %v1501 = vpack.c.bf16 %v1478, %v1477
      %v1502 = vpack.c.bf16 %v1480, %v1479
      %v1503 = vpack.c.bf16 %v1482, %v1481
      %v1504 = vpack.c.bf16 %v1484, %v1483
      %v1505 = vpack.c.bf16 %v1486, %v1485
      %v1506 = vpack.c.bf16 %v1488, %v1487
      %v1507 = vpack.c.bf16 %v1490, %v1489
      %v1508 = vpack.c.bf16 %v1492, %v1491
      %s1509 = scalar_lea.vmem %s3, 256
      %v1510 = vld [vmem:[%s1509] sm:$0xf]
      %v1511 = vld [vmem:[%s1509 + $0x4] sm:$0xf]
      %v1512 = vld [vmem:[%s1509 + $0x8] sm:$0xf]
      %v1513 = vld [vmem:[%s1509 + $0xc] sm:$0xf]
      %v1514 = vld [vmem:[%s1509 + $0x10] sm:$0xf]
      %v1515 = vld [vmem:[%s1509 + $0x14] sm:$0xf]
      %v1516 = vld [vmem:[%s1509 + $0x18] sm:$0xf]
      %v1517 = vld [vmem:[%s1509 + $0x1c] sm:$0xf]
      %v1518 = vld [vmem:[%s1509 + $0x20] sm:$0xf]
      %v1519 = vld [vmem:[%s1509 + $0x24] sm:$0xf]
      %v1520 = vld [vmem:[%s1509 + $0x28] sm:$0xf]
      %v1521 = vld [vmem:[%s1509 + $0x2c] sm:$0xf]
      %v1522 = vld [vmem:[%s1509 + $0x30] sm:$0xf]
      %v1523 = vld [vmem:[%s1509 + $0x34] sm:$0xf]
      %v1524 = vld [vmem:[%s1509 + $0x38] sm:$0xf]
      %v1525 = vld [vmem:[%s1509 + $0x3c] sm:$0xf]
      %v1542 = vunpack.c.l.b16 %v1510
      %v1543 = vunpack.c.l.b16 %v1511
      %v1544 = vunpack.c.l.b16 %v1512
      %v1545 = vunpack.c.l.b16 %v1513
      %v1546 = vunpack.c.l.b16 %v1514
      %v1547 = vunpack.c.l.b16 %v1515
      %v1548 = vunpack.c.l.b16 %v1516
      %v1549 = vunpack.c.l.b16 %v1517
      %v1550 = vunpack.c.l.b16 %v1518
      %v1551 = vunpack.c.l.b16 %v1519
      %v1552 = vunpack.c.l.b16 %v1520
      %v1553 = vunpack.c.l.b16 %v1521
      %v1554 = vunpack.c.l.b16 %v1522
      %v1555 = vunpack.c.l.b16 %v1523
      %v1556 = vunpack.c.l.b16 %v1524
      %v1557 = vunpack.c.l.b16 %v1525
      %v1558 = vpack.c.b16 %v1543, %v1542
      %v1559 = vpack.c.b16 %v1545, %v1544
      %v1560 = vpack.c.b16 %v1547, %v1546
      %v1561 = vpack.c.b16 %v1549, %v1548
      %v1562 = vpack.c.b16 %v1551, %v1550
      %v1563 = vpack.c.b16 %v1553, %v1552
      %v1564 = vpack.c.b16 %v1555, %v1554
      %v1565 = vpack.c.b16 %v1557, %v1556
      %1574 = vmatpush.bf16.msra.mxu0 %v1565
      %1575 = vmatpush.bf16.msra.mxu0 %v1564
      %1576 = vmatpush.bf16.msra.mxu0 %v1563
      %1577 = vmatpush.bf16.msra.mxu0 %v1562
      %1578 = vmatpush.bf16.msra.mxu0 %v1561
      %1579 = vmatpush.bf16.msra.mxu0 %v1560
      %1580 = vmatpush.bf16.msra.mxu0 %v1559
      %1581 = vmatpush.bf16.msra.mxu0 %v1558
      %1582 = vmatmul.bf16.gmra.mxu0 %v1493
      %v1583 = vpop.f32.mrf.mxu0
      %v1584 = vadd.f32 0.0, %v1583
      %v1585 = vpop.f32.mrf.mxu0
      %v1586 = vadd.f32 0.0, %v1585
      %1587 = vmatmul.bf16.gmra.mxu0 %v1494
      %v1588 = vpop.f32.mrf.mxu0
      %v1589 = vadd.f32 0.0, %v1588
      %v1590 = vpop.f32.mrf.mxu0
      %v1591 = vadd.f32 0.0, %v1590
      %1592 = vmatmul.bf16.gmra.mxu0 %v1495
      %v1593 = vpop.f32.mrf.mxu0
      %v1594 = vadd.f32 0.0, %v1593
      %v1595 = vpop.f32.mrf.mxu0
      %v1596 = vadd.f32 0.0, %v1595
      %1597 = vmatmul.bf16.gmra.mxu0 %v1496
      %v1598 = vpop.f32.mrf.mxu0
      %v1599 = vadd.f32 0.0, %v1598
      %v1600 = vpop.f32.mrf.mxu0
      %v1601 = vadd.f32 0.0, %v1600
      %1602 = vmatmul.bf16.gmra.mxu0 %v1497
      %v1603 = vpop.f32.mrf.mxu0
      %v1604 = vadd.f32 0.0, %v1603
      %v1605 = vpop.f32.mrf.mxu0
      %v1606 = vadd.f32 0.0, %v1605
      %1607 = vmatmul.bf16.gmra.mxu0 %v1498
      %v1608 = vpop.f32.mrf.mxu0
      %v1609 = vadd.f32 0.0, %v1608
      %v1610 = vpop.f32.mrf.mxu0
      %v1611 = vadd.f32 0.0, %v1610
      %1612 = vmatmul.bf16.gmra.mxu0 %v1499
      %v1613 = vpop.f32.mrf.mxu0
      %v1614 = vadd.f32 0.0, %v1613
      %v1615 = vpop.f32.mrf.mxu0
      %v1616 = vadd.f32 0.0, %v1615
      %1617 = vmatmul.bf16.gmra.mxu0 %v1500
      %v1618 = vpop.f32.mrf.mxu0
      %v1619 = vadd.f32 0.0, %v1618
      %v1620 = vpop.f32.mrf.mxu0
      %v1621 = vadd.f32 0.0, %v1620
      %1622 = vmatmul.bf16.gmra.mxu0 %v1501
      %v1623 = vpop.f32.mrf.mxu0
      %v1624 = vadd.f32 0.0, %v1623
      %v1625 = vpop.f32.mrf.mxu0
      %v1626 = vadd.f32 0.0, %v1625
      %1627 = vmatmul.bf16.gmra.mxu0 %v1502
      %v1628 = vpop.f32.mrf.mxu0
      %v1629 = vadd.f32 0.0, %v1628
      %v1630 = vpop.f32.mrf.mxu0
      %v1631 = vadd.f32 0.0, %v1630
      %1632 = vmatmul.bf16.gmra.mxu0 %v1503
      %v1633 = vpop.f32.mrf.mxu0
      %v1634 = vadd.f32 0.0, %v1633
      %v1635 = vpop.f32.mrf.mxu0
      %v1636 = vadd.f32 0.0, %v1635
      %1637 = vmatmul.bf16.gmra.mxu0 %v1504
      %v1638 = vpop.f32.mrf.mxu0
      %v1639 = vadd.f32 0.0, %v1638
      %v1640 = vpop.f32.mrf.mxu0
      %v1641 = vadd.f32 0.0, %v1640
      %1642 = vmatmul.bf16.gmra.mxu0 %v1505
      %v1643 = vpop.f32.mrf.mxu0
      %v1644 = vadd.f32 0.0, %v1643
      %v1645 = vpop.f32.mrf.mxu0
      %v1646 = vadd.f32 0.0, %v1645
      %1647 = vmatmul.bf16.gmra.mxu0 %v1506
      %v1648 = vpop.f32.mrf.mxu0
      %v1649 = vadd.f32 0.0, %v1648
      %v1650 = vpop.f32.mrf.mxu0
      %v1651 = vadd.f32 0.0, %v1650
      %1652 = vmatmul.bf16.gmra.mxu0 %v1507
      %v1653 = vpop.f32.mrf.mxu0
      %v1654 = vadd.f32 0.0, %v1653
      %v1655 = vpop.f32.mrf.mxu0
      %v1656 = vadd.f32 0.0, %v1655
      %1657 = vmatmul.bf16.gmra.mxu0 %v1508
      %v1658 = vpop.f32.mrf.mxu0
      %v1659 = vadd.f32 0.0, %v1658
      %v1660 = vpop.f32.mrf.mxu0
      %v1661 = vadd.f32 0.0, %v1660
      %1662 = vdwg.mxu0
      %v1663 = vadd.f32 %v1429, %v1584
      %v1664 = vadd.f32 %v1430, %v1586
      %v1665 = vadd.f32 %v1431, %v1589
      %v1666 = vadd.f32 %v1432, %v1591
      %v1667 = vadd.f32 %v1433, %v1594
      %v1668 = vadd.f32 %v1434, %v1596
      %v1669 = vadd.f32 %v1435, %v1599
      %v1670 = vadd.f32 %v1436, %v1601
      %v1671 = vadd.f32 %v1437, %v1604
      %v1672 = vadd.f32 %v1438, %v1606
      %v1673 = vadd.f32 %v1439, %v1609
      %v1674 = vadd.f32 %v1440, %v1611
      %v1675 = vadd.f32 %v1441, %v1614
      %v1676 = vadd.f32 %v1442, %v1616
      %v1677 = vadd.f32 %v1443, %v1619
      %v1678 = vadd.f32 %v1444, %v1621
      %v1679 = vadd.f32 %v1445, %v1624
      %v1680 = vadd.f32 %v1446, %v1626
      %v1681 = vadd.f32 %v1447, %v1629
      %v1682 = vadd.f32 %v1448, %v1631
      %v1683 = vadd.f32 %v1449, %v1634
      %v1684 = vadd.f32 %v1450, %v1636
      %v1685 = vadd.f32 %v1451, %v1639
      %v1686 = vadd.f32 %v1452, %v1641
      %v1687 = vadd.f32 %v1453, %v1644
      %v1688 = vadd.f32 %v1454, %v1646
      %v1689 = vadd.f32 %v1455, %v1649
      %v1690 = vadd.f32 %v1456, %v1651
      %v1691 = vadd.f32 %v1457, %v1654
      %v1692 = vadd.f32 %v1458, %v1656
      %v1693 = vadd.f32 %v1459, %v1659
      %v1694 = vadd.f32 %v1460, %v1661
      %v1695 = vld [vmem:[%s525 + $0x9] sm:$0xff]
      %v1696 = vld [vmem:[%s525 + $0x11] sm:$0xff]
      %v1697 = vld [vmem:[%s525 + $0x29] sm:$0xff]
      %v1698 = vld [vmem:[%s525 + $0x31] sm:$0xff]
      %v1699 = vld [vmem:[%s525 + $0x49] sm:$0xff]
      %v1700 = vld [vmem:[%s525 + $0x51] sm:$0xff]
      %v1701 = vld [vmem:[%s525 + $0x69] sm:$0xff]
      %v1702 = vld [vmem:[%s525 + $0x71] sm:$0xff]
      %v1703 = vld [vmem:[%s525 + $0x89] sm:$0xff]
      %v1704 = vld [vmem:[%s525 + $0x91] sm:$0xff]
      %v1705 = vld [vmem:[%s525 + $0xa9] sm:$0xff]
      %v1706 = vld [vmem:[%s525 + $0xb1] sm:$0xff]
      %v1707 = vld [vmem:[%s525 + $0xc9] sm:$0xff]
      %v1708 = vld [vmem:[%s525 + $0xd1] sm:$0xff]
      %v1709 = vld [vmem:[%s525 + $0xe9] sm:$0xff]
      %v1710 = vld [vmem:[%s525 + $0xf1] sm:$0xff]
      %v1711 = vld [vmem:[%s525 + $0x109] sm:$0xff]
      %v1712 = vld [vmem:[%s525 + $0x111] sm:$0xff]
      %v1713 = vld [vmem:[%s525 + $0x129] sm:$0xff]
      %v1714 = vld [vmem:[%s525 + $0x131] sm:$0xff]
      %v1715 = vld [vmem:[%s525 + $0x149] sm:$0xff]
      %v1716 = vld [vmem:[%s525 + $0x151] sm:$0xff]
      %v1717 = vld [vmem:[%s525 + $0x169] sm:$0xff]
      %v1718 = vld [vmem:[%s525 + $0x171] sm:$0xff]
      %v1719 = vld [vmem:[%s525 + $0x189] sm:$0xff]
      %v1720 = vld [vmem:[%s525 + $0x191] sm:$0xff]
      %v1721 = vld [vmem:[%s525 + $0x1a9] sm:$0xff]
      %v1722 = vld [vmem:[%s525 + $0x1b1] sm:$0xff]
      %v1723 = vld [vmem:[%s525 + $0x1c9] sm:$0xff]
      %v1724 = vld [vmem:[%s525 + $0x1d1] sm:$0xff]
      %v1725 = vld [vmem:[%s525 + $0x1e9] sm:$0xff]
      %v1726 = vld [vmem:[%s525 + $0x1f1] sm:$0xff]
      %v1727 = vpack.c.bf16 %v1696, %v1695
      %v1728 = vpack.c.bf16 %v1698, %v1697
      %v1729 = vpack.c.bf16 %v1700, %v1699
      %v1730 = vpack.c.bf16 %v1702, %v1701
      %v1731 = vpack.c.bf16 %v1704, %v1703
      %v1732 = vpack.c.bf16 %v1706, %v1705
      %v1733 = vpack.c.bf16 %v1708, %v1707
      %v1734 = vpack.c.bf16 %v1710, %v1709
      %v1735 = vpack.c.bf16 %v1712, %v1711
      %v1736 = vpack.c.bf16 %v1714, %v1713
      %v1737 = vpack.c.bf16 %v1716, %v1715
      %v1738 = vpack.c.bf16 %v1718, %v1717
      %v1739 = vpack.c.bf16 %v1720, %v1719
      %v1740 = vpack.c.bf16 %v1722, %v1721
      %v1741 = vpack.c.bf16 %v1724, %v1723
      %v1742 = vpack.c.bf16 %v1726, %v1725
      %s1743 = scalar_lea.vmem %s3, 320
      %v1744 = vld [vmem:[%s1743] sm:$0xf]
      %v1745 = vld [vmem:[%s1743 + $0x4] sm:$0xf]
      %v1746 = vld [vmem:[%s1743 + $0x8] sm:$0xf]
      %v1747 = vld [vmem:[%s1743 + $0xc] sm:$0xf]
      %v1748 = vld [vmem:[%s1743 + $0x10] sm:$0xf]
      %v1749 = vld [vmem:[%s1743 + $0x14] sm:$0xf]
      %v1750 = vld [vmem:[%s1743 + $0x18] sm:$0xf]
      %v1751 = vld [vmem:[%s1743 + $0x1c] sm:$0xf]
      %v1752 = vld [vmem:[%s1743 + $0x20] sm:$0xf]
      %v1753 = vld [vmem:[%s1743 + $0x24] sm:$0xf]
      %v1754 = vld [vmem:[%s1743 + $0x28] sm:$0xf]
      %v1755 = vld [vmem:[%s1743 + $0x2c] sm:$0xf]
      %v1756 = vld [vmem:[%s1743 + $0x30] sm:$0xf]
      %v1757 = vld [vmem:[%s1743 + $0x34] sm:$0xf]
      %v1758 = vld [vmem:[%s1743 + $0x38] sm:$0xf]
      %v1759 = vld [vmem:[%s1743 + $0x3c] sm:$0xf]
      %v1776 = vunpack.c.l.b16 %v1744
      %v1777 = vunpack.c.l.b16 %v1745
      %v1778 = vunpack.c.l.b16 %v1746
      %v1779 = vunpack.c.l.b16 %v1747
      %v1780 = vunpack.c.l.b16 %v1748
      %v1781 = vunpack.c.l.b16 %v1749
      %v1782 = vunpack.c.l.b16 %v1750
      %v1783 = vunpack.c.l.b16 %v1751
      %v1784 = vunpack.c.l.b16 %v1752
      %v1785 = vunpack.c.l.b16 %v1753
      %v1786 = vunpack.c.l.b16 %v1754
      %v1787 = vunpack.c.l.b16 %v1755
      %v1788 = vunpack.c.l.b16 %v1756
      %v1789 = vunpack.c.l.b16 %v1757
      %v1790 = vunpack.c.l.b16 %v1758
      %v1791 = vunpack.c.l.b16 %v1759
      %v1792 = vpack.c.b16 %v1777, %v1776
      %v1793 = vpack.c.b16 %v1779, %v1778
      %v1794 = vpack.c.b16 %v1781, %v1780
      %v1795 = vpack.c.b16 %v1783, %v1782
      %v1796 = vpack.c.b16 %v1785, %v1784
      %v1797 = vpack.c.b16 %v1787, %v1786
      %v1798 = vpack.c.b16 %v1789, %v1788
      %v1799 = vpack.c.b16 %v1791, %v1790
      %1808 = vmatpush.bf16.msra.mxu0 %v1799
      %1809 = vmatpush.bf16.msra.mxu0 %v1798
      %1810 = vmatpush.bf16.msra.mxu0 %v1797
      %1811 = vmatpush.bf16.msra.mxu0 %v1796
      %1812 = vmatpush.bf16.msra.mxu0 %v1795
      %1813 = vmatpush.bf16.msra.mxu0 %v1794
      %1814 = vmatpush.bf16.msra.mxu0 %v1793
      %1815 = vmatpush.bf16.msra.mxu0 %v1792
      %1816 = vmatmul.bf16.gmra.mxu0 %v1727
      %v1817 = vpop.f32.mrf.mxu0
      %v1818 = vadd.f32 0.0, %v1817
      %v1819 = vpop.f32.mrf.mxu0
      %v1820 = vadd.f32 0.0, %v1819
      %1821 = vmatmul.bf16.gmra.mxu0 %v1728
      %v1822 = vpop.f32.mrf.mxu0
      %v1823 = vadd.f32 0.0, %v1822
      %v1824 = vpop.f32.mrf.mxu0
      %v1825 = vadd.f32 0.0, %v1824
      %1826 = vmatmul.bf16.gmra.mxu0 %v1729
      %v1827 = vpop.f32.mrf.mxu0
      %v1828 = vadd.f32 0.0, %v1827
      %v1829 = vpop.f32.mrf.mxu0
      %v1830 = vadd.f32 0.0, %v1829
      %1831 = vmatmul.bf16.gmra.mxu0 %v1730
      %v1832 = vpop.f32.mrf.mxu0
      %v1833 = vadd.f32 0.0, %v1832
      %v1834 = vpop.f32.mrf.mxu0
      %v1835 = vadd.f32 0.0, %v1834
      %1836 = vmatmul.bf16.gmra.mxu0 %v1731
      %v1837 = vpop.f32.mrf.mxu0
      %v1838 = vadd.f32 0.0, %v1837
      %v1839 = vpop.f32.mrf.mxu0
      %v1840 = vadd.f32 0.0, %v1839
      %1841 = vmatmul.bf16.gmra.mxu0 %v1732
      %v1842 = vpop.f32.mrf.mxu0
      %v1843 = vadd.f32 0.0, %v1842
      %v1844 = vpop.f32.mrf.mxu0
      %v1845 = vadd.f32 0.0, %v1844
      %1846 = vmatmul.bf16.gmra.mxu0 %v1733
      %v1847 = vpop.f32.mrf.mxu0
      %v1848 = vadd.f32 0.0, %v1847
      %v1849 = vpop.f32.mrf.mxu0
      %v1850 = vadd.f32 0.0, %v1849
      %1851 = vmatmul.bf16.gmra.mxu0 %v1734
      %v1852 = vpop.f32.mrf.mxu0
      %v1853 = vadd.f32 0.0, %v1852
      %v1854 = vpop.f32.mrf.mxu0
      %v1855 = vadd.f32 0.0, %v1854
      %1856 = vmatmul.bf16.gmra.mxu0 %v1735
      %v1857 = vpop.f32.mrf.mxu0
      %v1858 = vadd.f32 0.0, %v1857
      %v1859 = vpop.f32.mrf.mxu0
      %v1860 = vadd.f32 0.0, %v1859
      %1861 = vmatmul.bf16.gmra.mxu0 %v1736
      %v1862 = vpop.f32.mrf.mxu0
      %v1863 = vadd.f32 0.0, %v1862
      %v1864 = vpop.f32.mrf.mxu0
      %v1865 = vadd.f32 0.0, %v1864
      %1866 = vmatmul.bf16.gmra.mxu0 %v1737
      %v1867 = vpop.f32.mrf.mxu0
      %v1868 = vadd.f32 0.0, %v1867
      %v1869 = vpop.f32.mrf.mxu0
      %v1870 = vadd.f32 0.0, %v1869
      %1871 = vmatmul.bf16.gmra.mxu0 %v1738
      %v1872 = vpop.f32.mrf.mxu0
      %v1873 = vadd.f32 0.0, %v1872
      %v1874 = vpop.f32.mrf.mxu0
      %v1875 = vadd.f32 0.0, %v1874
      %1876 = vmatmul.bf16.gmra.mxu0 %v1739
      %v1877 = vpop.f32.mrf.mxu0
      %v1878 = vadd.f32 0.0, %v1877
      %v1879 = vpop.f32.mrf.mxu0
      %v1880 = vadd.f32 0.0, %v1879
      %1881 = vmatmul.bf16.gmra.mxu0 %v1740
      %v1882 = vpop.f32.mrf.mxu0
      %v1883 = vadd.f32 0.0, %v1882
      %v1884 = vpop.f32.mrf.mxu0
      %v1885 = vadd.f32 0.0, %v1884
      %1886 = vmatmul.bf16.gmra.mxu0 %v1741
      %v1887 = vpop.f32.mrf.mxu0
      %v1888 = vadd.f32 0.0, %v1887
      %v1889 = vpop.f32.mrf.mxu0
      %v1890 = vadd.f32 0.0, %v1889
      %1891 = vmatmul.bf16.gmra.mxu0 %v1742
      %v1892 = vpop.f32.mrf.mxu0
      %v1893 = vadd.f32 0.0, %v1892
      %v1894 = vpop.f32.mrf.mxu0
      %v1895 = vadd.f32 0.0, %v1894
      %1896 = vdwg.mxu0
      %v1897 = vadd.f32 %v1663, %v1818
      %v1898 = vadd.f32 %v1664, %v1820
      %v1899 = vadd.f32 %v1665, %v1823
      %v1900 = vadd.f32 %v1666, %v1825
      %v1901 = vadd.f32 %v1667, %v1828
      %v1902 = vadd.f32 %v1668, %v1830
      %v1903 = vadd.f32 %v1669, %v1833
      %v1904 = vadd.f32 %v1670, %v1835
      %v1905 = vadd.f32 %v1671, %v1838
      %v1906 = vadd.f32 %v1672, %v1840
      %v1907 = vadd.f32 %v1673, %v1843
      %v1908 = vadd.f32 %v1674, %v1845
      %v1909 = vadd.f32 %v1675, %v1848
      %v1910 = vadd.f32 %v1676, %v1850
      %v1911 = vadd.f32 %v1677, %v1853
      %v1912 = vadd.f32 %v1678, %v1855
      %v1913 = vadd.f32 %v1679, %v1858
      %v1914 = vadd.f32 %v1680, %v1860
      %v1915 = vadd.f32 %v1681, %v1863
      %v1916 = vadd.f32 %v1682, %v1865
      %v1917 = vadd.f32 %v1683, %v1868
      %v1918 = vadd.f32 %v1684, %v1870
      %v1919 = vadd.f32 %v1685, %v1873
      %v1920 = vadd.f32 %v1686, %v1875
      %v1921 = vadd.f32 %v1687, %v1878
      %v1922 = vadd.f32 %v1688, %v1880
      %v1923 = vadd.f32 %v1689, %v1883
      %v1924 = vadd.f32 %v1690, %v1885
      %v1925 = vadd.f32 %v1691, %v1888
      %v1926 = vadd.f32 %v1692, %v1890
      %v1927 = vadd.f32 %v1693, %v1893
      %v1928 = vadd.f32 %v1694, %v1895
      %s1929 = scalar_lea.vmem [#allocation2], 64
      %v1930 = vld [vmem:[%s1929 + $0x7] sm:$0xff]
      %v1931 = vld [vmem:[%s1929 + $0xf] sm:$0xff]
      %v1932 = vld [vmem:[%s1929 + $0x27] sm:$0xff]
      %v1933 = vld [vmem:[%s1929 + $0x2f] sm:$0xff]
      %v1934 = vld [vmem:[%s1929 + $0x47] sm:$0xff]
      %v1935 = vld [vmem:[%s1929 + $0x4f] sm:$0xff]
      %v1936 = vld [vmem:[%s1929 + $0x67] sm:$0xff]
      %v1937 = vld [vmem:[%s1929 + $0x6f] sm:$0xff]
      %v1938 = vld [vmem:[%s1929 + $0x87] sm:$0xff]
      %v1939 = vld [vmem:[%s1929 + $0x8f] sm:$0xff]
      %v1940 = vld [vmem:[%s1929 + $0xa7] sm:$0xff]
      %v1941 = vld [vmem:[%s1929 + $0xaf] sm:$0xff]
      %v1942 = vld [vmem:[%s1929 + $0xc7] sm:$0xff]
      %v1943 = vld [vmem:[%s1929 + $0xcf] sm:$0xff]
      %v1944 = vld [vmem:[%s1929 + $0xe7] sm:$0xff]
      %v1945 = vld [vmem:[%s1929 + $0xef] sm:$0xff]
      %v1946 = vld [vmem:[%s1929 + $0x107] sm:$0xff]
      %v1947 = vld [vmem:[%s1929 + $0x10f] sm:$0xff]
      %v1948 = vld [vmem:[%s1929 + $0x127] sm:$0xff]
      %v1949 = vld [vmem:[%s1929 + $0x12f] sm:$0xff]
      %v1950 = vld [vmem:[%s1929 + $0x147] sm:$0xff]
      %v1951 = vld [vmem:[%s1929 + $0x14f] sm:$0xff]
      %v1952 = vld [vmem:[%s1929 + $0x167] sm:$0xff]
      %v1953 = vld [vmem:[%s1929 + $0x16f] sm:$0xff]
      %v1954 = vld [vmem:[%s1929 + $0x187] sm:$0xff]
      %v1955 = vld [vmem:[%s1929 + $0x18f] sm:$0xff]
      %v1956 = vld [vmem:[%s1929 + $0x1a7] sm:$0xff]
      %v1957 = vld [vmem:[%s1929 + $0x1af] sm:$0xff]
      %v1958 = vld [vmem:[%s1929 + $0x1c7] sm:$0xff]
      %v1959 = vld [vmem:[%s1929 + $0x1cf] sm:$0xff]
      %v1960 = vld [vmem:[%s1929 + $0x1e7] sm:$0xff]
      %v1961 = vld [vmem:[%s1929 + $0x1ef] sm:$0xff]
      %v1962 = vpack.c.bf16 %v1931, %v1930
      %v1963 = vpack.c.bf16 %v1933, %v1932
      %v1964 = vpack.c.bf16 %v1935, %v1934
      %v1965 = vpack.c.bf16 %v1937, %v1936
      %v1966 = vpack.c.bf16 %v1939, %v1938
      %v1967 = vpack.c.bf16 %v1941, %v1940
      %v1968 = vpack.c.bf16 %v1943, %v1942
      %v1969 = vpack.c.bf16 %v1945, %v1944
      %v1970 = vpack.c.bf16 %v1947, %v1946
      %v1971 = vpack.c.bf16 %v1949, %v1948
      %v1972 = vpack.c.bf16 %v1951, %v1950
      %v1973 = vpack.c.bf16 %v1953, %v1952
      %v1974 = vpack.c.bf16 %v1955, %v1954
      %v1975 = vpack.c.bf16 %v1957, %v1956
      %v1976 = vpack.c.bf16 %v1959, %v1958
      %v1977 = vpack.c.bf16 %v1961, %v1960
      %s1978 = scalar_lea.vmem %s3, 384
      %v1979 = vld [vmem:[%s1978] sm:$0xf]
      %v1980 = vld [vmem:[%s1978 + $0x4] sm:$0xf]
      %v1981 = vld [vmem:[%s1978 + $0x8] sm:$0xf]
      %v1982 = vld [vmem:[%s1978 + $0xc] sm:$0xf]
      %v1983 = vld [vmem:[%s1978 + $0x10] sm:$0xf]
      %v1984 = vld [vmem:[%s1978 + $0x14] sm:$0xf]
      %v1985 = vld [vmem:[%s1978 + $0x18] sm:$0xf]
      %v1986 = vld [vmem:[%s1978 + $0x1c] sm:$0xf]
      %v1987 = vld [vmem:[%s1978 + $0x20] sm:$0xf]
      %v1988 = vld [vmem:[%s1978 + $0x24] sm:$0xf]
      %v1989 = vld [vmem:[%s1978 + $0x28] sm:$0xf]
      %v1990 = vld [vmem:[%s1978 + $0x2c] sm:$0xf]
      %v1991 = vld [vmem:[%s1978 + $0x30] sm:$0xf]
      %v1992 = vld [vmem:[%s1978 + $0x34] sm:$0xf]
      %v1993 = vld [vmem:[%s1978 + $0x38] sm:$0xf]
      %v1994 = vld [vmem:[%s1978 + $0x3c] sm:$0xf]
      %v2011 = vunpack.c.l.b16 %v1979
      %v2012 = vunpack.c.l.b16 %v1980
      %v2013 = vunpack.c.l.b16 %v1981
      %v2014 = vunpack.c.l.b16 %v1982
      %v2015 = vunpack.c.l.b16 %v1983
      %v2016 = vunpack.c.l.b16 %v1984
      %v2017 = vunpack.c.l.b16 %v1985
      %v2018 = vunpack.c.l.b16 %v1986
      %v2019 = vunpack.c.l.b16 %v1987
      %v2020 = vunpack.c.l.b16 %v1988
      %v2021 = vunpack.c.l.b16 %v1989
      %v2022 = vunpack.c.l.b16 %v1990
      %v2023 = vunpack.c.l.b16 %v1991
      %v2024 = vunpack.c.l.b16 %v1992
      %v2025 = vunpack.c.l.b16 %v1993
      %v2026 = vunpack.c.l.b16 %v1994
      %v2027 = vpack.c.b16 %v2012, %v2011
      %v2028 = vpack.c.b16 %v2014, %v2013
      %v2029 = vpack.c.b16 %v2016, %v2015
      %v2030 = vpack.c.b16 %v2018, %v2017
      %v2031 = vpack.c.b16 %v2020, %v2019
      %v2032 = vpack.c.b16 %v2022, %v2021
      %v2033 = vpack.c.b16 %v2024, %v2023
      %v2034 = vpack.c.b16 %v2026, %v2025
      %2043 = vmatpush.bf16.msra.mxu0 %v2034
      %2044 = vmatpush.bf16.msra.mxu0 %v2033
      %2045 = vmatpush.bf16.msra.mxu0 %v2032
      %2046 = vmatpush.bf16.msra.mxu0 %v2031
      %2047 = vmatpush.bf16.msra.mxu0 %v2030
      %2048 = vmatpush.bf16.msra.mxu0 %v2029
      %2049 = vmatpush.bf16.msra.mxu0 %v2028
      %2050 = vmatpush.bf16.msra.mxu0 %v2027
      %2051 = vmatmul.bf16.gmra.mxu0 %v1962
      %v2052 = vpop.f32.mrf.mxu0
      %v2053 = vadd.f32 0.0, %v2052
      %v2054 = vpop.f32.mrf.mxu0
      %v2055 = vadd.f32 0.0, %v2054
      %2056 = vmatmul.bf16.gmra.mxu0 %v1963
      %v2057 = vpop.f32.mrf.mxu0
      %v2058 = vadd.f32 0.0, %v2057
      %v2059 = vpop.f32.mrf.mxu0
      %v2060 = vadd.f32 0.0, %v2059
      %2061 = vmatmul.bf16.gmra.mxu0 %v1964
      %v2062 = vpop.f32.mrf.mxu0
      %v2063 = vadd.f32 0.0, %v2062
      %v2064 = vpop.f32.mrf.mxu0
      %v2065 = vadd.f32 0.0, %v2064
      %2066 = vmatmul.bf16.gmra.mxu0 %v1965
      %v2067 = vpop.f32.mrf.mxu0
      %v2068 = vadd.f32 0.0, %v2067
      %v2069 = vpop.f32.mrf.mxu0
      %v2070 = vadd.f32 0.0, %v2069
      %2071 = vmatmul.bf16.gmra.mxu0 %v1966
      %v2072 = vpop.f32.mrf.mxu0
      %v2073 = vadd.f32 0.0, %v2072
      %v2074 = vpop.f32.mrf.mxu0
      %v2075 = vadd.f32 0.0, %v2074
      %2076 = vmatmul.bf16.gmra.mxu0 %v1967
      %v2077 = vpop.f32.mrf.mxu0
      %v2078 = vadd.f32 0.0, %v2077
      %v2079 = vpop.f32.mrf.mxu0
      %v2080 = vadd.f32 0.0, %v2079
      %2081 = vmatmul.bf16.gmra.mxu0 %v1968
      %v2082 = vpop.f32.mrf.mxu0
      %v2083 = vadd.f32 0.0, %v2082
      %v2084 = vpop.f32.mrf.mxu0
      %v2085 = vadd.f32 0.0, %v2084
      %2086 = vmatmul.bf16.gmra.mxu0 %v1969
      %v2087 = vpop.f32.mrf.mxu0
      %v2088 = vadd.f32 0.0, %v2087
      %v2089 = vpop.f32.mrf.mxu0
      %v2090 = vadd.f32 0.0, %v2089
      %2091 = vmatmul.bf16.gmra.mxu0 %v1970
      %v2092 = vpop.f32.mrf.mxu0
      %v2093 = vadd.f32 0.0, %v2092
      %v2094 = vpop.f32.mrf.mxu0
      %v2095 = vadd.f32 0.0, %v2094
      %2096 = vmatmul.bf16.gmra.mxu0 %v1971
      %v2097 = vpop.f32.mrf.mxu0
      %v2098 = vadd.f32 0.0, %v2097
      %v2099 = vpop.f32.mrf.mxu0
      %v2100 = vadd.f32 0.0, %v2099
      %2101 = vmatmul.bf16.gmra.mxu0 %v1972
      %v2102 = vpop.f32.mrf.mxu0
      %v2103 = vadd.f32 0.0, %v2102
      %v2104 = vpop.f32.mrf.mxu0
      %v2105 = vadd.f32 0.0, %v2104
      %2106 = vmatmul.bf16.gmra.mxu0 %v1973
      %v2107 = vpop.f32.mrf.mxu0
      %v2108 = vadd.f32 0.0, %v2107
      %v2109 = vpop.f32.mrf.mxu0
      %v2110 = vadd.f32 0.0, %v2109
      %2111 = vmatmul.bf16.gmra.mxu0 %v1974
      %v2112 = vpop.f32.mrf.mxu0
      %v2113 = vadd.f32 0.0, %v2112
      %v2114 = vpop.f32.mrf.mxu0
      %v2115 = vadd.f32 0.0, %v2114
      %2116 = vmatmul.bf16.gmra.mxu0 %v1975
      %v2117 = vpop.f32.mrf.mxu0
      %v2118 = vadd.f32 0.0, %v2117
      %v2119 = vpop.f32.mrf.mxu0
      %v2120 = vadd.f32 0.0, %v2119
      %2121 = vmatmul.bf16.gmra.mxu0 %v1976
      %v2122 = vpop.f32.mrf.mxu0
      %v2123 = vadd.f32 0.0, %v2122
      %v2124 = vpop.f32.mrf.mxu0
      %v2125 = vadd.f32 0.0, %v2124
      %2126 = vmatmul.bf16.gmra.mxu0 %v1977
      %v2127 = vpop.f32.mrf.mxu0
      %v2128 = vadd.f32 0.0, %v2127
      %v2129 = vpop.f32.mrf.mxu0
      %v2130 = vadd.f32 0.0, %v2129
      %2131 = vdwg.mxu0
      %v2132 = vadd.f32 %v1897, %v2053
      %v2133 = vadd.f32 %v1898, %v2055
      %v2134 = vadd.f32 %v1899, %v2058
      %v2135 = vadd.f32 %v1900, %v2060
      %v2136 = vadd.f32 %v1901, %v2063
      %v2137 = vadd.f32 %v1902, %v2065
      %v2138 = vadd.f32 %v1903, %v2068
      %v2139 = vadd.f32 %v1904, %v2070
      %v2140 = vadd.f32 %v1905, %v2073
      %v2141 = vadd.f32 %v1906, %v2075
      %v2142 = vadd.f32 %v1907, %v2078
      %v2143 = vadd.f32 %v1908, %v2080
      %v2144 = vadd.f32 %v1909, %v2083
      %v2145 = vadd.f32 %v1910, %v2085
      %v2146 = vadd.f32 %v1911, %v2088
      %v2147 = vadd.f32 %v1912, %v2090
      %v2148 = vadd.f32 %v1913, %v2093
      %v2149 = vadd.f32 %v1914, %v2095
      %v2150 = vadd.f32 %v1915, %v2098
      %v2151 = vadd.f32 %v1916, %v2100
      %v2152 = vadd.f32 %v1917, %v2103
      %v2153 = vadd.f32 %v1918, %v2105
      %v2154 = vadd.f32 %v1919, %v2108
      %v2155 = vadd.f32 %v1920, %v2110
      %v2156 = vadd.f32 %v1921, %v2113
      %v2157 = vadd.f32 %v1922, %v2115
      %v2158 = vadd.f32 %v1923, %v2118
      %v2159 = vadd.f32 %v1924, %v2120
      %v2160 = vadd.f32 %v1925, %v2123
      %v2161 = vadd.f32 %v1926, %v2125
      %v2162 = vadd.f32 %v1927, %v2128
      %v2163 = vadd.f32 %v1928, %v2130
      %v2164 = vld [vmem:[%s1929 + $0x8] sm:$0xff]
      %v2165 = vld [vmem:[%s1929 + $0x10] sm:$0xff]
      %v2166 = vld [vmem:[%s1929 + $0x28] sm:$0xff]
      %v2167 = vld [vmem:[%s1929 + $0x30] sm:$0xff]
      %v2168 = vld [vmem:[%s1929 + $0x48] sm:$0xff]
      %v2169 = vld [vmem:[%s1929 + $0x50] sm:$0xff]
      %v2170 = vld [vmem:[%s1929 + $0x68] sm:$0xff]
      %v2171 = vld [vmem:[%s1929 + $0x70] sm:$0xff]
      %v2172 = vld [vmem:[%s1929 + $0x88] sm:$0xff]
      %v2173 = vld [vmem:[%s1929 + $0x90] sm:$0xff]
      %v2174 = vld [vmem:[%s1929 + $0xa8] sm:$0xff]
      %v2175 = vld [vmem:[%s1929 + $0xb0] sm:$0xff]
      %v2176 = vld [vmem:[%s1929 + $0xc8] sm:$0xff]
      %v2177 = vld [vmem:[%s1929 + $0xd0] sm:$0xff]
      %v2178 = vld [vmem:[%s1929 + $0xe8] sm:$0xff]
      %v2179 = vld [vmem:[%s1929 + $0xf0] sm:$0xff]
      %v2180 = vld [vmem:[%s1929 + $0x108] sm:$0xff]
      %v2181 = vld [vmem:[%s1929 + $0x110] sm:$0xff]
      %v2182 = vld [vmem:[%s1929 + $0x128] sm:$0xff]
      %v2183 = vld [vmem:[%s1929 + $0x130] sm:$0xff]
      %v2184 = vld [vmem:[%s1929 + $0x148] sm:$0xff]
      %v2185 = vld [vmem:[%s1929 + $0x150] sm:$0xff]
      %v2186 = vld [vmem:[%s1929 + $0x168] sm:$0xff]
      %v2187 = vld [vmem:[%s1929 + $0x170] sm:$0xff]
      %v2188 = vld [vmem:[%s1929 + $0x188] sm:$0xff]
      %v2189 = vld [vmem:[%s1929 + $0x190] sm:$0xff]
      %v2190 = vld [vmem:[%s1929 + $0x1a8] sm:$0xff]
      %v2191 = vld [vmem:[%s1929 + $0x1b0] sm:$0xff]
      %v2192 = vld [vmem:[%s1929 + $0x1c8] sm:$0xff]
      %v2193 = vld [vmem:[%s1929 + $0x1d0] sm:$0xff]
      %v2194 = vld [vmem:[%s1929 + $0x1e8] sm:$0xff]
      %v2195 = vld [vmem:[%s1929 + $0x1f0] sm:$0xff]
      %v2196 = vpack.c.bf16 %v2165, %v2164
      %v2197 = vpack.c.bf16 %v2167, %v2166
      %v2198 = vpack.c.bf16 %v2169, %v2168
      %v2199 = vpack.c.bf16 %v2171, %v2170
      %v2200 = vpack.c.bf16 %v2173, %v2172
      %v2201 = vpack.c.bf16 %v2175, %v2174
      %v2202 = vpack.c.bf16 %v2177, %v2176
      %v2203 = vpack.c.bf16 %v2179, %v2178
      %v2204 = vpack.c.bf16 %v2181, %v2180
      %v2205 = vpack.c.bf16 %v2183, %v2182
      %v2206 = vpack.c.bf16 %v2185, %v2184
      %v2207 = vpack.c.bf16 %v2187, %v2186
      %v2208 = vpack.c.bf16 %v2189, %v2188
      %v2209 = vpack.c.bf16 %v2191, %v2190
      %v2210 = vpack.c.bf16 %v2193, %v2192
      %v2211 = vpack.c.bf16 %v2195, %v2194
      %s2212 = scalar_lea.vmem %s3, 448
      %v2213 = vld [vmem:[%s2212] sm:$0xf]
      %v2214 = vld [vmem:[%s2212 + $0x4] sm:$0xf]
      %v2215 = vld [vmem:[%s2212 + $0x8] sm:$0xf]
      %v2216 = vld [vmem:[%s2212 + $0xc] sm:$0xf]
      %v2217 = vld [vmem:[%s2212 + $0x10] sm:$0xf]
      %v2218 = vld [vmem:[%s2212 + $0x14] sm:$0xf]
      %v2219 = vld [vmem:[%s2212 + $0x18] sm:$0xf]
      %v2220 = vld [vmem:[%s2212 + $0x1c] sm:$0xf]
      %v2221 = vld [vmem:[%s2212 + $0x20] sm:$0xf]
      %v2222 = vld [vmem:[%s2212 + $0x24] sm:$0xf]
      %v2223 = vld [vmem:[%s2212 + $0x28] sm:$0xf]
      %v2224 = vld [vmem:[%s2212 + $0x2c] sm:$0xf]
      %v2225 = vld [vmem:[%s2212 + $0x30] sm:$0xf]
      %v2226 = vld [vmem:[%s2212 + $0x34] sm:$0xf]
      %v2227 = vld [vmem:[%s2212 + $0x38] sm:$0xf]
      %v2228 = vld [vmem:[%s2212 + $0x3c] sm:$0xf]
      %v2245 = vunpack.c.l.b16 %v2213
      %v2246 = vunpack.c.l.b16 %v2214
      %v2247 = vunpack.c.l.b16 %v2215
      %v2248 = vunpack.c.l.b16 %v2216
      %v2249 = vunpack.c.l.b16 %v2217
      %v2250 = vunpack.c.l.b16 %v2218
      %v2251 = vunpack.c.l.b16 %v2219
      %v2252 = vunpack.c.l.b16 %v2220
      %v2253 = vunpack.c.l.b16 %v2221
      %v2254 = vunpack.c.l.b16 %v2222
      %v2255 = vunpack.c.l.b16 %v2223
      %v2256 = vunpack.c.l.b16 %v2224
      %v2257 = vunpack.c.l.b16 %v2225
      %v2258 = vunpack.c.l.b16 %v2226
      %v2259 = vunpack.c.l.b16 %v2227
      %v2260 = vunpack.c.l.b16 %v2228
      %v2261 = vpack.c.b16 %v2246, %v2245
      %v2262 = vpack.c.b16 %v2248, %v2247
      %v2263 = vpack.c.b16 %v2250, %v2249
      %v2264 = vpack.c.b16 %v2252, %v2251
      %v2265 = vpack.c.b16 %v2254, %v2253
      %v2266 = vpack.c.b16 %v2256, %v2255
      %v2267 = vpack.c.b16 %v2258, %v2257
      %v2268 = vpack.c.b16 %v2260, %v2259
      %2277 = vmatpush.bf16.msra.mxu0 %v2268
      %2278 = vmatpush.bf16.msra.mxu0 %v2267
      %2279 = vmatpush.bf16.msra.mxu0 %v2266
      %2280 = vmatpush.bf16.msra.mxu0 %v2265
      %2281 = vmatpush.bf16.msra.mxu0 %v2264
      %2282 = vmatpush.bf16.msra.mxu0 %v2263
      %2283 = vmatpush.bf16.msra.mxu0 %v2262
      %2284 = vmatpush.bf16.msra.mxu0 %v2261
      %2285 = vmatmul.bf16.gmra.mxu0 %v2196
      %v2286 = vpop.f32.mrf.mxu0
      %v2287 = vadd.f32 0.0, %v2286
      %v2288 = vpop.f32.mrf.mxu0
      %v2289 = vadd.f32 0.0, %v2288
      %2290 = vmatmul.bf16.gmra.mxu0 %v2197
      %v2291 = vpop.f32.mrf.mxu0
      %v2292 = vadd.f32 0.0, %v2291
      %v2293 = vpop.f32.mrf.mxu0
      %v2294 = vadd.f32 0.0, %v2293
      %2295 = vmatmul.bf16.gmra.mxu0 %v2198
      %v2296 = vpop.f32.mrf.mxu0
      %v2297 = vadd.f32 0.0, %v2296
      %v2298 = vpop.f32.mrf.mxu0
      %v2299 = vadd.f32 0.0, %v2298
      %2300 = vmatmul.bf16.gmra.mxu0 %v2199
      %v2301 = vpop.f32.mrf.mxu0
      %v2302 = vadd.f32 0.0, %v2301
      %v2303 = vpop.f32.mrf.mxu0
      %v2304 = vadd.f32 0.0, %v2303
      %2305 = vmatmul.bf16.gmra.mxu0 %v2200
      %v2306 = vpop.f32.mrf.mxu0
      %v2307 = vadd.f32 0.0, %v2306
      %v2308 = vpop.f32.mrf.mxu0
      %v2309 = vadd.f32 0.0, %v2308
      %2310 = vmatmul.bf16.gmra.mxu0 %v2201
      %v2311 = vpop.f32.mrf.mxu0
      %v2312 = vadd.f32 0.0, %v2311
      %v2313 = vpop.f32.mrf.mxu0
      %v2314 = vadd.f32 0.0, %v2313
      %2315 = vmatmul.bf16.gmra.mxu0 %v2202
      %v2316 = vpop.f32.mrf.mxu0
      %v2317 = vadd.f32 0.0, %v2316
      %v2318 = vpop.f32.mrf.mxu0
      %v2319 = vadd.f32 0.0, %v2318
      %2320 = vmatmul.bf16.gmra.mxu0 %v2203
      %v2321 = vpop.f32.mrf.mxu0
      %v2322 = vadd.f32 0.0, %v2321
      %v2323 = vpop.f32.mrf.mxu0
      %v2324 = vadd.f32 0.0, %v2323
      %2325 = vmatmul.bf16.gmra.mxu0 %v2204
      %v2326 = vpop.f32.mrf.mxu0
      %v2327 = vadd.f32 0.0, %v2326
      %v2328 = vpop.f32.mrf.mxu0
      %v2329 = vadd.f32 0.0, %v2328
      %2330 = vmatmul.bf16.gmra.mxu0 %v2205
      %v2331 = vpop.f32.mrf.mxu0
      %v2332 = vadd.f32 0.0, %v2331
      %v2333 = vpop.f32.mrf.mxu0
      %v2334 = vadd.f32 0.0, %v2333
      %2335 = vmatmul.bf16.gmra.mxu0 %v2206
      %v2336 = vpop.f32.mrf.mxu0
      %v2337 = vadd.f32 0.0, %v2336
      %v2338 = vpop.f32.mrf.mxu0
      %v2339 = vadd.f32 0.0, %v2338
      %2340 = vmatmul.bf16.gmra.mxu0 %v2207
      %v2341 = vpop.f32.mrf.mxu0
      %v2342 = vadd.f32 0.0, %v2341
      %v2343 = vpop.f32.mrf.mxu0
      %v2344 = vadd.f32 0.0, %v2343
      %2345 = vmatmul.bf16.gmra.mxu0 %v2208
      %v2346 = vpop.f32.mrf.mxu0
      %v2347 = vadd.f32 0.0, %v2346
      %v2348 = vpop.f32.mrf.mxu0
      %v2349 = vadd.f32 0.0, %v2348
      %2350 = vmatmul.bf16.gmra.mxu0 %v2209
      %v2351 = vpop.f32.mrf.mxu0
      %v2352 = vadd.f32 0.0, %v2351
      %v2353 = vpop.f32.mrf.mxu0
      %v2354 = vadd.f32 0.0, %v2353
      %2355 = vmatmul.bf16.gmra.mxu0 %v2210
      %v2356 = vpop.f32.mrf.mxu0
      %v2357 = vadd.f32 0.0, %v2356
      %v2358 = vpop.f32.mrf.mxu0
      %v2359 = vadd.f32 0.0, %v2358
      %2360 = vmatmul.bf16.gmra.mxu0 %v2211
      %v2361 = vpop.f32.mrf.mxu0
      %v2362 = vadd.f32 0.0, %v2361
      %v2363 = vpop.f32.mrf.mxu0
      %v2364 = vadd.f32 0.0, %v2363
      %2365 = vdwg.mxu0
      %v2366 = vadd.f32 %v2132, %v2287
      %v2367 = vadd.f32 %v2133, %v2289
      %v2368 = vadd.f32 %v2134, %v2292
      %v2369 = vadd.f32 %v2135, %v2294
      %v2370 = vadd.f32 %v2136, %v2297
      %v2371 = vadd.f32 %v2137, %v2299
      %v2372 = vadd.f32 %v2138, %v2302
      %v2373 = vadd.f32 %v2139, %v2304
      %v2374 = vadd.f32 %v2140, %v2307
      %v2375 = vadd.f32 %v2141, %v2309
      %v2376 = vadd.f32 %v2142, %v2312
      %v2377 = vadd.f32 %v2143, %v2314
      %v2378 = vadd.f32 %v2144, %v2317
      %v2379 = vadd.f32 %v2145, %v2319
      %v2380 = vadd.f32 %v2146, %v2322
      %v2381 = vadd.f32 %v2147, %v2324
      %v2382 = vadd.f32 %v2148, %v2327
      %v2383 = vadd.f32 %v2149, %v2329
      %v2384 = vadd.f32 %v2150, %v2332
      %v2385 = vadd.f32 %v2151, %v2334
      %v2386 = vadd.f32 %v2152, %v2337
      %v2387 = vadd.f32 %v2153, %v2339
      %v2388 = vadd.f32 %v2154, %v2342
      %v2389 = vadd.f32 %v2155, %v2344
      %v2390 = vadd.f32 %v2156, %v2347
      %v2391 = vadd.f32 %v2157, %v2349
      %v2392 = vadd.f32 %v2158, %v2352
      %v2393 = vadd.f32 %v2159, %v2354
      %v2394 = vadd.f32 %v2160, %v2357
      %v2395 = vadd.f32 %v2161, %v2359
      %v2396 = vadd.f32 %v2162, %v2362
      %v2397 = vadd.f32 %v2163, %v2364
      %v2398 = vld [vmem:[%s1929 + $0x9] sm:$0xff]
      %v2399 = vld [vmem:[%s1929 + $0x11] sm:$0xff]
      %v2400 = vld [vmem:[%s1929 + $0x29] sm:$0xff]
      %v2401 = vld [vmem:[%s1929 + $0x31] sm:$0xff]
      %v2402 = vld [vmem:[%s1929 + $0x49] sm:$0xff]
      %v2403 = vld [vmem:[%s1929 + $0x51] sm:$0xff]
      %v2404 = vld [vmem:[%s1929 + $0x69] sm:$0xff]
      %v2405 = vld [vmem:[%s1929 + $0x71] sm:$0xff]
      %v2406 = vld [vmem:[%s1929 + $0x89] sm:$0xff]
      %v2407 = vld [vmem:[%s1929 + $0x91] sm:$0xff]
      %v2408 = vld [vmem:[%s1929 + $0xa9] sm:$0xff]
      %v2409 = vld [vmem:[%s1929 + $0xb1] sm:$0xff]
      %v2410 = vld [vmem:[%s1929 + $0xc9] sm:$0xff]
      %v2411 = vld [vmem:[%s1929 + $0xd1] sm:$0xff]
      %v2412 = vld [vmem:[%s1929 + $0xe9] sm:$0xff]
      %v2413 = vld [vmem:[%s1929 + $0xf1] sm:$0xff]
      %v2414 = vld [vmem:[%s1929 + $0x109] sm:$0xff]
      %v2415 = vld [vmem:[%s1929 + $0x111] sm:$0xff]
      %v2416 = vld [vmem:[%s1929 + $0x129] sm:$0xff]
      %v2417 = vld [vmem:[%s1929 + $0x131] sm:$0xff]
      %v2418 = vld [vmem:[%s1929 + $0x149] sm:$0xff]
      %v2419 = vld [vmem:[%s1929 + $0x151] sm:$0xff]
      %v2420 = vld [vmem:[%s1929 + $0x169] sm:$0xff]
      %v2421 = vld [vmem:[%s1929 + $0x171] sm:$0xff]
      %v2422 = vld [vmem:[%s1929 + $0x189] sm:$0xff]
      %v2423 = vld [vmem:[%s1929 + $0x191] sm:$0xff]
      %v2424 = vld [vmem:[%s1929 + $0x1a9] sm:$0xff]
      %v2425 = vld [vmem:[%s1929 + $0x1b1] sm:$0xff]
      %v2426 = vld [vmem:[%s1929 + $0x1c9] sm:$0xff]
      %v2427 = vld [vmem:[%s1929 + $0x1d1] sm:$0xff]
      %v2428 = vld [vmem:[%s1929 + $0x1e9] sm:$0xff]
      %v2429 = vld [vmem:[%s1929 + $0x1f1] sm:$0xff]
      %v2430 = vpack.c.bf16 %v2399, %v2398
      %v2431 = vpack.c.bf16 %v2401, %v2400
      %v2432 = vpack.c.bf16 %v2403, %v2402
      %v2433 = vpack.c.bf16 %v2405, %v2404
      %v2434 = vpack.c.bf16 %v2407, %v2406
      %v2435 = vpack.c.bf16 %v2409, %v2408
      %v2436 = vpack.c.bf16 %v2411, %v2410
      %v2437 = vpack.c.bf16 %v2413, %v2412
      %v2438 = vpack.c.bf16 %v2415, %v2414
      %v2439 = vpack.c.bf16 %v2417, %v2416
      %v2440 = vpack.c.bf16 %v2419, %v2418
      %v2441 = vpack.c.bf16 %v2421, %v2420
      %v2442 = vpack.c.bf16 %v2423, %v2422
      %v2443 = vpack.c.bf16 %v2425, %v2424
      %v2444 = vpack.c.bf16 %v2427, %v2426
      %v2445 = vpack.c.bf16 %v2429, %v2428
      %s2446 = scalar_lea.vmem %s3, 512
      %v2447 = vld [vmem:[%s2446] sm:$0xf]
      %v2448 = vld [vmem:[%s2446 + $0x4] sm:$0xf]
      %v2449 = vld [vmem:[%s2446 + $0x8] sm:$0xf]
      %v2450 = vld [vmem:[%s2446 + $0xc] sm:$0xf]
      %v2451 = vld [vmem:[%s2446 + $0x10] sm:$0xf]
      %v2452 = vld [vmem:[%s2446 + $0x14] sm:$0xf]
      %v2453 = vld [vmem:[%s2446 + $0x18] sm:$0xf]
      %v2454 = vld [vmem:[%s2446 + $0x1c] sm:$0xf]
      %v2455 = vld [vmem:[%s2446 + $0x20] sm:$0xf]
      %v2456 = vld [vmem:[%s2446 + $0x24] sm:$0xf]
      %v2457 = vld [vmem:[%s2446 + $0x28] sm:$0xf]
      %v2458 = vld [vmem:[%s2446 + $0x2c] sm:$0xf]
      %v2459 = vld [vmem:[%s2446 + $0x30] sm:$0xf]
      %v2460 = vld [vmem:[%s2446 + $0x34] sm:$0xf]
      %v2461 = vld [vmem:[%s2446 + $0x38] sm:$0xf]
      %v2462 = vld [vmem:[%s2446 + $0x3c] sm:$0xf]
      %v2479 = vunpack.c.l.b16 %v2447
      %v2480 = vunpack.c.l.b16 %v2448
      %v2481 = vunpack.c.l.b16 %v2449
      %v2482 = vunpack.c.l.b16 %v2450
      %v2483 = vunpack.c.l.b16 %v2451
      %v2484 = vunpack.c.l.b16 %v2452
      %v2485 = vunpack.c.l.b16 %v2453
      %v2486 = vunpack.c.l.b16 %v2454
      %v2487 = vunpack.c.l.b16 %v2455
      %v2488 = vunpack.c.l.b16 %v2456
      %v2489 = vunpack.c.l.b16 %v2457
      %v2490 = vunpack.c.l.b16 %v2458
      %v2491 = vunpack.c.l.b16 %v2459
      %v2492 = vunpack.c.l.b16 %v2460
      %v2493 = vunpack.c.l.b16 %v2461
      %v2494 = vunpack.c.l.b16 %v2462
      %v2495 = vpack.c.b16 %v2480, %v2479
      %v2496 = vpack.c.b16 %v2482, %v2481
      %v2497 = vpack.c.b16 %v2484, %v2483
      %v2498 = vpack.c.b16 %v2486, %v2485
      %v2499 = vpack.c.b16 %v2488, %v2487
      %v2500 = vpack.c.b16 %v2490, %v2489
      %v2501 = vpack.c.b16 %v2492, %v2491
      %v2502 = vpack.c.b16 %v2494, %v2493
      %2511 = vmatpush.bf16.msra.mxu0 %v2502
      %2512 = vmatpush.bf16.msra.mxu0 %v2501
      %2513 = vmatpush.bf16.msra.mxu0 %v2500
      %2514 = vmatpush.bf16.msra.mxu0 %v2499
      %2515 = vmatpush.bf16.msra.mxu0 %v2498
      %2516 = vmatpush.bf16.msra.mxu0 %v2497
      %2517 = vmatpush.bf16.msra.mxu0 %v2496
      %2518 = vmatpush.bf16.msra.mxu0 %v2495
      %2519 = vmatmul.bf16.gmra.mxu0 %v2430
      %v2520 = vpop.f32.mrf.mxu0
      %v2521 = vadd.f32 0.0, %v2520
      %v2522 = vpop.f32.mrf.mxu0
      %v2523 = vadd.f32 0.0, %v2522
      %2524 = vmatmul.bf16.gmra.mxu0 %v2431
      %v2525 = vpop.f32.mrf.mxu0
      %v2526 = vadd.f32 0.0, %v2525
      %v2527 = vpop.f32.mrf.mxu0
      %v2528 = vadd.f32 0.0, %v2527
      %2529 = vmatmul.bf16.gmra.mxu0 %v2432
      %v2530 = vpop.f32.mrf.mxu0
      %v2531 = vadd.f32 0.0, %v2530
      %v2532 = vpop.f32.mrf.mxu0
      %v2533 = vadd.f32 0.0, %v2532
      %2534 = vmatmul.bf16.gmra.mxu0 %v2433
      %v2535 = vpop.f32.mrf.mxu0
      %v2536 = vadd.f32 0.0, %v2535
      %v2537 = vpop.f32.mrf.mxu0
      %v2538 = vadd.f32 0.0, %v2537
      %2539 = vmatmul.bf16.gmra.mxu0 %v2434
      %v2540 = vpop.f32.mrf.mxu0
      %v2541 = vadd.f32 0.0, %v2540
      %v2542 = vpop.f32.mrf.mxu0
      %v2543 = vadd.f32 0.0, %v2542
      %2544 = vmatmul.bf16.gmra.mxu0 %v2435
      %v2545 = vpop.f32.mrf.mxu0
      %v2546 = vadd.f32 0.0, %v2545
      %v2547 = vpop.f32.mrf.mxu0
      %v2548 = vadd.f32 0.0, %v2547
      %2549 = vmatmul.bf16.gmra.mxu0 %v2436
      %v2550 = vpop.f32.mrf.mxu0
      %v2551 = vadd.f32 0.0, %v2550
      %v2552 = vpop.f32.mrf.mxu0
      %v2553 = vadd.f32 0.0, %v2552
      %2554 = vmatmul.bf16.gmra.mxu0 %v2437
      %v2555 = vpop.f32.mrf.mxu0
      %v2556 = vadd.f32 0.0, %v2555
      %v2557 = vpop.f32.mrf.mxu0
      %v2558 = vadd.f32 0.0, %v2557
      %2559 = vmatmul.bf16.gmra.mxu0 %v2438
      %v2560 = vpop.f32.mrf.mxu0
      %v2561 = vadd.f32 0.0, %v2560
      %v2562 = vpop.f32.mrf.mxu0
      %v2563 = vadd.f32 0.0, %v2562
      %2564 = vmatmul.bf16.gmra.mxu0 %v2439
      %v2565 = vpop.f32.mrf.mxu0
      %v2566 = vadd.f32 0.0, %v2565
      %v2567 = vpop.f32.mrf.mxu0
      %v2568 = vadd.f32 0.0, %v2567
      %2569 = vmatmul.bf16.gmra.mxu0 %v2440
      %v2570 = vpop.f32.mrf.mxu0
      %v2571 = vadd.f32 0.0, %v2570
      %v2572 = vpop.f32.mrf.mxu0
      %v2573 = vadd.f32 0.0, %v2572
      %2574 = vmatmul.bf16.gmra.mxu0 %v2441
      %v2575 = vpop.f32.mrf.mxu0
      %v2576 = vadd.f32 0.0, %v2575
      %v2577 = vpop.f32.mrf.mxu0
      %v2578 = vadd.f32 0.0, %v2577
      %2579 = vmatmul.bf16.gmra.mxu0 %v2442
      %v2580 = vpop.f32.mrf.mxu0
      %v2581 = vadd.f32 0.0, %v2580
      %v2582 = vpop.f32.mrf.mxu0
      %v2583 = vadd.f32 0.0, %v2582
      %2584 = vmatmul.bf16.gmra.mxu0 %v2443
      %v2585 = vpop.f32.mrf.mxu0
      %v2586 = vadd.f32 0.0, %v2585
      %v2587 = vpop.f32.mrf.mxu0
      %v2588 = vadd.f32 0.0, %v2587
      %2589 = vmatmul.bf16.gmra.mxu0 %v2444
      %v2590 = vpop.f32.mrf.mxu0
      %v2591 = vadd.f32 0.0, %v2590
      %v2592 = vpop.f32.mrf.mxu0
      %v2593 = vadd.f32 0.0, %v2592
      %2594 = vmatmul.bf16.gmra.mxu0 %v2445
      %v2595 = vpop.f32.mrf.mxu0
      %v2596 = vadd.f32 0.0, %v2595
      %v2597 = vpop.f32.mrf.mxu0
      %v2598 = vadd.f32 0.0, %v2597
      %2599 = vdwg.mxu0
      %v2600 = vadd.f32 %v2366, %v2521
      %v2601 = vadd.f32 %v2367, %v2523
      %v2602 = vadd.f32 %v2368, %v2526
      %v2603 = vadd.f32 %v2369, %v2528
      %v2604 = vadd.f32 %v2370, %v2531
      %v2605 = vadd.f32 %v2371, %v2533
      %v2606 = vadd.f32 %v2372, %v2536
      %v2607 = vadd.f32 %v2373, %v2538
      %v2608 = vadd.f32 %v2374, %v2541
      %v2609 = vadd.f32 %v2375, %v2543
      %v2610 = vadd.f32 %v2376, %v2546
      %v2611 = vadd.f32 %v2377, %v2548
      %v2612 = vadd.f32 %v2378, %v2551
      %v2613 = vadd.f32 %v2379, %v2553
      %v2614 = vadd.f32 %v2380, %v2556
      %v2615 = vadd.f32 %v2381, %v2558
      %v2616 = vadd.f32 %v2382, %v2561
      %v2617 = vadd.f32 %v2383, %v2563
      %v2618 = vadd.f32 %v2384, %v2566
      %v2619 = vadd.f32 %v2385, %v2568
      %v2620 = vadd.f32 %v2386, %v2571
      %v2621 = vadd.f32 %v2387, %v2573
      %v2622 = vadd.f32 %v2388, %v2576
      %v2623 = vadd.f32 %v2389, %v2578
      %v2624 = vadd.f32 %v2390, %v2581
      %v2625 = vadd.f32 %v2391, %v2583
      %v2626 = vadd.f32 %v2392, %v2586
      %v2627 = vadd.f32 %v2393, %v2588
      %v2628 = vadd.f32 %v2394, %v2591
      %v2629 = vadd.f32 %v2395, %v2593
      %v2630 = vadd.f32 %v2396, %v2596
      %v2631 = vadd.f32 %v2397, %v2598
      %v2632 = vld [vmem:[%s4] sm:$0x1]
      %v2634 = vperm.slane %v2632, 0
      %v2636 = vadd.f32 %v2600, %v2634
      %v2637 = vadd.f32 %v2601, %v2634
      %v2638 = vadd.f32 %v2602, %v2634
      %v2639 = vadd.f32 %v2603, %v2634
      %v2640 = vadd.f32 %v2604, %v2634
      %v2641 = vadd.f32 %v2605, %v2634
      %v2642 = vadd.f32 %v2606, %v2634
      %v2643 = vadd.f32 %v2607, %v2634
      %v2644 = vadd.f32 %v2608, %v2634
      %v2645 = vadd.f32 %v2609, %v2634
      %v2646 = vadd.f32 %v2610, %v2634
      %v2647 = vadd.f32 %v2611, %v2634
      %v2648 = vadd.f32 %v2612, %v2634
      %v2649 = vadd.f32 %v2613, %v2634
      %v2650 = vadd.f32 %v2614, %v2634
      %v2651 = vadd.f32 %v2615, %v2634
      %v2652 = vadd.f32 %v2616, %v2634
      %v2653 = vadd.f32 %v2617, %v2634
      %v2654 = vadd.f32 %v2618, %v2634
      %v2655 = vadd.f32 %v2619, %v2634
      %v2656 = vadd.f32 %v2620, %v2634
      %v2657 = vadd.f32 %v2621, %v2634
      %v2658 = vadd.f32 %v2622, %v2634
      %v2659 = vadd.f32 %v2623, %v2634
      %v2660 = vadd.f32 %v2624, %v2634
      %v2661 = vadd.f32 %v2625, %v2634
      %v2662 = vadd.f32 %v2626, %v2634
      %v2663 = vadd.f32 %v2627, %v2634
      %v2664 = vadd.f32 %v2628, %v2634
      %v2665 = vadd.f32 %v2629, %v2634
      %v2666 = vadd.f32 %v2630, %v2634
      %v2667 = vadd.f32 %v2631, %v2634
      %v2668 = vmax.f32 %v2636, 0.0
      %v2669 = vmax.f32 %v2637, 0.0
      %v2670 = vmax.f32 %v2638, 0.0
      %v2671 = vmax.f32 %v2639, 0.0
      %v2672 = vmax.f32 %v2640, 0.0
      %v2673 = vmax.f32 %v2641, 0.0
      %v2674 = vmax.f32 %v2642, 0.0
      %v2675 = vmax.f32 %v2643, 0.0
      %v2676 = vmax.f32 %v2644, 0.0
      %v2677 = vmax.f32 %v2645, 0.0
      %v2678 = vmax.f32 %v2646, 0.0
      %v2679 = vmax.f32 %v2647, 0.0
      %v2680 = vmax.f32 %v2648, 0.0
      %v2681 = vmax.f32 %v2649, 0.0
      %v2682 = vmax.f32 %v2650, 0.0
      %v2683 = vmax.f32 %v2651, 0.0
      %v2684 = vmax.f32 %v2652, 0.0
      %v2685 = vmax.f32 %v2653, 0.0
      %v2686 = vmax.f32 %v2654, 0.0
      %v2687 = vmax.f32 %v2655, 0.0
      %v2688 = vmax.f32 %v2656, 0.0
      %v2689 = vmax.f32 %v2657, 0.0
      %v2690 = vmax.f32 %v2658, 0.0
      %v2691 = vmax.f32 %v2659, 0.0
      %v2692 = vmax.f32 %v2660, 0.0
      %v2693 = vmax.f32 %v2661, 0.0
      %v2694 = vmax.f32 %v2662, 0.0
      %v2695 = vmax.f32 %v2663, 0.0
      %v2696 = vmax.f32 %v2664, 0.0
      %v2697 = vmax.f32 %v2665, 0.0
      %v2698 = vmax.f32 %v2666, 0.0
      %v2699 = vmax.f32 %v2667, 0.0
      %v2700 = vpack.c.bf16 %v2669, %v2668
      %v2701 = vpack.c.bf16 %v2671, %v2670
      %v2702 = vpack.c.bf16 %v2673, %v2672
      %v2703 = vpack.c.bf16 %v2675, %v2674
      %v2704 = vpack.c.bf16 %v2677, %v2676
      %v2705 = vpack.c.bf16 %v2679, %v2678
      %v2706 = vpack.c.bf16 %v2681, %v2680
      %v2707 = vpack.c.bf16 %v2683, %v2682
      %v2708 = vpack.c.bf16 %v2685, %v2684
      %v2709 = vpack.c.bf16 %v2687, %v2686
      %v2710 = vpack.c.bf16 %v2689, %v2688
      %v2711 = vpack.c.bf16 %v2691, %v2690
      %v2712 = vpack.c.bf16 %v2693, %v2692
      %v2713 = vpack.c.bf16 %v2695, %v2694
      %v2714 = vpack.c.bf16 %v2697, %v2696
      %v2715 = vpack.c.bf16 %v2699, %v2698
      %v2716 = vld [vmem:[%s5] sm:$0xf]
      %v2717 = vld [vmem:[%s5 + $0x4] sm:$0xf]
      %v2718 = vld [vmem:[%s5 + $0x8] sm:$0xf]
      %v2719 = vld [vmem:[%s5 + $0xc] sm:$0xf]
      %v2720 = vld [vmem:[%s5 + $0x10] sm:$0xf]
      %v2721 = vld [vmem:[%s5 + $0x14] sm:$0xf]
      %v2722 = vld [vmem:[%s5 + $0x18] sm:$0xf]
      %v2723 = vld [vmem:[%s5 + $0x1c] sm:$0xf]
      %v2724 = vld [vmem:[%s5 + $0x20] sm:$0xf]
      %v2725 = vld [vmem:[%s5 + $0x24] sm:$0xf]
      %v2726 = vld [vmem:[%s5 + $0x28] sm:$0xf]
      %v2727 = vld [vmem:[%s5 + $0x2c] sm:$0xf]
      %v2728 = vld [vmem:[%s5 + $0x30] sm:$0xf]
      %v2729 = vld [vmem:[%s5 + $0x34] sm:$0xf]
      %v2730 = vld [vmem:[%s5 + $0x38] sm:$0xf]
      %v2731 = vld [vmem:[%s5 + $0x3c] sm:$0xf]
      %v2732 = vld [vmem:[%s6] sm:$0x1]
      %v2734 = vperm.slane %v2732, 0
      %v2752 = vunpack.c.l.b16 %v2716
      %v2753 = vunpack.c.l.b16 %v2717
      %v2754 = vunpack.c.l.b16 %v2718
      %v2755 = vunpack.c.l.b16 %v2719
      %v2756 = vunpack.c.l.b16 %v2720
      %v2757 = vunpack.c.l.b16 %v2721
      %v2758 = vunpack.c.l.b16 %v2722
      %v2759 = vunpack.c.l.b16 %v2723
      %v2760 = vunpack.c.l.b16 %v2724
      %v2761 = vunpack.c.l.b16 %v2725
      %v2762 = vunpack.c.l.b16 %v2726
      %v2763 = vunpack.c.l.b16 %v2727
      %v2764 = vunpack.c.l.b16 %v2728
      %v2765 = vunpack.c.l.b16 %v2729
      %v2766 = vunpack.c.l.b16 %v2730
      %v2767 = vunpack.c.l.b16 %v2731
      %v2768 = vpack.c.b16 %v2753, %v2752
      %v2769 = vpack.c.b16 %v2755, %v2754
      %v2770 = vpack.c.b16 %v2757, %v2756
      %v2771 = vpack.c.b16 %v2759, %v2758
      %v2772 = vpack.c.b16 %v2761, %v2760
      %v2773 = vpack.c.b16 %v2763, %v2762
      %v2774 = vpack.c.b16 %v2765, %v2764
      %v2775 = vpack.c.b16 %v2767, %v2766
      %2784 = vmatpush.bf16.msra.mxu0 %v2775
      %2785 = vmatpush.bf16.msra.mxu0 %v2774
      %2786 = vmatpush.bf16.msra.mxu0 %v2773
      %2787 = vmatpush.bf16.msra.mxu0 %v2772
      %2788 = vmatpush.bf16.msra.mxu0 %v2771
      %2789 = vmatpush.bf16.msra.mxu0 %v2770
      %2790 = vmatpush.bf16.msra.mxu0 %v2769
      %2791 = vmatpush.bf16.msra.mxu0 %v2768
      %2792 = vmatmul.bf16.gmra.mxu0 %v2700
      %v2793 = vpop.f32.mrf.mxu0
      %v2794 = vadd.f32 %v2734, %v2793
      %v2795 = vpop.f32.mrf.mxu0
      %v2796 = vadd.f32 %v2734, %v2795
      %2797 = vmatmul.bf16.gmra.mxu0 %v2701
      %v2798 = vpop.f32.mrf.mxu0
      %v2799 = vadd.f32 %v2734, %v2798
      %v2800 = vpop.f32.mrf.mxu0
      %v2801 = vadd.f32 %v2734, %v2800
      %2802 = vmatmul.bf16.gmra.mxu0 %v2702
      %v2803 = vpop.f32.mrf.mxu0
      %v2804 = vadd.f32 %v2734, %v2803
      %v2805 = vpop.f32.mrf.mxu0
      %v2806 = vadd.f32 %v2734, %v2805
      %2807 = vmatmul.bf16.gmra.mxu0 %v2703
      %v2808 = vpop.f32.mrf.mxu0
      %v2809 = vadd.f32 %v2734, %v2808
      %v2810 = vpop.f32.mrf.mxu0
      %v2811 = vadd.f32 %v2734, %v2810
      %2812 = vmatmul.bf16.gmra.mxu0 %v2704
      %v2813 = vpop.f32.mrf.mxu0
      %v2814 = vadd.f32 %v2734, %v2813
      %v2815 = vpop.f32.mrf.mxu0
      %v2816 = vadd.f32 %v2734, %v2815
      %2817 = vmatmul.bf16.gmra.mxu0 %v2705
      %v2818 = vpop.f32.mrf.mxu0
      %v2819 = vadd.f32 %v2734, %v2818
      %v2820 = vpop.f32.mrf.mxu0
      %v2821 = vadd.f32 %v2734, %v2820
      %2822 = vmatmul.bf16.gmra.mxu0 %v2706
      %v2823 = vpop.f32.mrf.mxu0
      %v2824 = vadd.f32 %v2734, %v2823
      %v2825 = vpop.f32.mrf.mxu0
      %v2826 = vadd.f32 %v2734, %v2825
      %2827 = vmatmul.bf16.gmra.mxu0 %v2707
      %v2828 = vpop.f32.mrf.mxu0
      %v2829 = vadd.f32 %v2734, %v2828
      %v2830 = vpop.f32.mrf.mxu0
      %v2831 = vadd.f32 %v2734, %v2830
      %2832 = vmatmul.bf16.gmra.mxu0 %v2708
      %v2833 = vpop.f32.mrf.mxu0
      %v2834 = vadd.f32 %v2734, %v2833
      %v2835 = vpop.f32.mrf.mxu0
      %v2836 = vadd.f32 %v2734, %v2835
      %2837 = vmatmul.bf16.gmra.mxu0 %v2709
      %v2838 = vpop.f32.mrf.mxu0
      %v2839 = vadd.f32 %v2734, %v2838
      %v2840 = vpop.f32.mrf.mxu0
      %v2841 = vadd.f32 %v2734, %v2840
      %2842 = vmatmul.bf16.gmra.mxu0 %v2710
      %v2843 = vpop.f32.mrf.mxu0
      %v2844 = vadd.f32 %v2734, %v2843
      %v2845 = vpop.f32.mrf.mxu0
      %v2846 = vadd.f32 %v2734, %v2845
      %2847 = vmatmul.bf16.gmra.mxu0 %v2711
      %v2848 = vpop.f32.mrf.mxu0
      %v2849 = vadd.f32 %v2734, %v2848
      %v2850 = vpop.f32.mrf.mxu0
      %v2851 = vadd.f32 %v2734, %v2850
      %2852 = vmatmul.bf16.gmra.mxu0 %v2712
      %v2853 = vpop.f32.mrf.mxu0
      %v2854 = vadd.f32 %v2734, %v2853
      %v2855 = vpop.f32.mrf.mxu0
      %v2856 = vadd.f32 %v2734, %v2855
      %2857 = vmatmul.bf16.gmra.mxu0 %v2713
      %v2858 = vpop.f32.mrf.mxu0
      %v2859 = vadd.f32 %v2734, %v2858
      %v2860 = vpop.f32.mrf.mxu0
      %v2861 = vadd.f32 %v2734, %v2860
      %2862 = vmatmul.bf16.gmra.mxu0 %v2714
      %v2863 = vpop.f32.mrf.mxu0
      %v2864 = vadd.f32 %v2734, %v2863
      %v2865 = vpop.f32.mrf.mxu0
      %v2866 = vadd.f32 %v2734, %v2865
      %2867 = vmatmul.bf16.gmra.mxu0 %v2715
      %v2868 = vpop.f32.mrf.mxu0
      %v2869 = vadd.f32 %v2734, %v2868
      %v2870 = vpop.f32.mrf.mxu0
      %v2871 = vadd.f32 %v2734, %v2870
      %2872 = vdwg.mxu0
      %v2873 = vadd.f32 %v2794, %v279
      %v2874 = vadd.f32 %v2796, %v280
      %v2875 = vadd.f32 %v2799, %v281
      %v2876 = vadd.f32 %v2801, %v282
      %v2877 = vadd.f32 %v2804, %v283
      %v2878 = vadd.f32 %v2806, %v284
      %v2879 = vadd.f32 %v2809, %v285
      %v2880 = vadd.f32 %v2811, %v286
      %v2881 = vadd.f32 %v2814, %v287
      %v2882 = vadd.f32 %v2816, %v288
      %v2883 = vadd.f32 %v2819, %v289
      %v2884 = vadd.f32 %v2821, %v290
      %v2885 = vadd.f32 %v2824, %v291
      %v2886 = vadd.f32 %v2826, %v292
      %v2887 = vadd.f32 %v2829, %v293
      %v2888 = vadd.f32 %v2831, %v294
      %v2889 = vadd.f32 %v2834, %v295
      %v2890 = vadd.f32 %v2836, %v296
      %v2891 = vadd.f32 %v2839, %v297
      %v2892 = vadd.f32 %v2841, %v298
      %v2893 = vadd.f32 %v2844, %v299
      %v2894 = vadd.f32 %v2846, %v300
      %v2895 = vadd.f32 %v2849, %v301
      %v2896 = vadd.f32 %v2851, %v302
      %v2897 = vadd.f32 %v2854, %v303
      %v2898 = vadd.f32 %v2856, %v304
      %v2899 = vadd.f32 %v2859, %v305
      %v2900 = vadd.f32 %v2861, %v306
      %v2901 = vadd.f32 %v2864, %v307
      %v2902 = vadd.f32 %v2866, %v308
      %v2903 = vadd.f32 %v2869, %v309
      %v2904 = vadd.f32 %v2871, %v310
      %v2905 = vmax.f32 %v2873, 0.0
      %v2906 = vmax.f32 %v2874, 0.0
      %v2907 = vmax.f32 %v2875, 0.0
      %v2908 = vmax.f32 %v2876, 0.0
      %v2909 = vmax.f32 %v2877, 0.0
      %v2910 = vmax.f32 %v2878, 0.0
      %v2911 = vmax.f32 %v2879, 0.0
      %v2912 = vmax.f32 %v2880, 0.0
      %v2913 = vmax.f32 %v2881, 0.0
      %v2914 = vmax.f32 %v2882, 0.0
      %v2915 = vmax.f32 %v2883, 0.0
      %v2916 = vmax.f32 %v2884, 0.0
      %v2917 = vmax.f32 %v2885, 0.0
      %v2918 = vmax.f32 %v2886, 0.0
      %v2919 = vmax.f32 %v2887, 0.0
      %v2920 = vmax.f32 %v2888, 0.0
      %v2921 = vmax.f32 %v2889, 0.0
      %v2922 = vmax.f32 %v2890, 0.0
      %v2923 = vmax.f32 %v2891, 0.0
      %v2924 = vmax.f32 %v2892, 0.0
      %v2925 = vmax.f32 %v2893, 0.0
      %v2926 = vmax.f32 %v2894, 0.0
      %v2927 = vmax.f32 %v2895, 0.0
      %v2928 = vmax.f32 %v2896, 0.0
      %v2929 = vmax.f32 %v2897, 0.0
      %v2930 = vmax.f32 %v2898, 0.0
      %v2931 = vmax.f32 %v2899, 0.0
      %v2932 = vmax.f32 %v2900, 0.0
      %v2933 = vmax.f32 %v2901, 0.0
      %v2934 = vmax.f32 %v2902, 0.0
      %v2935 = vmax.f32 %v2903, 0.0
      %v2936 = vmax.f32 %v2904, 0.0
      %2937 = vst [vmem:[%s278] sm:$0xff] %v2905
      %2938 = vst [vmem:[%s278 + $0x8] sm:$0xff] %v2906
      %2939 = vst [vmem:[%s278 + $0x10] sm:$0xff] %v2907
      %2940 = vst [vmem:[%s278 + $0x18] sm:$0xff] %v2908
      %2941 = vst [vmem:[%s278 + $0x20] sm:$0xff] %v2909
      %2942 = vst [vmem:[%s278 + $0x28] sm:$0xff] %v2910
      %2943 = vst [vmem:[%s278 + $0x30] sm:$0xff] %v2911
      %2944 = vst [vmem:[%s278 + $0x38] sm:$0xff] %v2912
      %2945 = vst [vmem:[%s278 + $0x40] sm:$0xff] %v2913
      %2946 = vst [vmem:[%s278 + $0x48] sm:$0xff] %v2914
      %2947 = vst [vmem:[%s278 + $0x50] sm:$0xff] %v2915
      %2948 = vst [vmem:[%s278 + $0x58] sm:$0xff] %v2916
      %2949 = vst [vmem:[%s278 + $0x60] sm:$0xff] %v2917
      %2950 = vst [vmem:[%s278 + $0x68] sm:$0xff] %v2918
      %2951 = vst [vmem:[%s278 + $0x70] sm:$0xff] %v2919
      %2952 = vst [vmem:[%s278 + $0x78] sm:$0xff] %v2920
      %2953 = vst [vmem:[%s278 + $0x80] sm:$0xff] %v2921
      %2954 = vst [vmem:[%s278 + $0x88] sm:$0xff] %v2922
      %2955 = vst [vmem:[%s278 + $0x90] sm:$0xff] %v2923
      %2956 = vst [vmem:[%s278 + $0x98] sm:$0xff] %v2924
      %2957 = vst [vmem:[%s278 + $0xa0] sm:$0xff] %v2925
      %2958 = vst [vmem:[%s278 + $0xa8] sm:$0xff] %v2926
      %2959 = vst [vmem:[%s278 + $0xb0] sm:$0xff] %v2927
      %2960 = vst [vmem:[%s278 + $0xb8] sm:$0xff] %v2928
      %2961 = vst [vmem:[%s278 + $0xc0] sm:$0xff] %v2929
      %2962 = vst [vmem:[%s278 + $0xc8] sm:$0xff] %v2930
      %2963 = vst [vmem:[%s278 + $0xd0] sm:$0xff] %v2931
      %2964 = vst [vmem:[%s278 + $0xd8] sm:$0xff] %v2932
      %2965 = vst [vmem:[%s278 + $0xe0] sm:$0xff] %v2933
      %2966 = vst [vmem:[%s278 + $0xe8] sm:$0xff] %v2934
      %2967 = vst [vmem:[%s278 + $0xf0] sm:$0xff] %v2935
      %2968 = vst [vmem:[%s278 + $0xf8] sm:$0xff] %v2936
      %p2969 = scmp.lt.s32.totalorder %s18, 1
      %s2970 = scalar_select %p2969, %s18, 1
      %s2971 = smul.addr %s2970, 32
      %s2972 = smul.addr %s2971, 8
      %s2973 = scalar_lea.vmem %s7, %s2972
      // Predicated region
      $region49: #{bottleneck_forward.1} parent=47 // pred_check
        %p2974 = pneg %p188
      $region50: #{bottleneck_forward.1} parent=47 // pred_check_branch
        %2976 = sbr.rel (%p2974) target = $region52
      $region51: #{bottleneck_forward.1} parent=47 // pred_region
        _
      $region52: #{bottleneck_forward.1} parent=47 // pred_fallthru
        _
    $region48: #{bottleneck_forward.1} parent=5 // pred_fallthru
      _
    %p2977 = scmp.le.s32.totalorder 2, %s13
    // Predicated region
    $region53: #{bottleneck_forward.1} parent=5 // pred_check
      %p2978 = pneg %p2977
    $region54: #{bottleneck_forward.1} parent=5 // pred_check_branch
      %2980 = sbr.rel (%p2978) target = $region56
    $region55: #{bottleneck_forward.1} parent=5 // pred_region
      %s2981 = ssub.s32 %s13, 2
      // Predicated region
      $region57: #{bottleneck_forward.1} parent=55 // pred_check
        %p2982 = pneg %p194
      $region58: #{bottleneck_forward.1} parent=55 // pred_check_branch
        %2984 = sbr.rel (%p2982) target = $region60
      $region59: #{bottleneck_forward.1} parent=55 // pred_region
        %p2985 = scmp.lt.s32.totalorder %s19, 1
        %s2986 = scalar_select %p2985, %s19, 1
        %s2987 = smul.addr %s2986, 32
        %s2988 = smul.addr %s2987, 8
        %s2989 = scalar_lea.vmem %s7, %s2988
      $region60: #{bottleneck_forward.1} parent=55 // pred_fallthru
        _
    $region56: #{bottleneck_forward.1} parent=5 // pred_fallthru
      _
  $region6: #{bottleneck_forward.1} parent=0 // loop_footer
    %s17 = sadd.s32 1, %s13
  $region7: #{bottleneck_forward.1} parent=0 // loop_footer_branch
    %12 = sbr.rel target = $region3
  $region8: #{bottleneck_forward.1} parent=0 // loop_exit
    _

</llo_original>
